<compile_context>
chip_gen: v7x
topology: tpu7x:2x2x1
jax: 0.10.0
libtpu: 0.0.40
codegen_flags: <defaults>
</compile_context>

<pallas_src>
import functools

import jax
import jax.numpy as jnp
from jax import lax
from jax.experimental import pallas as pl
from jax.experimental.pallas import tpu as pltpu

LRELU_SLOPE = 0.2


def _leaky_relu(x, slope):
    # max(x, slope*x) == leaky_relu for 0 < slope < 1; saves one VPU pass vs where.
    return jnp.maximum(x, slope * x)


def autoencoder_vq_kernel(
    x_ref,      # (Cin, TM)          input pixel tile (channels on sublanes)
    ew_ref,     # (L, Cin)           encoder 1x1 conv weight
    eb_ref,     # (L, 1)             encoder bias
    qw_ref,     # (D+1, L)           quant_conv weight, last row = 0
    qb_ref,     # (D+1, 1)           quant_conv bias,   last row = 1
    cb_ref,     # (K, D+1)  f32      [-2*codebook | |e|^2]  (distance matmul)
    cbt_ref,    # (D+1, K)  bf16     [codebook^T ; ones]    (gather matmul)
    pw_ref,     # (L, D+1)           [post_w | post_b]      (bias folded)
    rw_ref,     # (nb, L, L)         decoder residual-block weights
    rb_ref,     # (nb, L, 1)         decoder residual-block biases
    ow_ref,     # (Cout, L)          decoder output conv weight
    ob_ref,     # (Cout, 1)          decoder output conv bias
    y_ref,      # (Cout, TM)         reconstructed output tile
    idx_ref,    # (1, TM) int32      VQ codebook indices (lane-dense)
    sse_ref,    # (1, TM) f32        per-pixel sum_d (q - z)^2 (loss partials)
    *, lrelu_slope,
):
    f32 = jnp.float32
    x = x_ref[...]                                                   # (Cin, TM)

    # ---- encoder: 1x1 conv + LeakyReLU -------------------------------------
    h = jnp.dot(ew_ref[...], x, preferred_element_type=f32) + eb_ref[...]
    h = _leaky_relu(h, lrelu_slope)                                  # (L, TM)

    # ---- quant_conv (augmented: last row of z_aug is exactly 1.0) ----------
    z_aug = jnp.dot(qw_ref[...], h, preferred_element_type=f32) + qb_ref[...]  # (D+1, TM)

    # ---- vector quantization ------------------------------------------------
    # d[k, m] = |e_k|^2 - 2 e_k . z_m   (the |z_m|^2 term is constant per pixel
    # and dropped: argmin over k is unchanged).  The -2 scale and the |e_k|^2
    # bias are folded into cb_ref / the ones row of z_aug, so there is no
    # post-matmul (K, TM) elementwise fixup.
    d = jnp.dot(cb_ref[...], z_aug, preferred_element_type=f32)      # (K, TM)

    num_codes = d.shape[0]
    # first-argmin (matches torch.argmin tie-breaking).
    # TODO(synk): jnp.argmin(d, axis=0) would fuse this into a single reduce,
    #             but lax.argmin_p lowering in Mosaic is not guaranteed, so the
    #             explicit (tie-exact) two-reduce formulation is kept.
    iota_k = lax.broadcasted_iota(jnp.int32, d.shape, 0)             # (K, TM)
    min_d = jnp.min(d, axis=0, keepdims=True)                        # (1, TM)
    idx = jnp.min(jnp.where(d == min_d, iota_k, num_codes),
                  axis=0, keepdims=True)                             # (1, TM)
    idx_ref[...] = idx

    # one-hot gather on the MXU (one-hot is exact in bf16).  cbt_ref's last row
    # is all ones, so q_aug[D] == 1.0 exactly: it cancels against z_aug's ones
    # row in the SSE and feeds the folded post_quant_conv bias column.
    onehot = (iota_k == idx).astype(jnp.bfloat16)                    # (K, TM)
    q_aug = jnp.dot(cbt_ref[...], onehot,
                    preferred_element_type=f32)                      # (D+1, TM)

    diff = q_aug - z_aug
    sse_ref[...] = jnp.sum(diff * diff, axis=0, keepdims=True)       # (1, TM)

    # ---- post_quant_conv (bias folded: no broadcast add) --------------------
    h2 = jnp.dot(pw_ref[...], q_aug, preferred_element_type=f32)     # (L, TM)

    # ---- decoder: residual 1x1-conv blocks + output conv --------------------
    n_blocks = rw_ref.shape[0]

    def res_block(i, carry):
        t = jnp.dot(rw_ref[i], carry, preferred_element_type=f32) + rb_ref[i]
        return carry + _leaky_relu(t, lrelu_slope)

    h2 = lax.fori_loop(0, n_blocks, res_block, h2, unroll=True)

    y = jnp.dot(ow_ref[...], h2, preferred_element_type=f32) + ob_ref[...]
    y_ref[...] = y.astype(y_ref.dtype)


def _spatial_tiling(hw, target=1024):
    """Return (padded spatial extent, spatial tile size).

    The tile is a multiple of 128 and never exceeds `target`, so the per-tile
    (K, TM) distance / iota / one-hot temporaries (~3 KB/pixel) stay well under
    VMEM on every generation (incl. v7x's 64 MiB).  The spatial axis is padded
    up to a multiple of the tile, keeping all stores lane-dense even for
    HW < 128 or non-128-multiple images.
    """
    if hw >= target:
        tm = target
    else:
        tm = ((hw + 127) // 128) * 128
    hw_pad = ((hw + tm - 1) // tm) * tm
    return hw_pad, tm


def _replicated_spec(shape):
    """Full-array block, same block every grid step -> stays resident in VMEM."""
    zeros = (0,) * len(shape)
    return pl.BlockSpec(shape, lambda b, i, _z=zeros: _z)


def init_params(key, n_channels_init=4, latent_dim=32, quant_dim=32,
                codebook_size=512, n_residual_blocks=8):
    ks = jax.random.split(key, 11)
    s = 0.1
    f32 = jnp.float32
    return {
        "enc_w":    jax.random.normal(ks[0], (latent_dim, n_channels_init), f32) * s,
        "enc_b":    jax.random.normal(ks[1], (latent_dim, 1), f32) * s,
        "quant_w":  jax.random.normal(ks[2], (quant_dim, latent_dim), f32) * s,
        "quant_b":  jax.random.normal(ks[3], (quant_dim, 1), f32) * s,
        "codebook": jax.random.normal(ks[4], (codebook_size, quant_dim), f32) * s,
        "post_w":   jax.random.normal(ks[5], (latent_dim, quant_dim), f32) * s,
        "post_b":   jax.random.normal(ks[6], (latent_dim, 1), f32) * s,
        "res_w":    jax.random.normal(ks[7], (n_residual_blocks, latent_dim, latent_dim), f32) * s,
        "res_b":    jax.random.normal(ks[8], (n_residual_blocks, latent_dim, 1), f32) * s,
        "out_w":    jax.random.normal(ks[9], (n_channels_init, latent_dim), f32) * s,
        "out_b":    jax.random.normal(ks[10], (n_channels_init, 1), f32) * s,
    }


@jax.jit
def autoencoder_vq_forward(x_nchw, params):
    """Returns (reconstruction NCHW, idx (B, H*W), scalar vq commitment loss)."""
    B, C, H, W = x_nchw.shape
    HW = H * W
    f32 = jnp.float32

    latent_dim = params["enc_w"].shape[0]
    quant_dim = params["quant_w"].shape[0]
    n_out = params["out_w"].shape[0]
    codebook = params["codebook"].astype(f32)                        # (K, D)
    K = codebook.shape[0]

    # ---- wrapper-side weight augmentation (all tiny, done once per call) ----
    e_sq = jnp.sum(codebook * codebook, axis=-1, keepdims=True)      # (K, 1)
    cb_aug = jnp.concatenate([-2.0 * codebook, e_sq], axis=1)        # (K, D+1) f32
    cbt_aug = jnp.concatenate([codebook.T, jnp.ones((1, K), f32)],
                              axis=0).astype(jnp.bfloat16)           # (D+1, K) bf16
    qw_aug = jnp.concatenate([params["quant_w"],
                              jnp.zeros((1, latent_dim), f32)], axis=0)  # (D+1, L)
    qb_aug = jnp.concatenate([params["quant_b"],
                              jnp.ones((1, 1), f32)], axis=0)             # (D+1, 1)
    pw_aug = jnp.concatenate([params["post_w"], params["post_b"]], axis=1)  # (L, D+1)

    # ---- spatial tiling / padding -------------------------------------------
    HW_pad, TM = _spatial_tiling(HW)
    # NCHW -> (B, C, H*W): pure reshape, no HBM transpose needed in this layout.
    x = x_nchw.reshape(B, C, HW).astype(f32)
    if HW_pad != HW:
        x = jnp.pad(x, ((0, 0), (0, 0), (0, HW_pad - HW)))

    grid = (B, HW_pad // TM)

    x_spec = pl.BlockSpec((None, C, TM), lambda b, i: (b, 0, i))
    y_spec = pl.BlockSpec((None, n_out, TM), lambda b, i: (b, 0, i))
    row_spec = pl.BlockSpec((None, 1, TM), lambda b, i: (b, 0, i))

    out_shapes = (
        jax.ShapeDtypeStruct((B, n_out, HW_pad), jnp.float32),   # y (NC(HW))
        jax.ShapeDtypeStruct((B, 1, HW_pad), jnp.int32),         # codebook indices
        jax.ShapeDtypeStruct((B, 1, HW_pad), jnp.float32),       # per-pixel sse partials
    )

    args = (
        x,
        params["enc_w"], params["enc_b"],
        qw_aug, qb_aug,
        cb_aug, cbt_aug,
        pw_aug,
        params["res_w"], params["res_b"],
        params["out_w"], params["out_b"],
    )
    in_specs = [x_spec] + [_replicated_spec(a.shape) for a in args[1:]]

    y, idx, sse = pl.pallas_call(
        functools.partial(autoencoder_vq_kernel, lrelu_slope=LRELU_SLOPE),
        out_shape=out_shapes,
        grid=grid,
        in_specs=in_specs,
        out_specs=(y_spec, row_spec, row_spec),
        compiler_params=pltpu.CompilerParams(
            dimension_semantics=("parallel", "parallel"),
            vmem_limit_bytes=32 * 1024 * 1024,
        ),
    )(*args)

    # drop spatial padding, reshape back to NCHW (pure reshape)
    y = y[:, :, :HW].reshape(B, n_out, H, W)
    idx = idx[:, 0, :HW]
    loss = jnp.sum(sse[:, :, :HW]) / (B * HW * quant_dim)  # global mean((q - z)^2)
    return y, idx, loss


if __name__ == "__main__":
    key = jax.random.PRNGKey(0)
    k_in, k_par = jax.random.split(key)

    B, C, H, W = 2, 4, 16, 16
    x = jax.random.normal(k_in, (B, C, H, W), jnp.float32)

    params = init_params(
        k_par, n_channels_init=C, latent_dim=32, quant_dim=32,
        codebook_size=512, n_residual_blocks=8,
    )

    y, idx, loss = autoencoder_vq_forward(x, params)
    jax.block_until_ready((y, idx, loss))

    assert y.shape == (B, C, H, W)
    assert idx.shape == (B, H * W)
    assert loss.shape == ()
    print("KERNEL_OK")
</pallas_src>

<mosaic_0001>
module attributes {stable_mosaic.version = 11 : i64} {
  func.func @autoencoder_vq_kernel(%arg0: i32, %arg1: i32, %arg2: memref<1x4x256xf32, #tpu.memory_space<vmem>>, %arg3: memref<32x4xf32, #tpu.memory_space<vmem>>, %arg4: memref<32x1xf32, #tpu.memory_space<vmem>>, %arg5: memref<33x32xf32, #tpu.memory_space<vmem>>, %arg6: memref<33x1xf32, #tpu.memory_space<vmem>>, %arg7: memref<512x33xf32, #tpu.memory_space<vmem>>, %arg8: memref<33x512xbf16, #tpu.memory_space<vmem>>, %arg9: memref<32x33xf32, #tpu.memory_space<vmem>>, %arg10: memref<8x32x32xf32, #tpu.memory_space<vmem>>, %arg11: memref<8x32x1xf32, #tpu.memory_space<vmem>>, %arg12: memref<4x32xf32, #tpu.memory_space<vmem>>, %arg13: memref<4x1xf32, #tpu.memory_space<vmem>>, %arg14: memref<1x4x256xf32, #tpu.memory_space<vmem>>, %arg15: memref<1x1x256xi32, #tpu.memory_space<vmem>>, %arg16: memref<1x1x256xf32, #tpu.memory_space<vmem>>) attributes {dimension_semantics = [#tpu.dimension_semantics<parallel>, #tpu.dimension_semantics<parallel>], iteration_bounds = array<i64: 2, 1>, scalar_prefetch = 0 : i64, scratch_operands = 0 : i64, tpu.core_type = #tpu.core_type<tc>, window_params = [{transform_indices = @transform_0, window_bounds = array<i64: 1, 4, 256>}, {pipeline_mode = #tpu.pipeline_mode<synchronous>, transform_indices = @transform_1, window_bounds = array<i64: 32, 4>}, {pipeline_mode = #tpu.pipeline_mode<synchronous>, transform_indices = @transform_2, window_bounds = array<i64: 32, 1>}, {pipeline_mode = #tpu.pipeline_mode<synchronous>, transform_indices = @transform_3, window_bounds = array<i64: 33, 32>}, {pipeline_mode = #tpu.pipeline_mode<synchronous>, transform_indices = @transform_4, window_bounds = array<i64: 33, 1>}, {pipeline_mode = #tpu.pipeline_mode<synchronous>, transform_indices = @transform_5, window_bounds = array<i64: 512, 33>}, {pipeline_mode = #tpu.pipeline_mode<synchronous>, transform_indices = @transform_6, window_bounds = array<i64: 33, 512>}, {pipeline_mode = #tpu.pipeline_mode<synchronous>, transform_indices = @transform_7, window_bounds = array<i64: 32, 33>}, {pipeline_mode = #tpu.pipeline_mode<synchronous>, transform_indices = @transform_8, window_bounds = array<i64: 8, 32, 32>}, {pipeline_mode = #tpu.pipeline_mode<synchronous>, transform_indices = @transform_9, window_bounds = array<i64: 8, 32, 1>}, {pipeline_mode = #tpu.pipeline_mode<synchronous>, transform_indices = @transform_10, window_bounds = array<i64: 4, 32>}, {pipeline_mode = #tpu.pipeline_mode<synchronous>, transform_indices = @transform_11, window_bounds = array<i64: 4, 1>}, {transform_indices = @transform_12, window_bounds = array<i64: 1, 4, 256>}, {transform_indices = @transform_13, window_bounds = array<i64: 1, 1, 256>}, {transform_indices = @transform_14, window_bounds = array<i64: 1, 1, 256>}]} {
    %c0 = arith.constant 0 : index
    %c0_0 = arith.constant 0 : index
    %c0_1 = arith.constant 0 : index
    %0 = vector.load %arg2[%c0, %c0_0, %c0_1] : memref<1x4x256xf32, #tpu.memory_space<vmem>>, vector<1x4x256xf32>
    %1 = vector.shape_cast %0 : vector<1x4x256xf32> to vector<4x256xf32>
    %c0_2 = arith.constant 0 : index
    %c0_3 = arith.constant 0 : index
    %2 = vector.load %arg3[%c0_2, %c0_3] : memref<32x4xf32, #tpu.memory_space<vmem>>, vector<32x4xf32>
    %cst = arith.constant dense<0.000000e+00> : vector<32x256xf32>
    %3 = tpu.matmul %2, %1, %cst {dimension_numbers = #tpu.dot_dimension_numbers<[1], [0], [0], [1], [0, 0, 1, 1], [], []>} : vector<32x4xf32>, vector<4x256xf32>, vector<32x256xf32> -> vector<32x256xf32>
    %c0_4 = arith.constant 0 : index
    %c0_5 = arith.constant 0 : index
    %4 = vector.load %arg4[%c0_4, %c0_5] : memref<32x1xf32, #tpu.memory_space<vmem>>, vector<32x1xf32>
    %5 = vector.broadcast %4 : vector<32x1xf32> to vector<32x256xf32>
    %6 = arith.addf %3, %5 : vector<32x256xf32>
    %cst_6 = arith.constant 2.000000e-01 : f32
    %7 = vector.broadcast %cst_6 : f32 to vector<32x256xf32>
    %8 = arith.mulf %7, %6 : vector<32x256xf32>
    %9 = arith.maximumf %6, %8 : vector<32x256xf32>
    %c0_7 = arith.constant 0 : index
    %c0_8 = arith.constant 0 : index
    %10 = vector.load %arg5[%c0_7, %c0_8] : memref<33x32xf32, #tpu.memory_space<vmem>>, vector<33x32xf32>
    %cst_9 = arith.constant dense<0.000000e+00> : vector<33x256xf32>
    %11 = tpu.matmul %10, %9, %cst_9 {dimension_numbers = #tpu.dot_dimension_numbers<[1], [0], [0], [1], [0, 0, 1, 1], [], []>} : vector<33x32xf32>, vector<32x256xf32>, vector<33x256xf32> -> vector<33x256xf32>
    %c0_10 = arith.constant 0 : index
    %c0_11 = arith.constant 0 : index
    %12 = vector.load %arg6[%c0_10, %c0_11] : memref<33x1xf32, #tpu.memory_space<vmem>>, vector<33x1xf32>
    %13 = vector.broadcast %12 : vector<33x1xf32> to vector<33x256xf32>
    %14 = arith.addf %11, %13 : vector<33x256xf32>
    %c0_12 = arith.constant 0 : index
    %c0_13 = arith.constant 0 : index
    %15 = vector.load %arg7[%c0_12, %c0_13] : memref<512x33xf32, #tpu.memory_space<vmem>>, vector<512x33xf32>
    %cst_14 = arith.constant dense<0.000000e+00> : vector<512x256xf32>
    %16 = tpu.matmul %15, %14, %cst_14 {dimension_numbers = #tpu.dot_dimension_numbers<[1], [0], [0], [1], [0, 0, 1, 1], [], []>} : vector<512x33xf32>, vector<33x256xf32>, vector<512x256xf32> -> vector<512x256xf32>
    %17 = tpu.iota {dimensions = array<i32: 0>} : vector<512x256xi32>
    %cst_15 = arith.constant dense<0x7F800000> : vector<256xf32>
    %18 = vector.multi_reduction <minimumf>, %16, %cst_15 [0] : vector<512x256xf32> to vector<256xf32>
    %19 = vector.shape_cast %18 : vector<256xf32> to vector<1x256xf32>
    %20 = vector.broadcast %19 : vector<1x256xf32> to vector<512x256xf32>
    %21 = arith.cmpf oeq, %16, %20 : vector<512x256xf32>
    %c512_i32 = arith.constant 512 : i32
    %22 = vector.broadcast %c512_i32 : i32 to vector<512x256xi32>
    %23 = arith.select %21, %17, %22 : vector<512x256xi1>, vector<512x256xi32>
    %cst_16 = arith.constant dense<2147483647> : vector<256xi32>
    %24 = vector.multi_reduction <minsi>, %23, %cst_16 [0] : vector<512x256xi32> to vector<256xi32>
    %25 = vector.shape_cast %24 : vector<256xi32> to vector<1x256xi32>
    %c0_17 = arith.constant 0 : index
    %c0_18 = arith.constant 0 : index
    %c0_19 = arith.constant 0 : index
    %26 = vector.load %arg15[%c0_17, %c0_18, %c0_19] : memref<1x1x256xi32, #tpu.memory_space<vmem>>, vector<1x1x256xi32>
    %27 = vector.shape_cast %26 : vector<1x1x256xi32> to vector<1x256xi32>
    %28 = vector.shape_cast %25 : vector<1x256xi32> to vector<1x1x256xi32>
    tpu.vector_store %arg15[%c0_17, %c0_18, %c0_19], %28 {strides = array<i32>} : memref<1x1x256xi32, #tpu.memory_space<vmem>>, vector<1x1x256xi32>,
    %29 = vector.broadcast %25 : vector<1x256xi32> to vector<512x256xi32>
    %30 = arith.cmpi eq, %17, %29 : vector<512x256xi32>
    %31 = arith.extui %30 : vector<512x256xi1> to vector<512x256xi32>
    %32 = arith.sitofp %31 : vector<512x256xi32> to vector<512x256xf32>
    %33 = arith.truncf %32 : vector<512x256xf32> to vector<512x256xbf16>
    %c0_20 = arith.constant 0 : index
    %c0_21 = arith.constant 0 : index
    %34 = vector.load %arg8[%c0_20, %c0_21] : memref<33x512xbf16, #tpu.memory_space<vmem>>, vector<33x512xbf16>
    %cst_22 = arith.constant dense<0.000000e+00> : vector<33x256xf32>
    %35 = tpu.matmul %34, %33, %cst_22 {dimension_numbers = #tpu.dot_dimension_numbers<[1], [0], [0], [1], [0, 0, 1, 1], [], []>} : vector<33x512xbf16>, vector<512x256xbf16>, vector<33x256xf32> -> vector<33x256xf32>
    %36 = arith.subf %35, %14 : vector<33x256xf32>
    %37 = arith.mulf %36, %36 : vector<33x256xf32>
    %cst_23 = arith.constant dense<0.000000e+00> : vector<256xf32>
    %38 = vector.multi_reduction <add>, %37, %cst_23 [0] : vector<33x256xf32> to vector<256xf32>
    %39 = vector.shape_cast %38 : vector<256xf32> to vector<1x256xf32>
    %c0_24 = arith.constant 0 : index
    %c0_25 = arith.constant 0 : index
    %c0_26 = arith.constant 0 : index
    %40 = vector.load %arg16[%c0_24, %c0_25, %c0_26] : memref<1x1x256xf32, #tpu.memory_space<vmem>>, vector<1x1x256xf32>
    %41 = vector.shape_cast %40 : vector<1x1x256xf32> to vector<1x256xf32>
    %42 = vector.shape_cast %39 : vector<1x256xf32> to vector<1x1x256xf32>
    tpu.vector_store %arg16[%c0_24, %c0_25, %c0_26], %42 {strides = array<i32>} : memref<1x1x256xf32, #tpu.memory_space<vmem>>, vector<1x1x256xf32>,
    %c0_27 = arith.constant 0 : index
    %c0_28 = arith.constant 0 : index
    %43 = vector.load %arg9[%c0_27, %c0_28] : memref<32x33xf32, #tpu.memory_space<vmem>>, vector<32x33xf32>
    %cst_29 = arith.constant dense<0.000000e+00> : vector<32x256xf32>
    %44 = tpu.matmul %43, %35, %cst_29 {dimension_numbers = #tpu.dot_dimension_numbers<[1], [0], [0], [1], [0, 0, 1, 1], [], []>} : vector<32x33xf32>, vector<33x256xf32>, vector<32x256xf32> -> vector<32x256xf32>
    %c0_i32 = arith.constant 0 : i32
    %45 = arith.index_cast %c0_i32 : i32 to index
    %c0_30 = arith.constant 0 : index
    %c0_31 = arith.constant 0 : index
    %46 = vector.load %arg10[%45, %c0_30, %c0_31] : memref<8x32x32xf32, #tpu.memory_space<vmem>>, vector<1x32x32xf32>
    %47 = vector.shape_cast %46 : vector<1x32x32xf32> to vector<32x32xf32>
    %cst_32 = arith.constant dense<0.000000e+00> : vector<32x256xf32>
    %48 = tpu.matmul %47, %44, %cst_32 {dimension_numbers = #tpu.dot_dimension_numbers<[1], [0], [0], [1], [0, 0, 1, 1], [], []>} : vector<32x32xf32>, vector<32x256xf32>, vector<32x256xf32> -> vector<32x256xf32>
    %49 = arith.index_cast %c0_i32 : i32 to index
    %c0_33 = arith.constant 0 : index
    %c0_34 = arith.constant 0 : index
    %50 = vector.load %arg11[%49, %c0_33, %c0_34] : memref<8x32x1xf32, #tpu.memory_space<vmem>>, vector<1x32x1xf32>
    %51 = vector.shape_cast %50 : vector<1x32x1xf32> to vector<32x1xf32>
    %52 = vector.broadcast %51 : vector<32x1xf32> to vector<32x256xf32>
    %53 = arith.addf %48, %52 : vector<32x256xf32>
    %cst_35 = arith.constant 2.000000e-01 : f32
    %54 = vector.broadcast %cst_35 : f32 to vector<32x256xf32>
    %55 = arith.mulf %54, %53 : vector<32x256xf32>
    %56 = arith.maximumf %53, %55 : vector<32x256xf32>
    %57 = arith.addf %44, %56 : vector<32x256xf32>
    %c1_i32 = arith.constant 1 : i32
    %58 = arith.index_cast %c1_i32 : i32 to index
    %c0_36 = arith.constant 0 : index
    %c0_37 = arith.constant 0 : index
    %59 = vector.load %arg10[%58, %c0_36, %c0_37] : memref<8x32x32xf32, #tpu.memory_space<vmem>>, vector<1x32x32xf32>
    %60 = vector.shape_cast %59 : vector<1x32x32xf32> to vector<32x32xf32>
    %cst_38 = arith.constant dense<0.000000e+00> : vector<32x256xf32>
    %61 = tpu.matmul %60, %57, %cst_38 {dimension_numbers = #tpu.dot_dimension_numbers<[1], [0], [0], [1], [0, 0, 1, 1], [], []>} : vector<32x32xf32>, vector<32x256xf32>, vector<32x256xf32> -> vector<32x256xf32>
    %62 = arith.index_cast %c1_i32 : i32 to index
    %c0_39 = arith.constant 0 : index
    %c0_40 = arith.constant 0 : index
    %63 = vector.load %arg11[%62, %c0_39, %c0_40] : memref<8x32x1xf32, #tpu.memory_space<vmem>>, vector<1x32x1xf32>
    %64 = vector.shape_cast %63 : vector<1x32x1xf32> to vector<32x1xf32>
    %65 = vector.broadcast %64 : vector<32x1xf32> to vector<32x256xf32>
    %66 = arith.addf %61, %65 : vector<32x256xf32>
    %cst_41 = arith.constant 2.000000e-01 : f32
    %67 = vector.broadcast %cst_41 : f32 to vector<32x256xf32>
    %68 = arith.mulf %67, %66 : vector<32x256xf32>
    %69 = arith.maximumf %66, %68 : vector<32x256xf32>
    %70 = arith.addf %57, %69 : vector<32x256xf32>
    %c2_i32 = arith.constant 2 : i32
    %71 = arith.index_cast %c2_i32 : i32 to index
    %c0_42 = arith.constant 0 : index
    %c0_43 = arith.constant 0 : index
    %72 = vector.load %arg10[%71, %c0_42, %c0_43] : memref<8x32x32xf32, #tpu.memory_space<vmem>>, vector<1x32x32xf32>
    %73 = vector.shape_cast %72 : vector<1x32x32xf32> to vector<32x32xf32>
    %cst_44 = arith.constant dense<0.000000e+00> : vector<32x256xf32>
    %74 = tpu.matmul %73, %70, %cst_44 {dimension_numbers = #tpu.dot_dimension_numbers<[1], [0], [0], [1], [0, 0, 1, 1], [], []>} : vector<32x32xf32>, vector<32x256xf32>, vector<32x256xf32> -> vector<32x256xf32>
    %75 = arith.index_cast %c2_i32 : i32 to index
    %c0_45 = arith.constant 0 : index
    %c0_46 = arith.constant 0 : index
    %76 = vector.load %arg11[%75, %c0_45, %c0_46] : memref<8x32x1xf32, #tpu.memory_space<vmem>>, vector<1x32x1xf32>
    %77 = vector.shape_cast %76 : vector<1x32x1xf32> to vector<32x1xf32>
    %78 = vector.broadcast %77 : vector<32x1xf32> to vector<32x256xf32>
    %79 = arith.addf %74, %78 : vector<32x256xf32>
    %cst_47 = arith.constant 2.000000e-01 : f32
    %80 = vector.broadcast %cst_47 : f32 to vector<32x256xf32>
    %81 = arith.mulf %80, %79 : vector<32x256xf32>
    %82 = arith.maximumf %79, %81 : vector<32x256xf32>
    %83 = arith.addf %70, %82 : vector<32x256xf32>
    %c3_i32 = arith.constant 3 : i32
    %84 = arith.index_cast %c3_i32 : i32 to index
    %c0_48 = arith.constant 0 : index
    %c0_49 = arith.constant 0 : index
    %85 = vector.load %arg10[%84, %c0_48, %c0_49] : memref<8x32x32xf32, #tpu.memory_space<vmem>>, vector<1x32x32xf32>
    %86 = vector.shape_cast %85 : vector<1x32x32xf32> to vector<32x32xf32>
    %cst_50 = arith.constant dense<0.000000e+00> : vector<32x256xf32>
    %87 = tpu.matmul %86, %83, %cst_50 {dimension_numbers = #tpu.dot_dimension_numbers<[1], [0], [0], [1], [0, 0, 1, 1], [], []>} : vector<32x32xf32>, vector<32x256xf32>, vector<32x256xf32> -> vector<32x256xf32>
    %88 = arith.index_cast %c3_i32 : i32 to index
    %c0_51 = arith.constant 0 : index
    %c0_52 = arith.constant 0 : index
    %89 = vector.load %arg11[%88, %c0_51, %c0_52] : memref<8x32x1xf32, #tpu.memory_space<vmem>>, vector<1x32x1xf32>
    %90 = vector.shape_cast %89 : vector<1x32x1xf32> to vector<32x1xf32>
    %91 = vector.broadcast %90 : vector<32x1xf32> to vector<32x256xf32>
    %92 = arith.addf %87, %91 : vector<32x256xf32>
    %cst_53 = arith.constant 2.000000e-01 : f32
    %93 = vector.broadcast %cst_53 : f32 to vector<32x256xf32>
    %94 = arith.mulf %93, %92 : vector<32x256xf32>
    %95 = arith.maximumf %92, %94 : vector<32x256xf32>
    %96 = arith.addf %83, %95 : vector<32x256xf32>
    %c4_i32 = arith.constant 4 : i32
    %97 = arith.index_cast %c4_i32 : i32 to index
    %c0_54 = arith.constant 0 : index
    %c0_55 = arith.constant 0 : index
    %98 = vector.load %arg10[%97, %c0_54, %c0_55] : memref<8x32x32xf32, #tpu.memory_space<vmem>>, vector<1x32x32xf32>
    %99 = vector.shape_cast %98 : vector<1x32x32xf32> to vector<32x32xf32>
    %cst_56 = arith.constant dense<0.000000e+00> : vector<32x256xf32>
    %100 = tpu.matmul %99, %96, %cst_56 {dimension_numbers = #tpu.dot_dimension_numbers<[1], [0], [0], [1], [0, 0, 1, 1], [], []>} : vector<32x32xf32>, vector<32x256xf32>, vector<32x256xf32> -> vector<32x256xf32>
    %101 = arith.index_cast %c4_i32 : i32 to index
    %c0_57 = arith.constant 0 : index
    %c0_58 = arith.constant 0 : index
    %102 = vector.load %arg11[%101, %c0_57, %c0_58] : memref<8x32x1xf32, #tpu.memory_space<vmem>>, vector<1x32x1xf32>
    %103 = vector.shape_cast %102 : vector<1x32x1xf32> to vector<32x1xf32>
    %104 = vector.broadcast %103 : vector<32x1xf32> to vector<32x256xf32>
    %105 = arith.addf %100, %104 : vector<32x256xf32>
    %cst_59 = arith.constant 2.000000e-01 : f32
    %106 = vector.broadcast %cst_59 : f32 to vector<32x256xf32>
    %107 = arith.mulf %106, %105 : vector<32x256xf32>
    %108 = arith.maximumf %105, %107 : vector<32x256xf32>
    %109 = arith.addf %96, %108 : vector<32x256xf32>
    %c5_i32 = arith.constant 5 : i32
    %110 = arith.index_cast %c5_i32 : i32 to index
    %c0_60 = arith.constant 0 : index
    %c0_61 = arith.constant 0 : index
    %111 = vector.load %arg10[%110, %c0_60, %c0_61] : memref<8x32x32xf32, #tpu.memory_space<vmem>>, vector<1x32x32xf32>
    %112 = vector.shape_cast %111 : vector<1x32x32xf32> to vector<32x32xf32>
    %cst_62 = arith.constant dense<0.000000e+00> : vector<32x256xf32>
    %113 = tpu.matmul %112, %109, %cst_62 {dimension_numbers = #tpu.dot_dimension_numbers<[1], [0], [0], [1], [0, 0, 1, 1], [], []>} : vector<32x32xf32>, vector<32x256xf32>, vector<32x256xf32> -> vector<32x256xf32>
    %114 = arith.index_cast %c5_i32 : i32 to index
    %c0_63 = arith.constant 0 : index
    %c0_64 = arith.constant 0 : index
    %115 = vector.load %arg11[%114, %c0_63, %c0_64] : memref<8x32x1xf32, #tpu.memory_space<vmem>>, vector<1x32x1xf32>
    %116 = vector.shape_cast %115 : vector<1x32x1xf32> to vector<32x1xf32>
    %117 = vector.broadcast %116 : vector<32x1xf32> to vector<32x256xf32>
    %118 = arith.addf %113, %117 : vector<32x256xf32>
    %cst_65 = arith.constant 2.000000e-01 : f32
    %119 = vector.broadcast %cst_65 : f32 to vector<32x256xf32>
    %120 = arith.mulf %119, %118 : vector<32x256xf32>
    %121 = arith.maximumf %118, %120 : vector<32x256xf32>
    %122 = arith.addf %109, %121 : vector<32x256xf32>
    %c6_i32 = arith.constant 6 : i32
    %123 = arith.index_cast %c6_i32 : i32 to index
    %c0_66 = arith.constant 0 : index
    %c0_67 = arith.constant 0 : index
    %124 = vector.load %arg10[%123, %c0_66, %c0_67] : memref<8x32x32xf32, #tpu.memory_space<vmem>>, vector<1x32x32xf32>
    %125 = vector.shape_cast %124 : vector<1x32x32xf32> to vector<32x32xf32>
    %cst_68 = arith.constant dense<0.000000e+00> : vector<32x256xf32>
    %126 = tpu.matmul %125, %122, %cst_68 {dimension_numbers = #tpu.dot_dimension_numbers<[1], [0], [0], [1], [0, 0, 1, 1], [], []>} : vector<32x32xf32>, vector<32x256xf32>, vector<32x256xf32> -> vector<32x256xf32>
    %127 = arith.index_cast %c6_i32 : i32 to index
    %c0_69 = arith.constant 0 : index
    %c0_70 = arith.constant 0 : index
    %128 = vector.load %arg11[%127, %c0_69, %c0_70] : memref<8x32x1xf32, #tpu.memory_space<vmem>>, vector<1x32x1xf32>
    %129 = vector.shape_cast %128 : vector<1x32x1xf32> to vector<32x1xf32>
    %130 = vector.broadcast %129 : vector<32x1xf32> to vector<32x256xf32>
    %131 = arith.addf %126, %130 : vector<32x256xf32>
    %cst_71 = arith.constant 2.000000e-01 : f32
    %132 = vector.broadcast %cst_71 : f32 to vector<32x256xf32>
    %133 = arith.mulf %132, %131 : vector<32x256xf32>
    %134 = arith.maximumf %131, %133 : vector<32x256xf32>
    %135 = arith.addf %122, %134 : vector<32x256xf32>
    %c7_i32 = arith.constant 7 : i32
    %136 = arith.index_cast %c7_i32 : i32 to index
    %c0_72 = arith.constant 0 : index
    %c0_73 = arith.constant 0 : index
    %137 = vector.load %arg10[%136, %c0_72, %c0_73] : memref<8x32x32xf32, #tpu.memory_space<vmem>>, vector<1x32x32xf32>
    %138 = vector.shape_cast %137 : vector<1x32x32xf32> to vector<32x32xf32>
    %cst_74 = arith.constant dense<0.000000e+00> : vector<32x256xf32>
    %139 = tpu.matmul %138, %135, %cst_74 {dimension_numbers = #tpu.dot_dimension_numbers<[1], [0], [0], [1], [0, 0, 1, 1], [], []>} : vector<32x32xf32>, vector<32x256xf32>, vector<32x256xf32> -> vector<32x256xf32>
    %140 = arith.index_cast %c7_i32 : i32 to index
    %c0_75 = arith.constant 0 : index
    %c0_76 = arith.constant 0 : index
    %141 = vector.load %arg11[%140, %c0_75, %c0_76] : memref<8x32x1xf32, #tpu.memory_space<vmem>>, vector<1x32x1xf32>
    %142 = vector.shape_cast %141 : vector<1x32x1xf32> to vector<32x1xf32>
    %143 = vector.broadcast %142 : vector<32x1xf32> to vector<32x256xf32>
    %144 = arith.addf %139, %143 : vector<32x256xf32>
    %cst_77 = arith.constant 2.000000e-01 : f32
    %145 = vector.broadcast %cst_77 : f32 to vector<32x256xf32>
    %146 = arith.mulf %145, %144 : vector<32x256xf32>
    %147 = arith.maximumf %144, %146 : vector<32x256xf32>
    %148 = arith.addf %135, %147 : vector<32x256xf32>
    %c8_i32 = arith.constant 8 : i32
    %c0_78 = arith.constant 0 : index
    %c0_79 = arith.constant 0 : index
    %149 = vector.load %arg12[%c0_78, %c0_79] : memref<4x32xf32, #tpu.memory_space<vmem>>, vector<4x32xf32>
    %cst_80 = arith.constant dense<0.000000e+00> : vector<4x256xf32>
    %150 = tpu.matmul %149, %148, %cst_80 {dimension_numbers = #tpu.dot_dimension_numbers<[1], [0], [0], [1], [0, 0, 1, 1], [], []>} : vector<4x32xf32>, vector<32x256xf32>, vector<4x256xf32> -> vector<4x256xf32>
    %c0_81 = arith.constant 0 : index
    %c0_82 = arith.constant 0 : index
    %151 = vector.load %arg13[%c0_81, %c0_82] : memref<4x1xf32, #tpu.memory_space<vmem>>, vector<4x1xf32>
    %152 = vector.broadcast %151 : vector<4x1xf32> to vector<4x256xf32>
    %153 = arith.addf %150, %152 : vector<4x256xf32>
    %c0_83 = arith.constant 0 : index
    %c0_84 = arith.constant 0 : index
    %c0_85 = arith.constant 0 : index
    %154 = vector.load %arg14[%c0_83, %c0_84, %c0_85] : memref<1x4x256xf32, #tpu.memory_space<vmem>>, vector<1x4x256xf32>
    %155 = vector.shape_cast %154 : vector<1x4x256xf32> to vector<4x256xf32>
    %156 = vector.shape_cast %153 : vector<4x256xf32> to vector<1x4x256xf32>
    tpu.vector_store %arg14[%c0_83, %c0_84, %c0_85], %156 {strides = array<i32>} : memref<1x4x256xf32, #tpu.memory_space<vmem>>, vector<1x4x256xf32>,
    return
  }
  func.func @transform_0(%arg0: i32, %arg1: i32) -> (i32, i32, i32) {
    %c0_i32 = arith.constant 0 : i32
    %c0_i32_0 = arith.constant 0 : i32
    return %arg0, %c0_i32, %arg1 : i32, i32, i32
  }
  func.func @transform_1(%arg0: i32, %arg1: i32) -> (i32, i32) {
    %c0_i32 = arith.constant 0 : i32
    %c0_i32_0 = arith.constant 0 : i32
    %c0_i32_1 = arith.constant 0 : i32
    return %c0_i32, %c0_i32_0 : i32, i32
  }
  func.func @transform_2(%arg0: i32, %arg1: i32) -> (i32, i32) {
    %c0_i32 = arith.constant 0 : i32
    %c0_i32_0 = arith.constant 0 : i32
    %c0_i32_1 = arith.constant 0 : i32
    return %c0_i32, %c0_i32_0 : i32, i32
  }
  func.func @transform_3(%arg0: i32, %arg1: i32) -> (i32, i32) {
    %c0_i32 = arith.constant 0 : i32
    %c0_i32_0 = arith.constant 0 : i32
    %c0_i32_1 = arith.constant 0 : i32
    return %c0_i32, %c0_i32_0 : i32, i32
  }
  func.func @transform_4(%arg0: i32, %arg1: i32) -> (i32, i32) {
    %c0_i32 = arith.constant 0 : i32
    %c0_i32_0 = arith.constant 0 : i32
    %c0_i32_1 = arith.constant 0 : i32
    return %c0_i32, %c0_i32_0 : i32, i32
  }
  func.func @transform_5(%arg0: i32, %arg1: i32) -> (i32, i32) {
    %c0_i32 = arith.constant 0 : i32
    %c0_i32_0 = arith.constant 0 : i32
    %c0_i32_1 = arith.constant 0 : i32
    return %c0_i32, %c0_i32_0 : i32, i32
  }
  func.func @transform_6(%arg0: i32, %arg1: i32) -> (i32, i32) {
    %c0_i32 = arith.constant 0 : i32
    %c0_i32_0 = arith.constant 0 : i32
    %c0_i32_1 = arith.constant 0 : i32
    return %c0_i32, %c0_i32_0 : i32, i32
  }
  func.func @transform_7(%arg0: i32, %arg1: i32) -> (i32, i32) {
    %c0_i32 = arith.constant 0 : i32
    %c0_i32_0 = arith.constant 0 : i32
    %c0_i32_1 = arith.constant 0 : i32
    return %c0_i32, %c0_i32_0 : i32, i32
  }
  func.func @transform_8(%arg0: i32, %arg1: i32) -> (i32, i32, i32) {
    %c0_i32 = arith.constant 0 : i32
    %c0_i32_0 = arith.constant 0 : i32
    %c0_i32_1 = arith.constant 0 : i32
    %c0_i32_2 = arith.constant 0 : i32
    return %c0_i32, %c0_i32_0, %c0_i32_1 : i32, i32, i32
  }
  func.func @transform_9(%arg0: i32, %arg1: i32) -> (i32, i32, i32) {
    %c0_i32 = arith.constant 0 : i32
    %c0_i32_0 = arith.constant 0 : i32
    %c0_i32_1 = arith.constant 0 : i32
    %c0_i32_2 = arith.constant 0 : i32
    return %c0_i32, %c0_i32_0, %c0_i32_1 : i32, i32, i32
  }
  func.func @transform_10(%arg0: i32, %arg1: i32) -> (i32, i32) {
    %c0_i32 = arith.constant 0 : i32
    %c0_i32_0 = arith.constant 0 : i32
    %c0_i32_1 = arith.constant 0 : i32
    return %c0_i32, %c0_i32_0 : i32, i32
  }
  func.func @transform_11(%arg0: i32, %arg1: i32) -> (i32, i32) {
    %c0_i32 = arith.constant 0 : i32
    %c0_i32_0 = arith.constant 0 : i32
    %c0_i32_1 = arith.constant 0 : i32
    return %c0_i32, %c0_i32_0 : i32, i32
  }
  func.func @transform_12(%arg0: i32, %arg1: i32) -> (i32, i32, i32) {
    %c0_i32 = arith.constant 0 : i32
    %c0_i32_0 = arith.constant 0 : i32
    return %arg0, %c0_i32, %arg1 : i32, i32, i32
  }
  func.func @transform_13(%arg0: i32, %arg1: i32) -> (i32, i32, i32) {
    %c0_i32 = arith.constant 0 : i32
    %c0_i32_0 = arith.constant 0 : i32
    return %arg0, %c0_i32, %arg1 : i32, i32, i32
  }
  func.func @transform_14(%arg0: i32, %arg1: i32) -> (i32, i32, i32) {
    %c0_i32 = arith.constant 0 : i32
    %c0_i32_0 = arith.constant 0 : i32
    return %arg0, %c0_i32, %arg1 : i32, i32, i32
  }
}

</mosaic_0001>

<llo_original>
// kernel: autoencoder_vq_forward.1
$region0: #{autoencoder_vq_forward.1}
  #allocation0 [shape = 'u32[]', space=smem, size = 0x4, offset = 0x4, fixed_abs, tag = 'smem constant byte address 0x4 - core index']
  #allocation1 [shape = 'u32[144,128]{1,0:T(1,128)}', space=vmem, size = 0x12000, scoped, tag = 'internal scratch']
  %s0 = inlined_call_operand.vmem [shape: f32[2,4,256], index: 0, kind: input, shape index: {}]
  %s1 = inlined_call_operand.vmem [shape: f32[32,4], index: 1, kind: input, shape index: {}]
  %s2 = inlined_call_operand.vmem [shape: f32[32,1], index: 2, kind: input, shape index: {}]
  %s3 = inlined_call_operand.vmem [shape: f32[33,32], index: 3, kind: input, shape index: {}]
  %s4 = inlined_call_operand.vmem [shape: f32[33,1], index: 4, kind: input, shape index: {}]
  %s5 = inlined_call_operand.vmem [shape: f32[512,33], index: 5, kind: input, shape index: {}]
  %s6 = inlined_call_operand.vmem [shape: bf16[33,512], index: 6, kind: input, shape index: {}]
  %s7 = inlined_call_operand.vmem [shape: f32[32,33], index: 7, kind: input, shape index: {}]
  %s8 = inlined_call_operand.vmem [shape: f32[8,32,32], index: 8, kind: input, shape index: {}]
  %s9 = inlined_call_operand.vmem [shape: f32[8,32,1], index: 9, kind: input, shape index: {}]
  %s10 = inlined_call_operand.vmem [shape: f32[4,32], index: 10, kind: input, shape index: {}]
  %s11 = inlined_call_operand.vmem [shape: f32[4,1], index: 11, kind: input, shape index: {}]
  %s12 = inlined_call_operand.vmem [shape: f32[2,4,256], index: 12, kind: output, shape index: {0}]
  %s13 = inlined_call_operand.vmem [shape: s32[2,1,256], index: 13, kind: output, shape index: {1}]
  %s14 = inlined_call_operand.vmem [shape: f32[2,1,256], index: 14, kind: output, shape index: {2}]
  %15 = xla_tuple %s12, %s13, %s14
  %s16 = sld [smem:[#allocation0]]
  $region97: #{autoencoder_vq_forward.1} parent=0
    _
  %s18 = ssub.s32 1, %s16
  %s19 = scalar_select 0, %s18, %s16
  loop: start=0, step=1, limit=4
  $region2: #{autoencoder_vq_forward.1} parent=0 // loop_pre_header
    _
  $region3: #{autoencoder_vq_forward.1} parent=0 // loop_header
    %s21 = sphi 0, %s25
    %p22 = scmp.ge.s32.totalorder %s21, 4
    %s28 = sphi 0, %s40
    %s29 = sphi 0, %s36
    %s30 = sphi 0, %s28
    %s31 = sphi 0, %s29
    %s32 = sphi 0, %s30
    %s33 = sphi 0, %s31
    %s45 = sphi 0, %s47
    %s48 = sphi 0, %s45
    %s49 = sphi 0, %s48
    %s65 = sphi 0, %s49
    %s69 = sphi 0, %s69
    %s71 = sphi 0, %s69
    %s72 = sphi 0, %s71
    %s86 = sphi 0, %s72
    %s90 = sphi 0, %s90
    %s92 = sphi 0, %s90
    %s93 = sphi 0, %s92
    %s107 = sphi 0, %s93
    %s111 = sphi 0, %s111
    %s113 = sphi 0, %s111
    %s114 = sphi 0, %s113
    %s128 = sphi 0, %s114
    %s132 = sphi 0, %s132
    %s134 = sphi 0, %s132
    %s135 = sphi 0, %s134
    %s149 = sphi 0, %s135
    %s153 = sphi 0, %s153
    %s155 = sphi 0, %s153
    %s156 = sphi 0, %s155
    %s170 = sphi 0, %s156
    %s174 = sphi 0, %s174
    %s176 = sphi 0, %s174
    %s177 = sphi 0, %s176
    %s191 = sphi 0, %s177
    %s195 = sphi 0, %s195
    %s197 = sphi 0, %s195
    %s198 = sphi 0, %s197
    %s212 = sphi 0, %s198
    %s216 = sphi 0, %s216
    %s218 = sphi 0, %s216
    %s219 = sphi 0, %s218
    %s233 = sphi 0, %s219
    %s237 = sphi 0, %s237
    %s239 = sphi 0, %s237
    %s240 = sphi 0, %s239
    %s254 = sphi 0, %s240
    %s258 = sphi 0, %s258
    %s260 = sphi 0, %s258
    %s261 = sphi 0, %s260
    %s275 = sphi 0, %s261
    %s279 = sphi 0, %s279
    %s281 = sphi 0, %s279
    %s282 = sphi 0, %s281
    %s296 = sphi 0, %s282
    %s304 = sphi 0, %s306
    %s307 = sphi 0, %s304
    %s308 = sphi 0, %s307
    %s324 = sphi 0, %s308
    %s332 = sphi 0, %s334
    %s335 = sphi 0, %s332
    %s336 = sphi 0, %s335
    %s352 = sphi 0, %s336
    %s360 = sphi 0, %s362
    %s363 = sphi 0, %s360
    %s364 = sphi 0, %s363
    %s380 = sphi 0, %s364
  $region4: #{autoencoder_vq_forward.1} parent=0 // loop_header_branch
    %24 = sbr.rel (%p22) target = $region8
  $region5: #{autoencoder_vq_forward.1} parent=0 // loop_body
    %s26 = ssub.s32 %s21, 1
    %s27 = ssub.s32 %s21, 2
    %s34 = sadd.s32 1, %s29
    %p35 = scmp.ge.s32.totalorder %s34, 1
    %s36 = scalar_select %p35, 0, %s34
    %s37 = sadd.s32 1, %s28
    %s38 = scalar_select %p35, %s37, %s28
    %p39 = scmp.ge.s32.totalorder %s38, 2
    %s40 = scalar_select %p39, 0, %s38
    %s41 = ssub.s32 %s28, %s40
    %s42 = ssub.s32 %s29, %s36
    %s43 = sor.u32 %s41, %s42
    %p44 = scmp.eq.s32.totalorder %s43, 0
    %s46 = sadd.s32 %s45, 1
    %s47 = scalar_select %p44, %s45, %s46
    %p50 = pneg %p44
    %p51 = scmp.eq.s32.totalorder %s21, 1
    %p52 = por %p50, %p51
    %p53 = scmp.ne.s32.totalorder %s45, %s48
    %p54 = scmp.eq.s32.totalorder %s21, 0
    %p55 = por %p53, %p54
    %p56 = scmp.ne.s32.totalorder %s45, %s48
    %p57 = scmp.eq.s32.totalorder %s26, 1
    %p58 = por %p56, %p57
    %p59 = scmp.ne.s32.totalorder %s48, %s49
    %p60 = scmp.eq.s32.totalorder %s26, 0
    %p61 = por %p59, %p60
    %p62 = scmp.ne.s32.totalorder %s48, %s49
    %p63 = scmp.eq.s32.totalorder %s27, 1
    %p64 = por %p62, %p63
    %p66 = scmp.ne.s32.totalorder %s49, %s65
    %p67 = scmp.eq.s32.totalorder %s27, 0
    %p68 = por %p66, %p67
    %s70 = sadd.s32 %s69, 1
    %p73 = scmp.eq.s32.totalorder %s21, 1
    %p74 = scmp.ne.s32.totalorder %s69, %s71
    %p75 = scmp.eq.s32.totalorder %s21, 0
    %p76 = por %p74, %p75
    %p77 = scmp.ne.s32.totalorder %s69, %s71
    %p78 = scmp.eq.s32.totalorder %s26, 1
    %p79 = por %p77, %p78
    %p80 = scmp.ne.s32.totalorder %s71, %s72
    %p81 = scmp.eq.s32.totalorder %s26, 0
    %p82 = por %p80, %p81
    %p83 = scmp.ne.s32.totalorder %s71, %s72
    %p84 = scmp.eq.s32.totalorder %s27, 1
    %p85 = por %p83, %p84
    %p87 = scmp.ne.s32.totalorder %s72, %s86
    %p88 = scmp.eq.s32.totalorder %s27, 0
    %p89 = por %p87, %p88
    %s91 = sadd.s32 %s90, 1
    %p94 = scmp.eq.s32.totalorder %s21, 1
    %p95 = scmp.ne.s32.totalorder %s90, %s92
    %p96 = scmp.eq.s32.totalorder %s21, 0
    %p97 = por %p95, %p96
    %p98 = scmp.ne.s32.totalorder %s90, %s92
    %p99 = scmp.eq.s32.totalorder %s26, 1
    %p100 = por %p98, %p99
    %p101 = scmp.ne.s32.totalorder %s92, %s93
    %p102 = scmp.eq.s32.totalorder %s26, 0
    %p103 = por %p101, %p102
    %p104 = scmp.ne.s32.totalorder %s92, %s93
    %p105 = scmp.eq.s32.totalorder %s27, 1
    %p106 = por %p104, %p105
    %p108 = scmp.ne.s32.totalorder %s93, %s107
    %p109 = scmp.eq.s32.totalorder %s27, 0
    %p110 = por %p108, %p109
    %s112 = sadd.s32 %s111, 1
    %p115 = scmp.eq.s32.totalorder %s21, 1
    %p116 = scmp.ne.s32.totalorder %s111, %s113
    %p117 = scmp.eq.s32.totalorder %s21, 0
    %p118 = por %p116, %p117
    %p119 = scmp.ne.s32.totalorder %s111, %s113
    %p120 = scmp.eq.s32.totalorder %s26, 1
    %p121 = por %p119, %p120
    %p122 = scmp.ne.s32.totalorder %s113, %s114
    %p123 = scmp.eq.s32.totalorder %s26, 0
    %p124 = por %p122, %p123
    %p125 = scmp.ne.s32.totalorder %s113, %s114
    %p126 = scmp.eq.s32.totalorder %s27, 1
    %p127 = por %p125, %p126
    %p129 = scmp.ne.s32.totalorder %s114, %s128
    %p130 = scmp.eq.s32.totalorder %s27, 0
    %p131 = por %p129, %p130
    %s133 = sadd.s32 %s132, 1
    %p136 = scmp.eq.s32.totalorder %s21, 1
    %p137 = scmp.ne.s32.totalorder %s132, %s134
    %p138 = scmp.eq.s32.totalorder %s21, 0
    %p139 = por %p137, %p138
    %p140 = scmp.ne.s32.totalorder %s132, %s134
    %p141 = scmp.eq.s32.totalorder %s26, 1
    %p142 = por %p140, %p141
    %p143 = scmp.ne.s32.totalorder %s134, %s135
    %p144 = scmp.eq.s32.totalorder %s26, 0
    %p145 = por %p143, %p144
    %p146 = scmp.ne.s32.totalorder %s134, %s135
    %p147 = scmp.eq.s32.totalorder %s27, 1
    %p148 = por %p146, %p147
    %p150 = scmp.ne.s32.totalorder %s135, %s149
    %p151 = scmp.eq.s32.totalorder %s27, 0
    %p152 = por %p150, %p151
    %s154 = sadd.s32 %s153, 1
    %p157 = scmp.eq.s32.totalorder %s21, 1
    %p158 = scmp.ne.s32.totalorder %s153, %s155
    %p159 = scmp.eq.s32.totalorder %s21, 0
    %p160 = por %p158, %p159
    %p161 = scmp.ne.s32.totalorder %s153, %s155
    %p162 = scmp.eq.s32.totalorder %s26, 1
    %p163 = por %p161, %p162
    %p164 = scmp.ne.s32.totalorder %s155, %s156
    %p165 = scmp.eq.s32.totalorder %s26, 0
    %p166 = por %p164, %p165
    %p167 = scmp.ne.s32.totalorder %s155, %s156
    %p168 = scmp.eq.s32.totalorder %s27, 1
    %p169 = por %p167, %p168
    %p171 = scmp.ne.s32.totalorder %s156, %s170
    %p172 = scmp.eq.s32.totalorder %s27, 0
    %p173 = por %p171, %p172
    %s175 = sadd.s32 %s174, 1
    %p178 = scmp.eq.s32.totalorder %s21, 1
    %p179 = scmp.ne.s32.totalorder %s174, %s176
    %p180 = scmp.eq.s32.totalorder %s21, 0
    %p181 = por %p179, %p180
    %p182 = scmp.ne.s32.totalorder %s174, %s176
    %p183 = scmp.eq.s32.totalorder %s26, 1
    %p184 = por %p182, %p183
    %p185 = scmp.ne.s32.totalorder %s176, %s177
    %p186 = scmp.eq.s32.totalorder %s26, 0
    %p187 = por %p185, %p186
    %p188 = scmp.ne.s32.totalorder %s176, %s177
    %p189 = scmp.eq.s32.totalorder %s27, 1
    %p190 = por %p188, %p189
    %p192 = scmp.ne.s32.totalorder %s177, %s191
    %p193 = scmp.eq.s32.totalorder %s27, 0
    %p194 = por %p192, %p193
    %s196 = sadd.s32 %s195, 1
    %p199 = scmp.eq.s32.totalorder %s21, 1
    %p200 = scmp.ne.s32.totalorder %s195, %s197
    %p201 = scmp.eq.s32.totalorder %s21, 0
    %p202 = por %p200, %p201
    %p203 = scmp.ne.s32.totalorder %s195, %s197
    %p204 = scmp.eq.s32.totalorder %s26, 1
    %p205 = por %p203, %p204
    %p206 = scmp.ne.s32.totalorder %s197, %s198
    %p207 = scmp.eq.s32.totalorder %s26, 0
    %p208 = por %p206, %p207
    %p209 = scmp.ne.s32.totalorder %s197, %s198
    %p210 = scmp.eq.s32.totalorder %s27, 1
    %p211 = por %p209, %p210
    %p213 = scmp.ne.s32.totalorder %s198, %s212
    %p214 = scmp.eq.s32.totalorder %s27, 0
    %p215 = por %p213, %p214
    %s217 = sadd.s32 %s216, 1
    %p220 = scmp.eq.s32.totalorder %s21, 1
    %p221 = scmp.ne.s32.totalorder %s216, %s218
    %p222 = scmp.eq.s32.totalorder %s21, 0
    %p223 = por %p221, %p222
    %p224 = scmp.ne.s32.totalorder %s216, %s218
    %p225 = scmp.eq.s32.totalorder %s26, 1
    %p226 = por %p224, %p225
    %p227 = scmp.ne.s32.totalorder %s218, %s219
    %p228 = scmp.eq.s32.totalorder %s26, 0
    %p229 = por %p227, %p228
    %p230 = scmp.ne.s32.totalorder %s218, %s219
    %p231 = scmp.eq.s32.totalorder %s27, 1
    %p232 = por %p230, %p231
    %p234 = scmp.ne.s32.totalorder %s219, %s233
    %p235 = scmp.eq.s32.totalorder %s27, 0
    %p236 = por %p234, %p235
    %s238 = sadd.s32 %s237, 1
    %p241 = scmp.eq.s32.totalorder %s21, 1
    %p242 = scmp.ne.s32.totalorder %s237, %s239
    %p243 = scmp.eq.s32.totalorder %s21, 0
    %p244 = por %p242, %p243
    %p245 = scmp.ne.s32.totalorder %s237, %s239
    %p246 = scmp.eq.s32.totalorder %s26, 1
    %p247 = por %p245, %p246
    %p248 = scmp.ne.s32.totalorder %s239, %s240
    %p249 = scmp.eq.s32.totalorder %s26, 0
    %p250 = por %p248, %p249
    %p251 = scmp.ne.s32.totalorder %s239, %s240
    %p252 = scmp.eq.s32.totalorder %s27, 1
    %p253 = por %p251, %p252
    %p255 = scmp.ne.s32.totalorder %s240, %s254
    %p256 = scmp.eq.s32.totalorder %s27, 0
    %p257 = por %p255, %p256
    %s259 = sadd.s32 %s258, 1
    %p262 = scmp.eq.s32.totalorder %s21, 1
    %p263 = scmp.ne.s32.totalorder %s258, %s260
    %p264 = scmp.eq.s32.totalorder %s21, 0
    %p265 = por %p263, %p264
    %p266 = scmp.ne.s32.totalorder %s258, %s260
    %p267 = scmp.eq.s32.totalorder %s26, 1
    %p268 = por %p266, %p267
    %p269 = scmp.ne.s32.totalorder %s260, %s261
    %p270 = scmp.eq.s32.totalorder %s26, 0
    %p271 = por %p269, %p270
    %p272 = scmp.ne.s32.totalorder %s260, %s261
    %p273 = scmp.eq.s32.totalorder %s27, 1
    %p274 = por %p272, %p273
    %p276 = scmp.ne.s32.totalorder %s261, %s275
    %p277 = scmp.eq.s32.totalorder %s27, 0
    %p278 = por %p276, %p277
    %s280 = sadd.s32 %s279, 1
    %p283 = scmp.eq.s32.totalorder %s21, 1
    %p284 = scmp.ne.s32.totalorder %s279, %s281
    %p285 = scmp.eq.s32.totalorder %s21, 0
    %p286 = por %p284, %p285
    %p287 = scmp.ne.s32.totalorder %s279, %s281
    %p288 = scmp.eq.s32.totalorder %s26, 1
    %p289 = por %p287, %p288
    %p290 = scmp.ne.s32.totalorder %s281, %s282
    %p291 = scmp.eq.s32.totalorder %s26, 0
    %p292 = por %p290, %p291
    %p293 = scmp.ne.s32.totalorder %s281, %s282
    %p294 = scmp.eq.s32.totalorder %s27, 1
    %p295 = por %p293, %p294
    %p297 = scmp.ne.s32.totalorder %s282, %s296
    %p298 = scmp.eq.s32.totalorder %s27, 0
    %p299 = por %p297, %p298
    %s300 = ssub.s32 %s28, %s40
    %s301 = ssub.s32 %s29, %s36
    %s302 = sor.u32 %s300, %s301
    %p303 = scmp.eq.s32.totalorder %s302, 0
    %s305 = sadd.s32 %s304, 1
    %s306 = scalar_select %p303, %s304, %s305
    %p309 = pneg %p303
    %p310 = scmp.eq.s32.totalorder %s21, 1
    %p311 = por %p309, %p310
    %p312 = scmp.ne.s32.totalorder %s304, %s307
    %p313 = scmp.eq.s32.totalorder %s21, 0
    %p314 = por %p312, %p313
    %p315 = scmp.ne.s32.totalorder %s304, %s307
    %p316 = scmp.eq.s32.totalorder %s26, 1
    %p317 = por %p315, %p316
    %p318 = scmp.ne.s32.totalorder %s307, %s308
    %p319 = scmp.eq.s32.totalorder %s26, 0
    %p320 = por %p318, %p319
    %p321 = scmp.ne.s32.totalorder %s307, %s308
    %p322 = scmp.eq.s32.totalorder %s27, 1
    %p323 = por %p321, %p322
    %p325 = scmp.ne.s32.totalorder %s308, %s324
    %p326 = scmp.eq.s32.totalorder %s27, 0
    %p327 = por %p325, %p326
    %s328 = ssub.s32 %s28, %s40
    %s329 = ssub.s32 %s29, %s36
    %s330 = sor.u32 %s328, %s329
    %p331 = scmp.eq.s32.totalorder %s330, 0
    %s333 = sadd.s32 %s332, 1
    %s334 = scalar_select %p331, %s332, %s333
    %p337 = pneg %p331
    %p338 = scmp.eq.s32.totalorder %s21, 1
    %p339 = por %p337, %p338
    %p340 = scmp.ne.s32.totalorder %s332, %s335
    %p341 = scmp.eq.s32.totalorder %s21, 0
    %p342 = por %p340, %p341
    %p343 = scmp.ne.s32.totalorder %s332, %s335
    %p344 = scmp.eq.s32.totalorder %s26, 1
    %p345 = por %p343, %p344
    %p346 = scmp.ne.s32.totalorder %s335, %s336
    %p347 = scmp.eq.s32.totalorder %s26, 0
    %p348 = por %p346, %p347
    %p349 = scmp.ne.s32.totalorder %s335, %s336
    %p350 = scmp.eq.s32.totalorder %s27, 1
    %p351 = por %p349, %p350
    %p353 = scmp.ne.s32.totalorder %s336, %s352
    %p354 = scmp.eq.s32.totalorder %s27, 0
    %p355 = por %p353, %p354
    %s356 = ssub.s32 %s28, %s40
    %s357 = ssub.s32 %s29, %s36
    %s358 = sor.u32 %s356, %s357
    %p359 = scmp.eq.s32.totalorder %s358, 0
    %s361 = sadd.s32 %s360, 1
    %s362 = scalar_select %p359, %s360, %s361
    %p365 = pneg %p359
    %p366 = scmp.eq.s32.totalorder %s21, 1
    %p367 = por %p365, %p366
    %p368 = scmp.ne.s32.totalorder %s360, %s363
    %p369 = scmp.eq.s32.totalorder %s21, 0
    %p370 = por %p368, %p369
    %p371 = scmp.ne.s32.totalorder %s360, %s363
    %p372 = scmp.eq.s32.totalorder %s26, 1
    %p373 = por %p371, %p372
    %p374 = scmp.ne.s32.totalorder %s363, %s364
    %p375 = scmp.eq.s32.totalorder %s26, 0
    %p376 = por %p374, %p375
    %p377 = scmp.ne.s32.totalorder %s363, %s364
    %p378 = scmp.eq.s32.totalorder %s27, 1
    %p379 = por %p377, %p378
    %p381 = scmp.ne.s32.totalorder %s364, %s380
    %p382 = scmp.eq.s32.totalorder %s27, 0
    %p383 = por %p381, %p382
    %p384 = scmp.le.s32.totalorder 1, %s21
    %p385 = scmp.lt.s32.totalorder %s21, 3
    %p386 = pnand %p384, %p385
    %p387 = pneg %p386
    // Predicated region
    $region9: #{autoencoder_vq_forward.1} parent=5 // pred_check
      _
    $region10: #{autoencoder_vq_forward.1} parent=5 // pred_check_branch
      %389 = sbr.rel (%p386) target = $region12
    $region11: #{autoencoder_vq_forward.1} parent=5 // pred_region
      %s390 = ssub.s32 %s21, 1
      // Predicated region
      $region13: #{autoencoder_vq_forward.1} parent=11 // pred_check
        %p391 = pneg %p82
      $region14: #{autoencoder_vq_forward.1} parent=11 // pred_check_branch
        %393 = sbr.rel (%p391) target = $region16
      $region15: #{autoencoder_vq_forward.1} parent=11 // pred_region
        _
      $region16: #{autoencoder_vq_forward.1} parent=11 // pred_fallthru
        _
      // Predicated region
      $region17: #{autoencoder_vq_forward.1} parent=11 // pred_check
        %p394 = pneg %p103
      $region18: #{autoencoder_vq_forward.1} parent=11 // pred_check_branch
        %396 = sbr.rel (%p394) target = $region20
      $region19: #{autoencoder_vq_forward.1} parent=11 // pred_region
        _
      $region20: #{autoencoder_vq_forward.1} parent=11 // pred_fallthru
        _
      // Predicated region
      $region21: #{autoencoder_vq_forward.1} parent=11 // pred_check
        %p397 = pneg %p124
      $region22: #{autoencoder_vq_forward.1} parent=11 // pred_check_branch
        %399 = sbr.rel (%p397) target = $region24
      $region23: #{autoencoder_vq_forward.1} parent=11 // pred_region
        _
      $region24: #{autoencoder_vq_forward.1} parent=11 // pred_fallthru
        _
      // Predicated region
      $region25: #{autoencoder_vq_forward.1} parent=11 // pred_check
        %p400 = pneg %p145
      $region26: #{autoencoder_vq_forward.1} parent=11 // pred_check_branch
        %402 = sbr.rel (%p400) target = $region28
      $region27: #{autoencoder_vq_forward.1} parent=11 // pred_region
        _
      $region28: #{autoencoder_vq_forward.1} parent=11 // pred_fallthru
        _
      // Predicated region
      $region29: #{autoencoder_vq_forward.1} parent=11 // pred_check
        %p403 = pneg %p166
      $region30: #{autoencoder_vq_forward.1} parent=11 // pred_check_branch
        %405 = sbr.rel (%p403) target = $region32
      $region31: #{autoencoder_vq_forward.1} parent=11 // pred_region
        _
      $region32: #{autoencoder_vq_forward.1} parent=11 // pred_fallthru
        _
      // Predicated region
      $region33: #{autoencoder_vq_forward.1} parent=11 // pred_check
        %p406 = pneg %p187
      $region34: #{autoencoder_vq_forward.1} parent=11 // pred_check_branch
        %408 = sbr.rel (%p406) target = $region36
      $region35: #{autoencoder_vq_forward.1} parent=11 // pred_region
        _
      $region36: #{autoencoder_vq_forward.1} parent=11 // pred_fallthru
        _
      // Predicated region
      $region37: #{autoencoder_vq_forward.1} parent=11 // pred_check
        %p409 = pneg %p208
      $region38: #{autoencoder_vq_forward.1} parent=11 // pred_check_branch
        %411 = sbr.rel (%p409) target = $region40
      $region39: #{autoencoder_vq_forward.1} parent=11 // pred_region
        _
      $region40: #{autoencoder_vq_forward.1} parent=11 // pred_fallthru
        _
      // Predicated region
      $region41: #{autoencoder_vq_forward.1} parent=11 // pred_check
        %p412 = pneg %p229
      $region42: #{autoencoder_vq_forward.1} parent=11 // pred_check_branch
        %414 = sbr.rel (%p412) target = $region44
      $region43: #{autoencoder_vq_forward.1} parent=11 // pred_region
        _
      $region44: #{autoencoder_vq_forward.1} parent=11 // pred_fallthru
        _
      // Predicated region
      $region45: #{autoencoder_vq_forward.1} parent=11 // pred_check
        %p415 = pneg %p250
      $region46: #{autoencoder_vq_forward.1} parent=11 // pred_check_branch
        %417 = sbr.rel (%p415) target = $region48
      $region47: #{autoencoder_vq_forward.1} parent=11 // pred_region
        _
      $region48: #{autoencoder_vq_forward.1} parent=11 // pred_fallthru
        _
      // Predicated region
      $region49: #{autoencoder_vq_forward.1} parent=11 // pred_check
        %p418 = pneg %p271
      $region50: #{autoencoder_vq_forward.1} parent=11 // pred_check_branch
        %420 = sbr.rel (%p418) target = $region52
      $region51: #{autoencoder_vq_forward.1} parent=11 // pred_region
        _
      $region52: #{autoencoder_vq_forward.1} parent=11 // pred_fallthru
        _
      // Predicated region
      $region53: #{autoencoder_vq_forward.1} parent=11 // pred_check
        %p421 = pneg %p292
      $region54: #{autoencoder_vq_forward.1} parent=11 // pred_check_branch
        %423 = sbr.rel (%p421) target = $region56
      $region55: #{autoencoder_vq_forward.1} parent=11 // pred_region
        _
      $region56: #{autoencoder_vq_forward.1} parent=11 // pred_fallthru
        _
    $region12: #{autoencoder_vq_forward.1} parent=5 // pred_fallthru
      _
    %p424 = scmp.lt.s32.totalorder %s21, 2
    // Predicated region
    $region57: #{autoencoder_vq_forward.1} parent=5 // pred_check
      %p425 = pneg %p424
    $region58: #{autoencoder_vq_forward.1} parent=5 // pred_check_branch
      %427 = sbr.rel (%p425) target = $region60
    $region59: #{autoencoder_vq_forward.1} parent=5 // pred_region
      // Predicated region
      $region61: #{autoencoder_vq_forward.1} parent=59 // pred_check
        %p428 = pneg %p55
      $region62: #{autoencoder_vq_forward.1} parent=59 // pred_check_branch
        %430 = sbr.rel (%p428) target = $region64
      $region63: #{autoencoder_vq_forward.1} parent=59 // pred_region
        %s431 = smul.u32 2, %s29
        %p432 = scmp.lt.s32.totalorder %s28, 1
        %s433 = scalar_select %p432, %s28, 1
        %p434 = scmp.lt.s32.totalorder %s431, 1
        %s435 = scalar_select %p434, %s431, 1
        %s436 = smul.addr %s433, 2
        %s437 = sadd.s32 %s435, %s436
        %s438 = smul.addr %s437, 4
        %s439 = scalar_lea.vmem %s0, %s438
        %s440 = smul.u32 2, %s29
      $region64: #{autoencoder_vq_forward.1} parent=59 // pred_fallthru
        _
    $region60: #{autoencoder_vq_forward.1} parent=5 // pred_fallthru
      _
    %p441 = scmp.le.s32.totalorder 1, %s21
    %p442 = scmp.lt.s32.totalorder %s21, 3
    %p443 = pnand %p441, %p442
    %p444 = pneg %p443
    // Predicated region
    $region65: #{autoencoder_vq_forward.1} parent=5 // pred_check
      _
    $region66: #{autoencoder_vq_forward.1} parent=5 // pred_check_branch
      %446 = sbr.rel (%p443) target = $region68
    $region67: #{autoencoder_vq_forward.1} parent=5 // pred_region
      %s447 = ssub.s32 %s21, 1
      %s448 = smul.u32 2, %s31
      %p449 = scmp.lt.s32.totalorder %s30, 1
      %s450 = scalar_select %p449, %s30, 1
      %p451 = scmp.lt.s32.totalorder %s448, 1
      %s452 = scalar_select %p451, %s448, 1
      %s453 = smul.addr %s450, 2
      %s454 = sadd.s32 %s452, %s453
      %s455 = smul.addr %s454, 4
      %s456 = scalar_lea.vmem %s0, %s455
      %p457 = pneg %p61
      %p458 = pneg %p58
      %p459 = pneg %p82
      %p460 = pneg %p79
      %p461 = pneg %p103
      %p462 = pneg %p100
      %p463 = pneg %p124
      %p464 = pneg %p121
      %p465 = pneg %p145
      %p466 = pneg %p142
      %p467 = pneg %p166
      %p468 = pneg %p163
      %p469 = pneg %p187
      %p470 = pneg %p184
      %p471 = pneg %p208
      %p472 = pneg %p205
      %p473 = pneg %p229
      %p474 = pneg %p226
      %p475 = pneg %p250
      %p476 = pneg %p247
      %p477 = pneg %p271
      %p478 = pneg %p268
      %p479 = pneg %p292
      %p480 = pneg %p289
      %p481 = pneg %p320
      %p482 = pneg %p317
      %s483 = smul.u32 2, %s31
      %p484 = scmp.lt.s32.totalorder %s30, 1
      %s485 = scalar_select %p484, %s30, 1
      %p486 = scmp.lt.s32.totalorder %s483, 1
      %s487 = scalar_select %p486, %s483, 1
      %s488 = smul.addr %s485, 2
      %s489 = sadd.s32 %s487, %s488
      %s490 = smul.addr %s489, 4
      %s491 = scalar_lea.vmem %s12, %s490
      %p492 = pneg %p348
      %p493 = pneg %p345
      %s494 = smul.u32 2, %s31
      %p495 = scmp.lt.s32.totalorder %s30, 1
      %s496 = scalar_select %p495, %s30, 1
      %p497 = scmp.lt.s32.totalorder %s494, 1
      %s498 = scalar_select %p497, %s494, 1
      %s499 = smul.addr %s496, 2
      %s500 = sadd.s32 %s498, %s499
      %s501 = scalar_lea.vmem %s13, %s500
      %p502 = pneg %p376
      %p503 = pneg %p373
      %s504 = smul.u32 2, %s31
      %p505 = scmp.lt.s32.totalorder %s30, 1
      %s506 = scalar_select %p505, %s30, 1
      %p507 = scmp.lt.s32.totalorder %s504, 1
      %s508 = scalar_select %p507, %s504, 1
      %s509 = smul.addr %s506, 2
      %s510 = sadd.s32 %s508, %s509
      %s511 = scalar_lea.vmem %s14, %s510
      %s512 = smul.u32 2, %s31
      %p513 = scmp.lt.s32.totalorder %s30, 1
      %s514 = scalar_select %p513, %s30, 1
      %p515 = scmp.lt.s32.totalorder %s512, 1
      %s516 = scalar_select %p515, %s512, 1
      %s517 = smul.addr %s514, 2
      %s518 = sadd.s32 %s516, %s517
      %s519 = smul.addr %s518, 4
      %s520 = scalar_lea.vmem %s0, %s519
      %s521 = smul.u32 2, %s31
      %s522 = smul.u32 2, %s31
      %p523 = scmp.lt.s32.totalorder %s30, 1
      %s524 = scalar_select %p523, %s30, 1
      %p525 = scmp.lt.s32.totalorder %s522, 1
      %s526 = scalar_select %p525, %s522, 1
      %s527 = smul.addr %s524, 2
      %s528 = sadd.s32 %s526, %s527
      %s529 = smul.addr %s528, 4
      %s530 = scalar_lea.vmem %s12, %s529
      %s531 = smul.u32 2, %s31
      %s532 = smul.u32 2, %s31
      %p533 = scmp.lt.s32.totalorder %s30, 1
      %s534 = scalar_select %p533, %s30, 1
      %p535 = scmp.lt.s32.totalorder %s532, 1
      %s536 = scalar_select %p535, %s532, 1
      %s537 = smul.addr %s534, 2
      %s538 = sadd.s32 %s536, %s537
      %s539 = scalar_lea.vmem %s13, %s538
      %s540 = smul.u32 2, %s31
      %s541 = smul.u32 2, %s31
      %p542 = scmp.lt.s32.totalorder %s30, 1
      %s543 = scalar_select %p542, %s30, 1
      %p544 = scmp.lt.s32.totalorder %s541, 1
      %s545 = scalar_select %p544, %s541, 1
      %s546 = smul.addr %s543, 2
      %s547 = sadd.s32 %s545, %s546
      %s548 = scalar_lea.vmem %s14, %s547
      %s549 = smul.u32 2, %s31
      %v550 = vld [vmem:[%s520] sm:$0xff]
      %v551 = vld [vmem:[%s1] sm:$0xff]
      %v552 = vld [vmem:[%s1 + $0x8] sm:$0xff]
      %v553 = vld [vmem:[%s1 + $0x10] sm:$0xff]
      %v554 = vld [vmem:[%s1 + $0x18] sm:$0xff]
      %v555 = vld [vmem:[%s2] sm:$0xff]
      %v556 = vld [vmem:[%s2 + $0x8] sm:$0xff]
      %v557 = vld [vmem:[%s2 + $0x10] sm:$0xff]
      %v558 = vld [vmem:[%s2 + $0x18] sm:$0xff]
      %560 = vset.pattern.permute.xlu0 0
      %561 = vperm.xlu0 %560, %v555
      %v562 = vpop.permute.xlu0 %561
      %565 = vset.pattern.permute.xlu0 0
      %566 = vperm.xlu0 %565, %v556
      %v567 = vpop.permute.xlu0 %566
      %570 = vset.pattern.permute.xlu0 0
      %571 = vperm.xlu0 %570, %v557
      %v572 = vpop.permute.xlu0 %571
      %575 = vset.pattern.permute.xlu0 0
      %576 = vperm.xlu0 %575, %v558
      %v577 = vpop.permute.xlu0 %576
      %v580 = vcombine.high %v550, %v550
      %vm581 = vcmask 31744
      %v583 = vsel %vm581, %v551, 0
      %v586 = vsel %vm581, %v552, 0
      %v589 = vsel %vm581, %v553, 0
      %v592 = vsel %vm581, %v554, 0
      %vm594 = vcmask 1043456
      %v595 = vsel %vm594, %v550, 0
      %v597 = vsel %vm594, %v580, 0
      %599 = vmatprep.subr.mxu0 %v597
      %600 = vmatpush1.msra.mxu0 %v595
      %601 = vmatprep.subr.mxu0 0.0
      %602 = vmatpush1.msra.mxu0 0.0
      %603 = vmatprep.subr.mxu0 0.0
      %604 = vmatpush1.msra.mxu0 0.0
      %605 = vmatprep.subr.mxu0 0.0
      %606 = vmatpush1.msra.mxu0 0.0
      %607 = vmatprep.subr.mxu0 0.0
      %608 = vmatpush1.msra.mxu0 0.0
      %609 = vmatprep.subr.mxu0 0.0
      %610 = vmatpush1.msra.mxu0 0.0
      %611 = vmatprep.subr.mxu0 0.0
      %612 = vmatpush1.msra.mxu0 0.0
      %613 = vmatprep.subr.mxu0 0.0
      %614 = vmatpush1.msra.mxu0 0.0
      %615 = vmatprep.subr.mxu0 0.0
      %616 = vmatpush1.msra.mxu0 0.0
      %617 = vmatprep.subr.mxu0 0.0
      %618 = vmatpush1.msra.mxu0 0.0
      %619 = vmatprep.subr.mxu0 0.0
      %620 = vmatpush1.msra.mxu0 0.0
      %621 = vmatprep.subr.mxu0 0.0
      %622 = vmatpush1.msra.mxu0 0.0
      %623 = vmatprep.subr.mxu0 0.0
      %624 = vmatpush1.msra.mxu0 0.0
      %625 = vmatprep.subr.mxu0 0.0
      %626 = vmatpush1.msra.mxu0 0.0
      %627 = vmatprep.subr.mxu0 0.0
      %628 = vmatpush1.msra.mxu0 0.0
      %629 = vmatprep.subr.mxu0 0.0
      %630 = vmatpush1.msra.mxu0 0.0
      %631 = vmatprep.subr.mxu0 0.0
      %632 = vmatpush1.msra.mxu0 0.0
      %633 = vmatprep.subr.mxu0 0.0
      %634 = vmatpush1.msra.mxu0 0.0
      %635 = vmatprep.subr.mxu0 0.0
      %636 = vmatpush1.msra.mxu0 0.0
      %637 = vmatprep.subr.mxu0 0.0
      %638 = vmatpush1.msra.mxu0 0.0
      %639 = vmatprep.subr.mxu0 0.0
      %640 = vmatpush1.msra.mxu0 0.0
      %641 = vmatprep.subr.mxu0 0.0
      %642 = vmatpush1.msra.mxu0 0.0
      %643 = vmatprep.subr.mxu0 0.0
      %644 = vmatpush1.msra.mxu0 0.0
      %645 = vmatprep.subr.mxu0 0.0
      %646 = vmatpush1.msra.mxu0 0.0
      %647 = vmatprep.subr.mxu0 0.0
      %648 = vmatpush1.msra.mxu0 0.0
      %649 = vmatprep.subr.mxu0 0.0
      %650 = vmatpush1.msra.mxu0 0.0
      %651 = vmatprep.subr.mxu0 0.0
      %652 = vmatpush1.msra.mxu0 0.0
      %653 = vmatprep.subr.mxu0 0.0
      %654 = vmatpush1.msra.mxu0 0.0
      %655 = vmatprep.subr.mxu0 0.0
      %656 = vmatpush1.msra.mxu0 0.0
      %657 = vmatprep.subr.mxu0 0.0
      %658 = vmatpush1.msra.mxu0 0.0
      %659 = vmatprep.subr.mxu0 0.0
      %660 = vmatpush1.msra.mxu0 0.0
      %661 = vmatprep.subr.mxu0 0.0
      %662 = vmatpush1.msra.mxu0 0.0
      %663 = vmatprep.mubr.f32.mxu0 0.0
      %664 = vmatmul.mubr.f32.gmra.mrb[0].mxu0 %v583
      %v665 = vpop.f32.mrb[0].mxu0
      %v666 = vadd.f32 %v562, %v665
      %v667 = vpop.f32.mrb[0].mxu0
      %v668 = vadd.f32 %v562, %v667
      %669 = vmatprep.mubr.f32.mxu0 0.0
      %670 = vmatmul.mubr.f32.gmra.mrb[0].mxu0 %v586
      %v671 = vpop.f32.mrb[0].mxu0
      %v672 = vadd.f32 %v567, %v671
      %v673 = vpop.f32.mrb[0].mxu0
      %v674 = vadd.f32 %v567, %v673
      %675 = vmatprep.mubr.f32.mxu0 0.0
      %676 = vmatmul.mubr.f32.gmra.mrb[0].mxu0 %v589
      %v677 = vpop.f32.mrb[0].mxu0
      %v678 = vadd.f32 %v572, %v677
      %v679 = vpop.f32.mrb[0].mxu0
      %v680 = vadd.f32 %v572, %v679
      %681 = vmatprep.mubr.f32.mxu0 0.0
      %682 = vmatmul.mubr.f32.gmra.mrb[0].mxu0 %v592
      %v683 = vpop.f32.mrb[0].mxu0
      %v684 = vadd.f32 %v577, %v683
      %v685 = vpop.f32.mrb[0].mxu0
      %v686 = vadd.f32 %v577, %v685
      %687 = vdwg.mxu0
      %v688 = vmul.f32 %v666, 0.2
      %v689 = vmul.f32 %v668, 0.2
      %v690 = vmul.f32 %v672, 0.2
      %v691 = vmul.f32 %v674, 0.2
      %v692 = vmul.f32 %v678, 0.2
      %v693 = vmul.f32 %v680, 0.2
      %v694 = vmul.f32 %v684, 0.2
      %v695 = vmul.f32 %v686, 0.2
      %v696 = vmax.f32 %v666, %v688
      %v697 = vmax.f32 %v668, %v689
      %v698 = vmax.f32 %v672, %v690
      %v699 = vmax.f32 %v674, %v691
      %v700 = vmax.f32 %v678, %v692
      %v701 = vmax.f32 %v680, %v693
      %v702 = vmax.f32 %v684, %v694
      %v703 = vmax.f32 %v686, %v695
      %v704 = vld [vmem:[%s3] sm:$0xff]
      %v705 = vld [vmem:[%s3 + $0x8] sm:$0xff]
      %v706 = vld [vmem:[%s3 + $0x10] sm:$0xff]
      %v707 = vld [vmem:[%s3 + $0x18] sm:$0xff]
      %v708 = vld [vmem:[%s3 + $0x20] sm:$0x1]
      %v709 = vld [vmem:[%s4] sm:$0xff]
      %v710 = vld [vmem:[%s4 + $0x8] sm:$0xff]
      %v711 = vld [vmem:[%s4 + $0x10] sm:$0xff]
      %v712 = vld [vmem:[%s4 + $0x18] sm:$0xff]
      %v713 = vld [vmem:[%s4 + $0x20] sm:$0x1]
      %715 = vset.pattern.permute.xlu0 0
      %716 = vperm.xlu0 %715, %v709
      %v717 = vpop.permute.xlu0 %716
      %720 = vset.pattern.permute.xlu0 0
      %721 = vperm.xlu0 %720, %v710
      %v722 = vpop.permute.xlu0 %721
      %725 = vset.pattern.permute.xlu0 0
      %726 = vperm.xlu0 %725, %v711
      %v727 = vpop.permute.xlu0 %726
      %730 = vset.pattern.permute.xlu0 0
      %731 = vperm.xlu0 %730, %v712
      %v732 = vpop.permute.xlu0 %731
      %735 = vset.pattern.permute.xlu0 0
      %736 = vperm.xlu0 %735, %v713
      %v737 = vpop.permute.xlu0 %736
      %vm739 = vcmask 261120
      %v741 = vsel %vm739, %v704, 0
      %v744 = vsel %vm739, %v705, 0
      %v747 = vsel %vm739, %v706, 0
      %v750 = vsel %vm739, %v707, 0
      %v753 = vsel %vm739, %v708, 0
      %755 = vmatprep.subr.mxu0 %v697
      %756 = vmatpush1.msra.mxu0 %v696
      %757 = vmatprep.subr.mxu0 %v699
      %758 = vmatpush1.msra.mxu0 %v698
      %759 = vmatprep.subr.mxu0 %v701
      %760 = vmatpush1.msra.mxu0 %v700
      %761 = vmatprep.subr.mxu0 %v703
      %762 = vmatpush1.msra.mxu0 %v702
      %763 = vmatprep.subr.mxu0 0.0
      %764 = vmatpush1.msra.mxu0 0.0
      %765 = vmatprep.subr.mxu0 0.0
      %766 = vmatpush1.msra.mxu0 0.0
      %767 = vmatprep.subr.mxu0 0.0
      %768 = vmatpush1.msra.mxu0 0.0
      %769 = vmatprep.subr.mxu0 0.0
      %770 = vmatpush1.msra.mxu0 0.0
      %771 = vmatprep.subr.mxu0 0.0
      %772 = vmatpush1.msra.mxu0 0.0
      %773 = vmatprep.subr.mxu0 0.0
      %774 = vmatpush1.msra.mxu0 0.0
      %775 = vmatprep.subr.mxu0 0.0
      %776 = vmatpush1.msra.mxu0 0.0
      %777 = vmatprep.subr.mxu0 0.0
      %778 = vmatpush1.msra.mxu0 0.0
      %779 = vmatprep.subr.mxu0 0.0
      %780 = vmatpush1.msra.mxu0 0.0
      %781 = vmatprep.subr.mxu0 0.0
      %782 = vmatpush1.msra.mxu0 0.0
      %783 = vmatprep.subr.mxu0 0.0
      %784 = vmatpush1.msra.mxu0 0.0
      %785 = vmatprep.subr.mxu0 0.0
      %786 = vmatpush1.msra.mxu0 0.0
      %787 = vmatprep.subr.mxu0 0.0
      %788 = vmatpush1.msra.mxu0 0.0
      %789 = vmatprep.subr.mxu0 0.0
      %790 = vmatpush1.msra.mxu0 0.0
      %791 = vmatprep.subr.mxu0 0.0
      %792 = vmatpush1.msra.mxu0 0.0
      %793 = vmatprep.subr.mxu0 0.0
      %794 = vmatpush1.msra.mxu0 0.0
      %795 = vmatprep.subr.mxu0 0.0
      %796 = vmatpush1.msra.mxu0 0.0
      %797 = vmatprep.subr.mxu0 0.0
      %798 = vmatpush1.msra.mxu0 0.0
      %799 = vmatprep.subr.mxu0 0.0
      %800 = vmatpush1.msra.mxu0 0.0
      %801 = vmatprep.subr.mxu0 0.0
      %802 = vmatpush1.msra.mxu0 0.0
      %803 = vmatprep.subr.mxu0 0.0
      %804 = vmatpush1.msra.mxu0 0.0
      %805 = vmatprep.subr.mxu0 0.0
      %806 = vmatpush1.msra.mxu0 0.0
      %807 = vmatprep.subr.mxu0 0.0
      %808 = vmatpush1.msra.mxu0 0.0
      %809 = vmatprep.subr.mxu0 0.0
      %810 = vmatpush1.msra.mxu0 0.0
      %811 = vmatprep.subr.mxu0 0.0
      %812 = vmatpush1.msra.mxu0 0.0
      %813 = vmatprep.subr.mxu0 0.0
      %814 = vmatpush1.msra.mxu0 0.0
      %815 = vmatprep.subr.mxu0 0.0
      %816 = vmatpush1.msra.mxu0 0.0
      %817 = vmatprep.subr.mxu0 0.0
      %818 = vmatpush1.msra.mxu0 0.0
      %819 = vmatprep.mubr.f32.mxu0 0.0
      %820 = vmatmul.mubr.f32.gmra.mrb[0].mxu0 %v741
      %v821 = vpop.f32.mrb[0].mxu0
      %v822 = vadd.f32 %v717, %v821
      %v823 = vpop.f32.mrb[0].mxu0
      %v824 = vadd.f32 %v717, %v823
      %825 = vmatprep.mubr.f32.mxu0 0.0
      %826 = vmatmul.mubr.f32.gmra.mrb[0].mxu0 %v744
      %v827 = vpop.f32.mrb[0].mxu0
      %v828 = vadd.f32 %v722, %v827
      %v829 = vpop.f32.mrb[0].mxu0
      %v830 = vadd.f32 %v722, %v829
      %831 = vmatprep.mubr.f32.mxu0 0.0
      %832 = vmatmul.mubr.f32.gmra.mrb[0].mxu0 %v747
      %v833 = vpop.f32.mrb[0].mxu0
      %v834 = vadd.f32 %v727, %v833
      %v835 = vpop.f32.mrb[0].mxu0
      %v836 = vadd.f32 %v727, %v835
      %837 = vmatprep.mubr.f32.mxu0 0.0
      %838 = vmatmul.mubr.f32.gmra.mrb[0].mxu0 %v750
      %v839 = vpop.f32.mrb[0].mxu0
      %v840 = vadd.f32 %v732, %v839
      %v841 = vpop.f32.mrb[0].mxu0
      %v842 = vadd.f32 %v732, %v841
      %843 = vmatprep.mubr.f32.mxu0 0.0
      %844 = vmatmul.mubr.f32.gmra.mrb[0].mxu0 %v753
      %v845 = vpop.f32.mrb[0].mxu0
      %v846 = vadd.f32 %v737, %v845
      %v847 = vpop.f32.mrb[0].mxu0
      %v848 = vadd.f32 %v737, %v847
      %849 = vdwg.mxu0
      %v850 = vld [vmem:[%s5] sm:$0xff]
      %v851 = vld [vmem:[%s5 + $0x8] sm:$0xff]
      %v852 = vld [vmem:[%s5 + $0x10] sm:$0xff]
      %v853 = vld [vmem:[%s5 + $0x18] sm:$0xff]
      %v854 = vld [vmem:[%s5 + $0x20] sm:$0xff]
      %v855 = vld [vmem:[%s5 + $0x28] sm:$0xff]
      %v856 = vld [vmem:[%s5 + $0x30] sm:$0xff]
      %v857 = vld [vmem:[%s5 + $0x38] sm:$0xff]
      %v858 = vld [vmem:[%s5 + $0x40] sm:$0xff]
      %v859 = vld [vmem:[%s5 + $0x48] sm:$0xff]
      %v860 = vld [vmem:[%s5 + $0x50] sm:$0xff]
      %v861 = vld [vmem:[%s5 + $0x58] sm:$0xff]
      %v862 = vld [vmem:[%s5 + $0x60] sm:$0xff]
      %v863 = vld [vmem:[%s5 + $0x68] sm:$0xff]
      %v864 = vld [vmem:[%s5 + $0x70] sm:$0xff]
      %v865 = vld [vmem:[%s5 + $0x78] sm:$0xff]
      %v866 = vld [vmem:[%s5 + $0x80] sm:$0xff]
      %v867 = vld [vmem:[%s5 + $0x88] sm:$0xff]
      %v868 = vld [vmem:[%s5 + $0x90] sm:$0xff]
      %v869 = vld [vmem:[%s5 + $0x98] sm:$0xff]
      %v870 = vld [vmem:[%s5 + $0xa0] sm:$0xff]
      %v871 = vld [vmem:[%s5 + $0xa8] sm:$0xff]
      %v872 = vld [vmem:[%s5 + $0xb0] sm:$0xff]
      %v873 = vld [vmem:[%s5 + $0xb8] sm:$0xff]
      %v874 = vld [vmem:[%s5 + $0xc0] sm:$0xff]
      %v875 = vld [vmem:[%s5 + $0xc8] sm:$0xff]
      %v876 = vld [vmem:[%s5 + $0xd0] sm:$0xff]
      %v877 = vld [vmem:[%s5 + $0xd8] sm:$0xff]
      %v878 = vld [vmem:[%s5 + $0xe0] sm:$0xff]
      %v879 = vld [vmem:[%s5 + $0xe8] sm:$0xff]
      %v880 = vld [vmem:[%s5 + $0xf0] sm:$0xff]
      %v881 = vld [vmem:[%s5 + $0xf8] sm:$0xff]
      %v882 = vld [vmem:[%s5 + $0x100] sm:$0xff]
      %v883 = vld [vmem:[%s5 + $0x108] sm:$0xff]
      %v884 = vld [vmem:[%s5 + $0x110] sm:$0xff]
      %v885 = vld [vmem:[%s5 + $0x118] sm:$0xff]
      %v886 = vld [vmem:[%s5 + $0x120] sm:$0xff]
      %v887 = vld [vmem:[%s5 + $0x128] sm:$0xff]
      %v888 = vld [vmem:[%s5 + $0x130] sm:$0xff]
      %v889 = vld [vmem:[%s5 + $0x138] sm:$0xff]
      %v890 = vld [vmem:[%s5 + $0x140] sm:$0xff]
      %v891 = vld [vmem:[%s5 + $0x148] sm:$0xff]
      %v892 = vld [vmem:[%s5 + $0x150] sm:$0xff]
      %v893 = vld [vmem:[%s5 + $0x158] sm:$0xff]
      %v894 = vld [vmem:[%s5 + $0x160] sm:$0xff]
      %v895 = vld [vmem:[%s5 + $0x168] sm:$0xff]
      %v896 = vld [vmem:[%s5 + $0x170] sm:$0xff]
      %v897 = vld [vmem:[%s5 + $0x178] sm:$0xff]
      %v898 = vld [vmem:[%s5 + $0x180] sm:$0xff]
      %v899 = vld [vmem:[%s5 + $0x188] sm:$0xff]
      %v900 = vld [vmem:[%s5 + $0x190] sm:$0xff]
      %v901 = vld [vmem:[%s5 + $0x198] sm:$0xff]
      %v902 = vld [vmem:[%s5 + $0x1a0] sm:$0xff]
      %v903 = vld [vmem:[%s5 + $0x1a8] sm:$0xff]
      %v904 = vld [vmem:[%s5 + $0x1b0] sm:$0xff]
      %v905 = vld [vmem:[%s5 + $0x1b8] sm:$0xff]
      %v906 = vld [vmem:[%s5 + $0x1c0] sm:$0xff]
      %v907 = vld [vmem:[%s5 + $0x1c8] sm:$0xff]
      %v908 = vld [vmem:[%s5 + $0x1d0] sm:$0xff]
      %v909 = vld [vmem:[%s5 + $0x1d8] sm:$0xff]
      %v910 = vld [vmem:[%s5 + $0x1e0] sm:$0xff]
      %v911 = vld [vmem:[%s5 + $0x1e8] sm:$0xff]
      %v912 = vld [vmem:[%s5 + $0x1f0] sm:$0xff]
      %v913 = vld [vmem:[%s5 + $0x1f8] sm:$0xff]
      %vm914 = vcmask 269312
      %v916 = vsel %vm914, %v850, 0
      %v919 = vsel %vm914, %v851, 0
      %v922 = vsel %vm914, %v852, 0
      %v925 = vsel %vm914, %v853, 0
      %v928 = vsel %vm914, %v854, 0
      %v931 = vsel %vm914, %v855, 0
      %v934 = vsel %vm914, %v856, 0
      %v937 = vsel %vm914, %v857, 0
      %v940 = vsel %vm914, %v858, 0
      %v943 = vsel %vm914, %v859, 0
      %v946 = vsel %vm914, %v860, 0
      %v949 = vsel %vm914, %v861, 0
      %v952 = vsel %vm914, %v862, 0
      %v955 = vsel %vm914, %v863, 0
      %v958 = vsel %vm914, %v864, 0
      %v961 = vsel %vm914, %v865, 0
      %v964 = vsel %vm914, %v866, 0
      %v967 = vsel %vm914, %v867, 0
      %v970 = vsel %vm914, %v868, 0
      %v973 = vsel %vm914, %v869, 0
      %v976 = vsel %vm914, %v870, 0
      %v979 = vsel %vm914, %v871, 0
      %v982 = vsel %vm914, %v872, 0
      %v985 = vsel %vm914, %v873, 0
      %v988 = vsel %vm914, %v874, 0
      %v991 = vsel %vm914, %v875, 0
      %v994 = vsel %vm914, %v876, 0
      %v997 = vsel %vm914, %v877, 0
      %v1000 = vsel %vm914, %v878, 0
      %v1003 = vsel %vm914, %v879, 0
      %v1006 = vsel %vm914, %v880, 0
      %v1009 = vsel %vm914, %v881, 0
      %v1012 = vsel %vm914, %v882, 0
      %v1015 = vsel %vm914, %v883, 0
      %v1018 = vsel %vm914, %v884, 0
      %v1021 = vsel %vm914, %v885, 0
      %v1024 = vsel %vm914, %v886, 0
      %v1027 = vsel %vm914, %v887, 0
      %v1030 = vsel %vm914, %v888, 0
      %v1033 = vsel %vm914, %v889, 0
      %v1036 = vsel %vm914, %v890, 0
      %v1039 = vsel %vm914, %v891, 0
      %v1042 = vsel %vm914, %v892, 0
      %v1045 = vsel %vm914, %v893, 0
      %v1048 = vsel %vm914, %v894, 0
      %v1051 = vsel %vm914, %v895, 0
      %v1054 = vsel %vm914, %v896, 0
      %v1057 = vsel %vm914, %v897, 0
      %v1060 = vsel %vm914, %v898, 0
      %v1063 = vsel %vm914, %v899, 0
      %v1066 = vsel %vm914, %v900, 0
      %v1069 = vsel %vm914, %v901, 0
      %v1072 = vsel %vm914, %v902, 0
      %v1075 = vsel %vm914, %v903, 0
      %v1078 = vsel %vm914, %v904, 0
      %v1081 = vsel %vm914, %v905, 0
      %v1084 = vsel %vm914, %v906, 0
      %v1087 = vsel %vm914, %v907, 0
      %v1090 = vsel %vm914, %v908, 0
      %v1093 = vsel %vm914, %v909, 0
      %v1096 = vsel %vm914, %v910, 0
      %v1099 = vsel %vm914, %v911, 0
      %v1102 = vsel %vm914, %v912, 0
      %v1105 = vsel %vm914, %v913, 0
      %vm1107 = vcmask 1040384
      %v1109 = vsel %vm1107, %v846, 0
      %v1112 = vsel %vm1107, %v848, 0
      %1114 = vmatprep.subr.mxu0 %v824
      %1115 = vmatpush1.msra.mxu0 %v822
      %1116 = vmatprep.subr.mxu0 %v830
      %1117 = vmatpush1.msra.mxu0 %v828
      %1118 = vmatprep.subr.mxu0 %v836
      %1119 = vmatpush1.msra.mxu0 %v834
      %1120 = vmatprep.subr.mxu0 %v842
      %1121 = vmatpush1.msra.mxu0 %v840
      %1122 = vmatprep.subr.mxu0 %v1112
      %1123 = vmatpush1.msra.mxu0 %v1109
      %1124 = vmatprep.subr.mxu0 0.0
      %1125 = vmatpush1.msra.mxu0 0.0
      %1126 = vmatprep.subr.mxu0 0.0
      %1127 = vmatpush1.msra.mxu0 0.0
      %1128 = vmatprep.subr.mxu0 0.0
      %1129 = vmatpush1.msra.mxu0 0.0
      %1130 = vmatprep.subr.mxu0 0.0
      %1131 = vmatpush1.msra.mxu0 0.0
      %1132 = vmatprep.subr.mxu0 0.0
      %1133 = vmatpush1.msra.mxu0 0.0
      %1134 = vmatprep.subr.mxu0 0.0
      %1135 = vmatpush1.msra.mxu0 0.0
      %1136 = vmatprep.subr.mxu0 0.0
      %1137 = vmatpush1.msra.mxu0 0.0
      %1138 = vmatprep.subr.mxu0 0.0
      %1139 = vmatpush1.msra.mxu0 0.0
      %1140 = vmatprep.subr.mxu0 0.0
      %1141 = vmatpush1.msra.mxu0 0.0
      %1142 = vmatprep.subr.mxu0 0.0
      %1143 = vmatpush1.msra.mxu0 0.0
      %1144 = vmatprep.subr.mxu0 0.0
      %1145 = vmatpush1.msra.mxu0 0.0
      %1146 = vmatprep.subr.mxu0 0.0
      %1147 = vmatpush1.msra.mxu0 0.0
      %1148 = vmatprep.subr.mxu0 0.0
      %1149 = vmatpush1.msra.mxu0 0.0
      %1150 = vmatprep.subr.mxu0 0.0
      %1151 = vmatpush1.msra.mxu0 0.0
      %1152 = vmatprep.subr.mxu0 0.0
      %1153 = vmatpush1.msra.mxu0 0.0
      %1154 = vmatprep.subr.mxu0 0.0
      %1155 = vmatpush1.msra.mxu0 0.0
      %1156 = vmatprep.subr.mxu0 0.0
      %1157 = vmatpush1.msra.mxu0 0.0
      %1158 = vmatprep.subr.mxu0 0.0
      %1159 = vmatpush1.msra.mxu0 0.0
      %1160 = vmatprep.subr.mxu0 0.0
      %1161 = vmatpush1.msra.mxu0 0.0
      %1162 = vmatprep.subr.mxu0 0.0
      %1163 = vmatpush1.msra.mxu0 0.0
      %1164 = vmatprep.subr.mxu0 0.0
      %1165 = vmatpush1.msra.mxu0 0.0
      %1166 = vmatprep.subr.mxu0 0.0
      %1167 = vmatpush1.msra.mxu0 0.0
      %1168 = vmatprep.subr.mxu0 0.0
      %1169 = vmatpush1.msra.mxu0 0.0
      %1170 = vmatprep.subr.mxu0 0.0
      %1171 = vmatpush1.msra.mxu0 0.0
      %1172 = vmatprep.subr.mxu0 0.0
      %1173 = vmatpush1.msra.mxu0 0.0
      %1174 = vmatprep.subr.mxu0 0.0
      %1175 = vmatpush1.msra.mxu0 0.0
      %1176 = vmatprep.subr.mxu0 0.0
      %1177 = vmatpush1.msra.mxu0 0.0
      %1178 = vmatprep.mubr.f32.mxu0 0.0
      %1179 = vmatmul.mubr.f32.gmra.mrb[0].mxu0 %v916
      %v1180 = vpop.f32.mrb[0].mxu0
      %v1181 = vadd.f32 0.0, %v1180
      %v1182 = vpop.f32.mrb[0].mxu0
      %v1183 = vadd.f32 0.0, %v1182
      %1184 = vmatprep.mubr.f32.mxu0 0.0
      %1185 = vmatmul.mubr.f32.gmra.mrb[0].mxu0 %v919
      %v1186 = vpop.f32.mrb[0].mxu0
      %v1187 = vadd.f32 0.0, %v1186
      %v1188 = vpop.f32.mrb[0].mxu0
      %v1189 = vadd.f32 0.0, %v1188
      %1190 = vmatprep.mubr.f32.mxu0 0.0
      %1191 = vmatmul.mubr.f32.gmra.mrb[0].mxu0 %v922
      %v1192 = vpop.f32.mrb[0].mxu0
      %v1193 = vadd.f32 0.0, %v1192
      %v1194 = vpop.f32.mrb[0].mxu0
      %v1195 = vadd.f32 0.0, %v1194
      %1196 = vmatprep.mubr.f32.mxu0 0.0
      %1197 = vmatmul.mubr.f32.gmra.mrb[0].mxu0 %v925
      %v1198 = vpop.f32.mrb[0].mxu0
      %v1199 = vadd.f32 0.0, %v1198
      %v1200 = vpop.f32.mrb[0].mxu0
      %v1201 = vadd.f32 0.0, %v1200
      %1202 = vmatprep.mubr.f32.mxu0 0.0
      %1203 = vmatmul.mubr.f32.gmra.mrb[0].mxu0 %v928
      %v1204 = vpop.f32.mrb[0].mxu0
      %v1205 = vadd.f32 0.0, %v1204
      %v1206 = vpop.f32.mrb[0].mxu0
      %v1207 = vadd.f32 0.0, %v1206
      %1208 = vmatprep.mubr.f32.mxu0 0.0
      %1209 = vmatmul.mubr.f32.gmra.mrb[0].mxu0 %v931
      %v1210 = vpop.f32.mrb[0].mxu0
      %v1211 = vadd.f32 0.0, %v1210
      %v1212 = vpop.f32.mrb[0].mxu0
      %v1213 = vadd.f32 0.0, %v1212
      %1214 = vmatprep.mubr.f32.mxu0 0.0
      %1215 = vmatmul.mubr.f32.gmra.mrb[0].mxu0 %v934
      %v1216 = vpop.f32.mrb[0].mxu0
      %v1217 = vadd.f32 0.0, %v1216
      %v1218 = vpop.f32.mrb[0].mxu0
      %v1219 = vadd.f32 0.0, %v1218
      %1220 = vmatprep.mubr.f32.mxu0 0.0
      %1221 = vmatmul.mubr.f32.gmra.mrb[0].mxu0 %v937
      %v1222 = vpop.f32.mrb[0].mxu0
      %v1223 = vadd.f32 0.0, %v1222
      %v1224 = vpop.f32.mrb[0].mxu0
      %v1225 = vadd.f32 0.0, %v1224
      %1226 = vmatprep.mubr.f32.mxu0 0.0
      %1227 = vmatmul.mubr.f32.gmra.mrb[0].mxu0 %v940
      %v1228 = vpop.f32.mrb[0].mxu0
      %v1229 = vadd.f32 0.0, %v1228
      %v1230 = vpop.f32.mrb[0].mxu0
      %v1231 = vadd.f32 0.0, %v1230
      %1232 = vmatprep.mubr.f32.mxu0 0.0
      %1233 = vmatmul.mubr.f32.gmra.mrb[0].mxu0 %v943
      %v1234 = vpop.f32.mrb[0].mxu0
      %v1235 = vadd.f32 0.0, %v1234
      %v1236 = vpop.f32.mrb[0].mxu0
      %v1237 = vadd.f32 0.0, %v1236
      %1238 = vmatprep.mubr.f32.mxu0 0.0
      %1239 = vmatmul.mubr.f32.gmra.mrb[0].mxu0 %v946
      %v1240 = vpop.f32.mrb[0].mxu0
      %v1241 = vadd.f32 0.0, %v1240
      %v1242 = vpop.f32.mrb[0].mxu0
      %v1243 = vadd.f32 0.0, %v1242
      %1244 = vmatprep.mubr.f32.mxu0 0.0
      %1245 = vmatmul.mubr.f32.gmra.mrb[0].mxu0 %v949
      %v1246 = vpop.f32.mrb[0].mxu0
      %v1247 = vadd.f32 0.0, %v1246
      %v1248 = vpop.f32.mrb[0].mxu0
      %v1249 = vadd.f32 0.0, %v1248
      %1250 = vmatprep.mubr.f32.mxu0 0.0
      %1251 = vmatmul.mubr.f32.gmra.mrb[0].mxu0 %v952
      %v1252 = vpop.f32.mrb[0].mxu0
      %v1253 = vadd.f32 0.0, %v1252
      %v1254 = vpop.f32.mrb[0].mxu0
      %v1255 = vadd.f32 0.0, %v1254
      %1256 = vmatprep.mubr.f32.mxu0 0.0
      %1257 = vmatmul.mubr.f32.gmra.mrb[0].mxu0 %v955
      %v1258 = vpop.f32.mrb[0].mxu0
      %v1259 = vadd.f32 0.0, %v1258
      %v1260 = vpop.f32.mrb[0].mxu0
      %v1261 = vadd.f32 0.0, %v1260
      %1262 = vmatprep.mubr.f32.mxu0 0.0
      %1263 = vmatmul.mubr.f32.gmra.mrb[0].mxu0 %v958
      %v1264 = vpop.f32.mrb[0].mxu0
      %v1265 = vadd.f32 0.0, %v1264
      %v1266 = vpop.f32.mrb[0].mxu0
      %v1267 = vadd.f32 0.0, %v1266
      %1268 = vmatprep.mubr.f32.mxu0 0.0
      %1269 = vmatmul.mubr.f32.gmra.mrb[0].mxu0 %v961
      %v1270 = vpop.f32.mrb[0].mxu0
      %v1271 = vadd.f32 0.0, %v1270
      %v1272 = vpop.f32.mrb[0].mxu0
      %v1273 = vadd.f32 0.0, %v1272
      %1274 = vmatprep.mubr.f32.mxu0 0.0
      %1275 = vmatmul.mubr.f32.gmra.mrb[0].mxu0 %v964
      %v1276 = vpop.f32.mrb[0].mxu0
      %v1277 = vadd.f32 0.0, %v1276
      %v1278 = vpop.f32.mrb[0].mxu0
      %v1279 = vadd.f32 0.0, %v1278
      %1280 = vmatprep.mubr.f32.mxu0 0.0
      %1281 = vmatmul.mubr.f32.gmra.mrb[0].mxu0 %v967
      %v1282 = vpop.f32.mrb[0].mxu0
      %v1283 = vadd.f32 0.0, %v1282
      %v1284 = vpop.f32.mrb[0].mxu0
      %v1285 = vadd.f32 0.0, %v1284
      %1286 = vmatprep.mubr.f32.mxu0 0.0
      %1287 = vmatmul.mubr.f32.gmra.mrb[0].mxu0 %v970
      %v1288 = vpop.f32.mrb[0].mxu0
      %v1289 = vadd.f32 0.0, %v1288
      %v1290 = vpop.f32.mrb[0].mxu0
      %v1291 = vadd.f32 0.0, %v1290
      %1292 = vmatprep.mubr.f32.mxu0 0.0
      %1293 = vmatmul.mubr.f32.gmra.mrb[0].mxu0 %v973
      %v1294 = vpop.f32.mrb[0].mxu0
      %v1295 = vadd.f32 0.0, %v1294
      %v1296 = vpop.f32.mrb[0].mxu0
      %v1297 = vadd.f32 0.0, %v1296
      %1298 = vmatprep.mubr.f32.mxu0 0.0
      %1299 = vmatmul.mubr.f32.gmra.mrb[0].mxu0 %v976
      %v1300 = vpop.f32.mrb[0].mxu0
      %v1301 = vadd.f32 0.0, %v1300
      %v1302 = vpop.f32.mrb[0].mxu0
      %v1303 = vadd.f32 0.0, %v1302
      %1304 = vmatprep.mubr.f32.mxu0 0.0
      %1305 = vmatmul.mubr.f32.gmra.mrb[0].mxu0 %v979
      %v1306 = vpop.f32.mrb[0].mxu0
      %v1307 = vadd.f32 0.0, %v1306
      %v1308 = vpop.f32.mrb[0].mxu0
      %v1309 = vadd.f32 0.0, %v1308
      %1310 = vmatprep.mubr.f32.mxu0 0.0
      %1311 = vmatmul.mubr.f32.gmra.mrb[0].mxu0 %v982
      %v1312 = vpop.f32.mrb[0].mxu0
      %v1313 = vadd.f32 0.0, %v1312
      %v1314 = vpop.f32.mrb[0].mxu0
      %v1315 = vadd.f32 0.0, %v1314
      %1316 = vmatprep.mubr.f32.mxu0 0.0
      %1317 = vmatmul.mubr.f32.gmra.mrb[0].mxu0 %v985
      %v1318 = vpop.f32.mrb[0].mxu0
      %v1319 = vadd.f32 0.0, %v1318
      %v1320 = vpop.f32.mrb[0].mxu0
      %v1321 = vadd.f32 0.0, %v1320
      %1322 = vmatprep.mubr.f32.mxu0 0.0
      %1323 = vmatmul.mubr.f32.gmra.mrb[0].mxu0 %v988
      %v1324 = vpop.f32.mrb[0].mxu0
      %v1325 = vadd.f32 0.0, %v1324
      %v1326 = vpop.f32.mrb[0].mxu0
      %v1327 = vadd.f32 0.0, %v1326
      %1328 = vmatprep.mubr.f32.mxu0 0.0
      %1329 = vmatmul.mubr.f32.gmra.mrb[0].mxu0 %v991
      %v1330 = vpop.f32.mrb[0].mxu0
      %v1331 = vadd.f32 0.0, %v1330
      %v1332 = vpop.f32.mrb[0].mxu0
      %v1333 = vadd.f32 0.0, %v1332
      %1334 = vmatprep.mubr.f32.mxu0 0.0
      %1335 = vmatmul.mubr.f32.gmra.mrb[0].mxu0 %v994
      %v1336 = vpop.f32.mrb[0].mxu0
      %v1337 = vadd.f32 0.0, %v1336
      %v1338 = vpop.f32.mrb[0].mxu0
      %v1339 = vadd.f32 0.0, %v1338
      %1340 = vmatprep.mubr.f32.mxu0 0.0
      %1341 = vmatmul.mubr.f32.gmra.mrb[0].mxu0 %v997
      %v1342 = vpop.f32.mrb[0].mxu0
      %v1343 = vadd.f32 0.0, %v1342
      %v1344 = vpop.f32.mrb[0].mxu0
      %v1345 = vadd.f32 0.0, %v1344
      %1346 = vmatprep.mubr.f32.mxu0 0.0
      %1347 = vmatmul.mubr.f32.gmra.mrb[0].mxu0 %v1000
      %v1348 = vpop.f32.mrb[0].mxu0
      %v1349 = vadd.f32 0.0, %v1348
      %v1350 = vpop.f32.mrb[0].mxu0
      %v1351 = vadd.f32 0.0, %v1350
      %1352 = vmatprep.mubr.f32.mxu0 0.0
      %1353 = vmatmul.mubr.f32.gmra.mrb[0].mxu0 %v1003
      %v1354 = vpop.f32.mrb[0].mxu0
      %v1355 = vadd.f32 0.0, %v1354
      %v1356 = vpop.f32.mrb[0].mxu0
      %v1357 = vadd.f32 0.0, %v1356
      %1358 = vmatprep.mubr.f32.mxu0 0.0
      %1359 = vmatmul.mubr.f32.gmra.mrb[0].mxu0 %v1006
      %v1360 = vpop.f32.mrb[0].mxu0
      %v1361 = vadd.f32 0.0, %v1360
      %v1362 = vpop.f32.mrb[0].mxu0
      %v1363 = vadd.f32 0.0, %v1362
      %1364 = vmatprep.mubr.f32.mxu0 0.0
      %1365 = vmatmul.mubr.f32.gmra.mrb[0].mxu0 %v1009
      %v1366 = vpop.f32.mrb[0].mxu0
      %v1367 = vadd.f32 0.0, %v1366
      %v1368 = vpop.f32.mrb[0].mxu0
      %v1369 = vadd.f32 0.0, %v1368
      %1370 = vmatprep.mubr.f32.mxu0 0.0
      %1371 = vmatmul.mubr.f32.gmra.mrb[0].mxu0 %v1012
      %v1372 = vpop.f32.mrb[0].mxu0
      %v1373 = vadd.f32 0.0, %v1372
      %v1374 = vpop.f32.mrb[0].mxu0
      %v1375 = vadd.f32 0.0, %v1374
      %1376 = vmatprep.mubr.f32.mxu0 0.0
      %1377 = vmatmul.mubr.f32.gmra.mrb[0].mxu0 %v1015
      %v1378 = vpop.f32.mrb[0].mxu0
      %v1379 = vadd.f32 0.0, %v1378
      %v1380 = vpop.f32.mrb[0].mxu0
      %v1381 = vadd.f32 0.0, %v1380
      %1382 = vmatprep.mubr.f32.mxu0 0.0
      %1383 = vmatmul.mubr.f32.gmra.mrb[0].mxu0 %v1018
      %v1384 = vpop.f32.mrb[0].mxu0
      %v1385 = vadd.f32 0.0, %v1384
      %v1386 = vpop.f32.mrb[0].mxu0
      %v1387 = vadd.f32 0.0, %v1386
      %1388 = vmatprep.mubr.f32.mxu0 0.0
      %1389 = vmatmul.mubr.f32.gmra.mrb[0].mxu0 %v1021
      %v1390 = vpop.f32.mrb[0].mxu0
      %v1391 = vadd.f32 0.0, %v1390
      %v1392 = vpop.f32.mrb[0].mxu0
      %v1393 = vadd.f32 0.0, %v1392
      %1394 = vmatprep.mubr.f32.mxu0 0.0
      %1395 = vmatmul.mubr.f32.gmra.mrb[0].mxu0 %v1024
      %v1396 = vpop.f32.mrb[0].mxu0
      %v1397 = vadd.f32 0.0, %v1396
      %v1398 = vpop.f32.mrb[0].mxu0
      %v1399 = vadd.f32 0.0, %v1398
      %1400 = vmatprep.mubr.f32.mxu0 0.0
      %1401 = vmatmul.mubr.f32.gmra.mrb[0].mxu0 %v1027
      %v1402 = vpop.f32.mrb[0].mxu0
      %v1403 = vadd.f32 0.0, %v1402
      %v1404 = vpop.f32.mrb[0].mxu0
      %v1405 = vadd.f32 0.0, %v1404
      %1406 = vmatprep.mubr.f32.mxu0 0.0
      %1407 = vmatmul.mubr.f32.gmra.mrb[0].mxu0 %v1030
      %v1408 = vpop.f32.mrb[0].mxu0
      %v1409 = vadd.f32 0.0, %v1408
      %v1410 = vpop.f32.mrb[0].mxu0
      %v1411 = vadd.f32 0.0, %v1410
      %1412 = vmatprep.mubr.f32.mxu0 0.0
      %1413 = vmatmul.mubr.f32.gmra.mrb[0].mxu0 %v1033
      %v1414 = vpop.f32.mrb[0].mxu0
      %v1415 = vadd.f32 0.0, %v1414
      %v1416 = vpop.f32.mrb[0].mxu0
      %v1417 = vadd.f32 0.0, %v1416
      %1418 = vmatprep.mubr.f32.mxu0 0.0
      %1419 = vmatmul.mubr.f32.gmra.mrb[0].mxu0 %v1036
      %v1420 = vpop.f32.mrb[0].mxu0
      %v1421 = vadd.f32 0.0, %v1420
      %v1422 = vpop.f32.mrb[0].mxu0
      %v1423 = vadd.f32 0.0, %v1422
      %1424 = vmatprep.mubr.f32.mxu0 0.0
      %1425 = vmatmul.mubr.f32.gmra.mrb[0].mxu0 %v1039
      %v1426 = vpop.f32.mrb[0].mxu0
      %v1427 = vadd.f32 0.0, %v1426
      %v1428 = vpop.f32.mrb[0].mxu0
      %v1429 = vadd.f32 0.0, %v1428
      %1430 = vmatprep.mubr.f32.mxu0 0.0
      %1431 = vmatmul.mubr.f32.gmra.mrb[0].mxu0 %v1042
      %v1432 = vpop.f32.mrb[0].mxu0
      %v1433 = vadd.f32 0.0, %v1432
      %v1434 = vpop.f32.mrb[0].mxu0
      %v1435 = vadd.f32 0.0, %v1434
      %1436 = vmatprep.mubr.f32.mxu0 0.0
      %1437 = vmatmul.mubr.f32.gmra.mrb[0].mxu0 %v1045
      %v1438 = vpop.f32.mrb[0].mxu0
      %v1439 = vadd.f32 0.0, %v1438
      %v1440 = vpop.f32.mrb[0].mxu0
      %v1441 = vadd.f32 0.0, %v1440
      %1442 = vmatprep.mubr.f32.mxu0 0.0
      %1443 = vmatmul.mubr.f32.gmra.mrb[0].mxu0 %v1048
      %v1444 = vpop.f32.mrb[0].mxu0
      %v1445 = vadd.f32 0.0, %v1444
      %v1446 = vpop.f32.mrb[0].mxu0
      %v1447 = vadd.f32 0.0, %v1446
      %1448 = vmatprep.mubr.f32.mxu0 0.0
      %1449 = vmatmul.mubr.f32.gmra.mrb[0].mxu0 %v1051
      %v1450 = vpop.f32.mrb[0].mxu0
      %v1451 = vadd.f32 0.0, %v1450
      %v1452 = vpop.f32.mrb[0].mxu0
      %v1453 = vadd.f32 0.0, %v1452
      %1454 = vmatprep.mubr.f32.mxu0 0.0
      %1455 = vmatmul.mubr.f32.gmra.mrb[0].mxu0 %v1054
      %v1456 = vpop.f32.mrb[0].mxu0
      %v1457 = vadd.f32 0.0, %v1456
      %v1458 = vpop.f32.mrb[0].mxu0
      %v1459 = vadd.f32 0.0, %v1458
      %1460 = vmatprep.mubr.f32.mxu0 0.0
      %1461 = vmatmul.mubr.f32.gmra.mrb[0].mxu0 %v1057
      %v1462 = vpop.f32.mrb[0].mxu0
      %v1463 = vadd.f32 0.0, %v1462
      %v1464 = vpop.f32.mrb[0].mxu0
      %v1465 = vadd.f32 0.0, %v1464
      %1466 = vmatprep.mubr.f32.mxu0 0.0
      %1467 = vmatmul.mubr.f32.gmra.mrb[0].mxu0 %v1060
      %v1468 = vpop.f32.mrb[0].mxu0
      %v1469 = vadd.f32 0.0, %v1468
      %v1470 = vpop.f32.mrb[0].mxu0
      %v1471 = vadd.f32 0.0, %v1470
      %1472 = vmatprep.mubr.f32.mxu0 0.0
      %1473 = vmatmul.mubr.f32.gmra.mrb[0].mxu0 %v1063
      %v1474 = vpop.f32.mrb[0].mxu0
      %v1475 = vadd.f32 0.0, %v1474
      %v1476 = vpop.f32.mrb[0].mxu0
      %v1477 = vadd.f32 0.0, %v1476
      %1478 = vmatprep.mubr.f32.mxu0 0.0
      %1479 = vmatmul.mubr.f32.gmra.mrb[0].mxu0 %v1066
      %v1480 = vpop.f32.mrb[0].mxu0
      %v1481 = vadd.f32 0.0, %v1480
      %v1482 = vpop.f32.mrb[0].mxu0
      %v1483 = vadd.f32 0.0, %v1482
      %1484 = vmatprep.mubr.f32.mxu0 0.0
      %1485 = vmatmul.mubr.f32.gmra.mrb[0].mxu0 %v1069
      %v1486 = vpop.f32.mrb[0].mxu0
      %v1487 = vadd.f32 0.0, %v1486
      %v1488 = vpop.f32.mrb[0].mxu0
      %v1489 = vadd.f32 0.0, %v1488
      %1490 = vmatprep.mubr.f32.mxu0 0.0
      %1491 = vmatmul.mubr.f32.gmra.mrb[0].mxu0 %v1072
      %v1492 = vpop.f32.mrb[0].mxu0
      %v1493 = vadd.f32 0.0, %v1492
      %v1494 = vpop.f32.mrb[0].mxu0
      %v1495 = vadd.f32 0.0, %v1494
      %1496 = vmatprep.mubr.f32.mxu0 0.0
      %1497 = vmatmul.mubr.f32.gmra.mrb[0].mxu0 %v1075
      %v1498 = vpop.f32.mrb[0].mxu0
      %v1499 = vadd.f32 0.0, %v1498
      %v1500 = vpop.f32.mrb[0].mxu0
      %v1501 = vadd.f32 0.0, %v1500
      %1502 = vmatprep.mubr.f32.mxu0 0.0
      %1503 = vmatmul.mubr.f32.gmra.mrb[0].mxu0 %v1078
      %v1504 = vpop.f32.mrb[0].mxu0
      %v1505 = vadd.f32 0.0, %v1504
      %v1506 = vpop.f32.mrb[0].mxu0
      %v1507 = vadd.f32 0.0, %v1506
      %1508 = vmatprep.mubr.f32.mxu0 0.0
      %1509 = vmatmul.mubr.f32.gmra.mrb[0].mxu0 %v1081
      %v1510 = vpop.f32.mrb[0].mxu0
      %v1511 = vadd.f32 0.0, %v1510
      %v1512 = vpop.f32.mrb[0].mxu0
      %v1513 = vadd.f32 0.0, %v1512
      %1514 = vmatprep.mubr.f32.mxu0 0.0
      %1515 = vmatmul.mubr.f32.gmra.mrb[0].mxu0 %v1084
      %v1516 = vpop.f32.mrb[0].mxu0
      %v1517 = vadd.f32 0.0, %v1516
      %v1518 = vpop.f32.mrb[0].mxu0
      %v1519 = vadd.f32 0.0, %v1518
      %1520 = vmatprep.mubr.f32.mxu0 0.0
      %1521 = vmatmul.mubr.f32.gmra.mrb[0].mxu0 %v1087
      %v1522 = vpop.f32.mrb[0].mxu0
      %v1523 = vadd.f32 0.0, %v1522
      %v1524 = vpop.f32.mrb[0].mxu0
      %v1525 = vadd.f32 0.0, %v1524
      %1526 = vmatprep.mubr.f32.mxu0 0.0
      %1527 = vmatmul.mubr.f32.gmra.mrb[0].mxu0 %v1090
      %v1528 = vpop.f32.mrb[0].mxu0
      %v1529 = vadd.f32 0.0, %v1528
      %v1530 = vpop.f32.mrb[0].mxu0
      %v1531 = vadd.f32 0.0, %v1530
      %1532 = vmatprep.mubr.f32.mxu0 0.0
      %1533 = vmatmul.mubr.f32.gmra.mrb[0].mxu0 %v1093
      %v1534 = vpop.f32.mrb[0].mxu0
      %v1535 = vadd.f32 0.0, %v1534
      %v1536 = vpop.f32.mrb[0].mxu0
      %v1537 = vadd.f32 0.0, %v1536
      %1538 = vmatprep.mubr.f32.mxu0 0.0
      %1539 = vmatmul.mubr.f32.gmra.mrb[0].mxu0 %v1096
      %v1540 = vpop.f32.mrb[0].mxu0
      %v1541 = vadd.f32 0.0, %v1540
      %v1542 = vpop.f32.mrb[0].mxu0
      %v1543 = vadd.f32 0.0, %v1542
      %1544 = vmatprep.mubr.f32.mxu0 0.0
      %1545 = vmatmul.mubr.f32.gmra.mrb[0].mxu0 %v1099
      %v1546 = vpop.f32.mrb[0].mxu0
      %v1547 = vadd.f32 0.0, %v1546
      %v1548 = vpop.f32.mrb[0].mxu0
      %v1549 = vadd.f32 0.0, %v1548
      %1550 = vmatprep.mubr.f32.mxu0 0.0
      %1551 = vmatmul.mubr.f32.gmra.mrb[0].mxu0 %v1102
      %v1552 = vpop.f32.mrb[0].mxu0
      %v1553 = vadd.f32 0.0, %v1552
      %v1554 = vpop.f32.mrb[0].mxu0
      %v1555 = vadd.f32 0.0, %v1554
      %1556 = vmatprep.mubr.f32.mxu0 0.0
      %1557 = vmatmul.mubr.f32.gmra.mrb[0].mxu0 %v1105
      %v1558 = vpop.f32.mrb[0].mxu0
      %v1559 = vadd.f32 0.0, %v1558
      %v1560 = vpop.f32.mrb[0].mxu0
      %v1561 = vadd.f32 0.0, %v1560
      %1562 = vdwg.mxu0
      %v1563 = vlaneseq
      %v1564 = vshrl.u32 %v1563, 7
      %v1565 = vadd.s32 %v1564, 8
      %v1566 = vadd.s32 %v1564, 16
      %v1567 = vadd.s32 %v1564, 24
      %v1568 = vadd.s32 %v1564, 32
      %v1569 = vadd.s32 %v1564, 40
      %v1570 = vadd.s32 %v1564, 48
      %v1571 = vadd.s32 %v1564, 56
      %v1572 = vadd.s32 %v1564, 64
      %v1573 = vadd.s32 %v1564, 72
      %v1574 = vadd.s32 %v1564, 80
      %v1575 = vadd.s32 %v1564, 88
      %v1576 = vadd.s32 %v1564, 96
      %v1577 = vadd.s32 %v1564, 104
      %v1578 = vadd.s32 %v1564, 112
      %v1579 = vadd.s32 %v1564, 120
      %v1580 = vadd.s32 %v1564, 128
      %v1581 = vadd.s32 %v1564, 136
      %v1582 = vadd.s32 %v1564, 144
      %v1583 = vadd.s32 %v1564, 152
      %v1584 = vadd.s32 %v1564, 160
      %v1585 = vadd.s32 %v1564, 168
      %v1586 = vadd.s32 %v1564, 176
      %v1587 = vadd.s32 %v1564, 184
      %v1588 = vadd.s32 %v1564, 192
      %v1589 = vadd.s32 %v1564, 200
      %v1590 = vadd.s32 %v1564, 208
      %v1591 = vadd.s32 %v1564, 216
      %v1592 = vadd.s32 %v1564, 224
      %v1593 = vadd.s32 %v1564, 232
      %v1594 = vadd.s32 %v1564, 240
      %v1595 = vadd.s32 %v1564, 248
      %v1596 = vadd.s32 %v1564, 256
      %v1597 = vadd.s32 %v1564, 264
      %v1598 = vadd.s32 %v1564, 272
      %v1599 = vadd.s32 %v1564, 280
      %v1600 = vadd.s32 %v1564, 288
      %v1601 = vadd.s32 %v1564, 296
      %v1602 = vadd.s32 %v1564, 304
      %v1603 = vadd.s32 %v1564, 312
      %v1604 = vadd.s32 %v1564, 320
      %v1605 = vadd.s32 %v1564, 328
      %v1606 = vadd.s32 %v1564, 336
      %v1607 = vadd.s32 %v1564, 344
      %v1608 = vadd.s32 %v1564, 352
      %v1609 = vadd.s32 %v1564, 360
      %v1610 = vadd.s32 %v1564, 368
      %v1611 = vadd.s32 %v1564, 376
      %v1612 = vadd.s32 %v1564, 384
      %v1613 = vadd.s32 %v1564, 392
      %v1614 = vadd.s32 %v1564, 400
      %v1615 = vadd.s32 %v1564, 408
      %v1616 = vadd.s32 %v1564, 416
      %v1617 = vadd.s32 %v1564, 424
      %v1618 = vadd.s32 %v1564, 432
      %v1619 = vadd.s32 %v1564, 440
      %v1620 = vadd.s32 %v1564, 448
      %v1621 = vadd.s32 %v1564, 456
      %v1622 = vadd.s32 %v1564, 464
      %v1623 = vadd.s32 %v1564, 472
      %v1624 = vadd.s32 %v1564, 480
      %v1625 = vadd.s32 %v1564, 488
      %v1626 = vadd.s32 %v1564, 496
      %v1627 = vadd.s32 %v1564, 504
      %v1628 = vmin.f32 %v1181, %v1193
      %v1629 = vmin.f32 %v1187, %v1199
      %v1630 = vmin.f32 %v1628, %v1205
      %v1631 = vmin.f32 %v1629, %v1211
      %v1632 = vmin.f32 %v1630, %v1217
      %v1633 = vmin.f32 %v1631, %v1223
      %v1634 = vmin.f32 %v1632, %v1229
      %v1635 = vmin.f32 %v1633, %v1235
      %v1636 = vmin.f32 %v1634, %v1241
      %v1637 = vmin.f32 %v1635, %v1247
      %v1638 = vmin.f32 %v1636, %v1253
      %v1639 = vmin.f32 %v1637, %v1259
      %v1640 = vmin.f32 %v1638, %v1265
      %v1641 = vmin.f32 %v1639, %v1271
      %v1642 = vmin.f32 %v1640, %v1277
      %v1643 = vmin.f32 %v1641, %v1283
      %v1644 = vmin.f32 %v1642, %v1289
      %v1645 = vmin.f32 %v1643, %v1295
      %v1646 = vmin.f32 %v1644, %v1301
      %v1647 = vmin.f32 %v1645, %v1307
      %v1648 = vmin.f32 %v1646, %v1313
      %v1649 = vmin.f32 %v1647, %v1319
      %v1650 = vmin.f32 %v1648, %v1325
      %v1651 = vmin.f32 %v1649, %v1331
      %v1652 = vmin.f32 %v1650, %v1337
      %v1653 = vmin.f32 %v1651, %v1343
      %v1654 = vmin.f32 %v1652, %v1349
      %v1655 = vmin.f32 %v1653, %v1355
      %v1656 = vmin.f32 %v1654, %v1361
      %v1657 = vmin.f32 %v1655, %v1367
      %v1658 = vmin.f32 %v1656, %v1373
      %v1659 = vmin.f32 %v1657, %v1379
      %v1660 = vmin.f32 %v1658, %v1385
      %v1661 = vmin.f32 %v1659, %v1391
      %v1662 = vmin.f32 %v1660, %v1397
      %v1663 = vmin.f32 %v1661, %v1403
      %v1664 = vmin.f32 %v1662, %v1409
      %v1665 = vmin.f32 %v1663, %v1415
      %v1666 = vmin.f32 %v1664, %v1421
      %v1667 = vmin.f32 %v1665, %v1427
      %v1668 = vmin.f32 %v1666, %v1433
      %v1669 = vmin.f32 %v1667, %v1439
      %v1670 = vmin.f32 %v1668, %v1445
      %v1671 = vmin.f32 %v1669, %v1451
      %v1672 = vmin.f32 %v1670, %v1457
      %v1673 = vmin.f32 %v1671, %v1463
      %v1674 = vmin.f32 %v1672, %v1469
      %v1675 = vmin.f32 %v1673, %v1475
      %v1676 = vmin.f32 %v1674, %v1481
      %v1677 = vmin.f32 %v1675, %v1487
      %v1678 = vmin.f32 %v1676, %v1493
      %v1679 = vmin.f32 %v1677, %v1499
      %v1680 = vmin.f32 %v1678, %v1505
      %v1681 = vmin.f32 %v1679, %v1511
      %v1682 = vmin.f32 %v1680, %v1517
      %v1683 = vmin.f32 %v1681, %v1523
      %v1684 = vmin.f32 %v1682, %v1529
      %v1685 = vmin.f32 %v1683, %v1535
      %v1686 = vmin.f32 %v1684, %v1541
      %v1687 = vmin.f32 %v1685, %v1547
      %v1688 = vmin.f32 %v1686, %v1553
      %v1689 = vmin.f32 %v1687, %v1559
      %v1690 = vmin.f32 %v1688, %v1689
      %v1691 = vrot.slane %v1690, 4
      %v1692 = vmin.f32 %v1690, %v1691
      %v1693 = vrot.slane %v1692, 2
      %v1694 = vmin.f32 %v1692, %v1693
      %v1695 = vrot.slane %v1694, 1
      %v1696 = vmin.f32 %v1694, %v1695
      %v1697 = vmin.f32 %v1183, %v1195
      %v1698 = vmin.f32 %v1189, %v1201
      %v1699 = vmin.f32 %v1697, %v1207
      %v1700 = vmin.f32 %v1698, %v1213
      %v1701 = vmin.f32 %v1699, %v1219
      %v1702 = vmin.f32 %v1700, %v1225
      %v1703 = vmin.f32 %v1701, %v1231
      %v1704 = vmin.f32 %v1702, %v1237
      %v1705 = vmin.f32 %v1703, %v1243
      %v1706 = vmin.f32 %v1704, %v1249
      %v1707 = vmin.f32 %v1705, %v1255
      %v1708 = vmin.f32 %v1706, %v1261
      %v1709 = vmin.f32 %v1707, %v1267
      %v1710 = vmin.f32 %v1708, %v1273
      %v1711 = vmin.f32 %v1709, %v1279
      %v1712 = vmin.f32 %v1710, %v1285
      %v1713 = vmin.f32 %v1711, %v1291
      %v1714 = vmin.f32 %v1712, %v1297
      %v1715 = vmin.f32 %v1713, %v1303
      %v1716 = vmin.f32 %v1714, %v1309
      %v1717 = vmin.f32 %v1715, %v1315
      %v1718 = vmin.f32 %v1716, %v1321
      %v1719 = vmin.f32 %v1717, %v1327
      %v1720 = vmin.f32 %v1718, %v1333
      %v1721 = vmin.f32 %v1719, %v1339
      %v1722 = vmin.f32 %v1720, %v1345
      %v1723 = vmin.f32 %v1721, %v1351
      %v1724 = vmin.f32 %v1722, %v1357
      %v1725 = vmin.f32 %v1723, %v1363
      %v1726 = vmin.f32 %v1724, %v1369
      %v1727 = vmin.f32 %v1725, %v1375
      %v1728 = vmin.f32 %v1726, %v1381
      %v1729 = vmin.f32 %v1727, %v1387
      %v1730 = vmin.f32 %v1728, %v1393
      %v1731 = vmin.f32 %v1729, %v1399
      %v1732 = vmin.f32 %v1730, %v1405
      %v1733 = vmin.f32 %v1731, %v1411
      %v1734 = vmin.f32 %v1732, %v1417
      %v1735 = vmin.f32 %v1733, %v1423
      %v1736 = vmin.f32 %v1734, %v1429
      %v1737 = vmin.f32 %v1735, %v1435
      %v1738 = vmin.f32 %v1736, %v1441
      %v1739 = vmin.f32 %v1737, %v1447
      %v1740 = vmin.f32 %v1738, %v1453
      %v1741 = vmin.f32 %v1739, %v1459
      %v1742 = vmin.f32 %v1740, %v1465
      %v1743 = vmin.f32 %v1741, %v1471
      %v1744 = vmin.f32 %v1742, %v1477
      %v1745 = vmin.f32 %v1743, %v1483
      %v1746 = vmin.f32 %v1744, %v1489
      %v1747 = vmin.f32 %v1745, %v1495
      %v1748 = vmin.f32 %v1746, %v1501
      %v1749 = vmin.f32 %v1747, %v1507
      %v1750 = vmin.f32 %v1748, %v1513
      %v1751 = vmin.f32 %v1749, %v1519
      %v1752 = vmin.f32 %v1750, %v1525
      %v1753 = vmin.f32 %v1751, %v1531
      %v1754 = vmin.f32 %v1752, %v1537
      %v1755 = vmin.f32 %v1753, %v1543
      %v1756 = vmin.f32 %v1754, %v1549
      %v1757 = vmin.f32 %v1755, %v1555
      %v1758 = vmin.f32 %v1756, %v1561
      %v1759 = vmin.f32 %v1757, %v1758
      %v1760 = vrot.slane %v1759, 4
      %v1761 = vmin.f32 %v1759, %v1760
      %v1762 = vrot.slane %v1761, 2
      %v1763 = vmin.f32 %v1761, %v1762
      %v1764 = vrot.slane %v1763, 1
      %v1765 = vmin.f32 %v1763, %v1764
      %vm1766 = vcmp.eq.f32.partialorder %v1181, %v1696
      %vm1767 = vcmp.eq.f32.partialorder %v1183, %v1765
      %vm1768 = vcmp.eq.f32.partialorder %v1187, %v1696
      %vm1769 = vcmp.eq.f32.partialorder %v1189, %v1765
      %vm1770 = vcmp.eq.f32.partialorder %v1193, %v1696
      %vm1771 = vcmp.eq.f32.partialorder %v1195, %v1765
      %vm1772 = vcmp.eq.f32.partialorder %v1199, %v1696
      %vm1773 = vcmp.eq.f32.partialorder %v1201, %v1765
      %vm1774 = vcmp.eq.f32.partialorder %v1205, %v1696
      %vm1775 = vcmp.eq.f32.partialorder %v1207, %v1765
      %vm1776 = vcmp.eq.f32.partialorder %v1211, %v1696
      %vm1777 = vcmp.eq.f32.partialorder %v1213, %v1765
      %vm1778 = vcmp.eq.f32.partialorder %v1217, %v1696
      %vm1779 = vcmp.eq.f32.partialorder %v1219, %v1765
      %vm1780 = vcmp.eq.f32.partialorder %v1223, %v1696
      %vm1781 = vcmp.eq.f32.partialorder %v1225, %v1765
      %vm1782 = vcmp.eq.f32.partialorder %v1229, %v1696
      %vm1783 = vcmp.eq.f32.partialorder %v1231, %v1765
      %vm1784 = vcmp.eq.f32.partialorder %v1235, %v1696
      %vm1785 = vcmp.eq.f32.partialorder %v1237, %v1765
      %vm1786 = vcmp.eq.f32.partialorder %v1241, %v1696
      %vm1787 = vcmp.eq.f32.partialorder %v1243, %v1765
      %vm1788 = vcmp.eq.f32.partialorder %v1247, %v1696
      %vm1789 = vcmp.eq.f32.partialorder %v1249, %v1765
      %vm1790 = vcmp.eq.f32.partialorder %v1253, %v1696
      %vm1791 = vcmp.eq.f32.partialorder %v1255, %v1765
      %vm1792 = vcmp.eq.f32.partialorder %v1259, %v1696
      %vm1793 = vcmp.eq.f32.partialorder %v1261, %v1765
      %vm1794 = vcmp.eq.f32.partialorder %v1265, %v1696
      %vm1795 = vcmp.eq.f32.partialorder %v1267, %v1765
      %vm1796 = vcmp.eq.f32.partialorder %v1271, %v1696
      %vm1797 = vcmp.eq.f32.partialorder %v1273, %v1765
      %vm1798 = vcmp.eq.f32.partialorder %v1277, %v1696
      %vm1799 = vcmp.eq.f32.partialorder %v1279, %v1765
      %vm1800 = vcmp.eq.f32.partialorder %v1283, %v1696
      %vm1801 = vcmp.eq.f32.partialorder %v1285, %v1765
      %vm1802 = vcmp.eq.f32.partialorder %v1289, %v1696
      %vm1803 = vcmp.eq.f32.partialorder %v1291, %v1765
      %vm1804 = vcmp.eq.f32.partialorder %v1295, %v1696
      %vm1805 = vcmp.eq.f32.partialorder %v1297, %v1765
      %vm1806 = vcmp.eq.f32.partialorder %v1301, %v1696
      %vm1807 = vcmp.eq.f32.partialorder %v1303, %v1765
      %vm1808 = vcmp.eq.f32.partialorder %v1307, %v1696
      %vm1809 = vcmp.eq.f32.partialorder %v1309, %v1765
      %vm1810 = vcmp.eq.f32.partialorder %v1313, %v1696
      %vm1811 = vcmp.eq.f32.partialorder %v1315, %v1765
      %vm1812 = vcmp.eq.f32.partialorder %v1319, %v1696
      %vm1813 = vcmp.eq.f32.partialorder %v1321, %v1765
      %vm1814 = vcmp.eq.f32.partialorder %v1325, %v1696
      %vm1815 = vcmp.eq.f32.partialorder %v1327, %v1765
      %vm1816 = vcmp.eq.f32.partialorder %v1331, %v1696
      %vm1817 = vcmp.eq.f32.partialorder %v1333, %v1765
      %vm1818 = vcmp.eq.f32.partialorder %v1337, %v1696
      %vm1819 = vcmp.eq.f32.partialorder %v1339, %v1765
      %vm1820 = vcmp.eq.f32.partialorder %v1343, %v1696
      %vm1821 = vcmp.eq.f32.partialorder %v1345, %v1765
      %vm1822 = vcmp.eq.f32.partialorder %v1349, %v1696
      %vm1823 = vcmp.eq.f32.partialorder %v1351, %v1765
      %vm1824 = vcmp.eq.f32.partialorder %v1355, %v1696
      %vm1825 = vcmp.eq.f32.partialorder %v1357, %v1765
      %vm1826 = vcmp.eq.f32.partialorder %v1361, %v1696
      %vm1827 = vcmp.eq.f32.partialorder %v1363, %v1765
      %vm1828 = vcmp.eq.f32.partialorder %v1367, %v1696
      %vm1829 = vcmp.eq.f32.partialorder %v1369, %v1765
      %vm1830 = vcmp.eq.f32.partialorder %v1373, %v1696
      %vm1831 = vcmp.eq.f32.partialorder %v1375, %v1765
      %vm1832 = vcmp.eq.f32.partialorder %v1379, %v1696
      %vm1833 = vcmp.eq.f32.partialorder %v1381, %v1765
      %vm1834 = vcmp.eq.f32.partialorder %v1385, %v1696
      %vm1835 = vcmp.eq.f32.partialorder %v1387, %v1765
      %vm1836 = vcmp.eq.f32.partialorder %v1391, %v1696
      %vm1837 = vcmp.eq.f32.partialorder %v1393, %v1765
      %vm1838 = vcmp.eq.f32.partialorder %v1397, %v1696
      %vm1839 = vcmp.eq.f32.partialorder %v1399, %v1765
      %vm1840 = vcmp.eq.f32.partialorder %v1403, %v1696
      %vm1841 = vcmp.eq.f32.partialorder %v1405, %v1765
      %vm1842 = vcmp.eq.f32.partialorder %v1409, %v1696
      %vm1843 = vcmp.eq.f32.partialorder %v1411, %v1765
      %vm1844 = vcmp.eq.f32.partialorder %v1415, %v1696
      %vm1845 = vcmp.eq.f32.partialorder %v1417, %v1765
      %vm1846 = vcmp.eq.f32.partialorder %v1421, %v1696
      %vm1847 = vcmp.eq.f32.partialorder %v1423, %v1765
      %vm1848 = vcmp.eq.f32.partialorder %v1427, %v1696
      %vm1849 = vcmp.eq.f32.partialorder %v1429, %v1765
      %vm1850 = vcmp.eq.f32.partialorder %v1433, %v1696
      %vm1851 = vcmp.eq.f32.partialorder %v1435, %v1765
      %vm1852 = vcmp.eq.f32.partialorder %v1439, %v1696
      %vm1853 = vcmp.eq.f32.partialorder %v1441, %v1765
      %vm1854 = vcmp.eq.f32.partialorder %v1445, %v1696
      %vm1855 = vcmp.eq.f32.partialorder %v1447, %v1765
      %vm1856 = vcmp.eq.f32.partialorder %v1451, %v1696
      %vm1857 = vcmp.eq.f32.partialorder %v1453, %v1765
      %vm1858 = vcmp.eq.f32.partialorder %v1457, %v1696
      %vm1859 = vcmp.eq.f32.partialorder %v1459, %v1765
      %vm1860 = vcmp.eq.f32.partialorder %v1463, %v1696
      %vm1861 = vcmp.eq.f32.partialorder %v1465, %v1765
      %vm1862 = vcmp.eq.f32.partialorder %v1469, %v1696
      %vm1863 = vcmp.eq.f32.partialorder %v1471, %v1765
      %vm1864 = vcmp.eq.f32.partialorder %v1475, %v1696
      %vm1865 = vcmp.eq.f32.partialorder %v1477, %v1765
      %vm1866 = vcmp.eq.f32.partialorder %v1481, %v1696
      %vm1867 = vcmp.eq.f32.partialorder %v1483, %v1765
      %vm1868 = vcmp.eq.f32.partialorder %v1487, %v1696
      %vm1869 = vcmp.eq.f32.partialorder %v1489, %v1765
      %vm1870 = vcmp.eq.f32.partialorder %v1493, %v1696
      %vm1871 = vcmp.eq.f32.partialorder %v1495, %v1765
      %vm1872 = vcmp.eq.f32.partialorder %v1499, %v1696
      %vm1873 = vcmp.eq.f32.partialorder %v1501, %v1765
      %vm1874 = vcmp.eq.f32.partialorder %v1505, %v1696
      %vm1875 = vcmp.eq.f32.partialorder %v1507, %v1765
      %vm1876 = vcmp.eq.f32.partialorder %v1511, %v1696
      %vm1877 = vcmp.eq.f32.partialorder %v1513, %v1765
      %vm1878 = vcmp.eq.f32.partialorder %v1517, %v1696
      %vm1879 = vcmp.eq.f32.partialorder %v1519, %v1765
      %vm1880 = vcmp.eq.f32.partialorder %v1523, %v1696
      %vm1881 = vcmp.eq.f32.partialorder %v1525, %v1765
      %vm1882 = vcmp.eq.f32.partialorder %v1529, %v1696
      %vm1883 = vcmp.eq.f32.partialorder %v1531, %v1765
      %vm1884 = vcmp.eq.f32.partialorder %v1535, %v1696
      %vm1885 = vcmp.eq.f32.partialorder %v1537, %v1765
      %vm1886 = vcmp.eq.f32.partialorder %v1541, %v1696
      %vm1887 = vcmp.eq.f32.partialorder %v1543, %v1765
      %vm1888 = vcmp.eq.f32.partialorder %v1547, %v1696
      %vm1889 = vcmp.eq.f32.partialorder %v1549, %v1765
      %vm1890 = vcmp.eq.f32.partialorder %v1553, %v1696
      %vm1891 = vcmp.eq.f32.partialorder %v1555, %v1765
      %vm1892 = vcmp.eq.f32.partialorder %v1559, %v1696
      %vm1893 = vcmp.eq.f32.partialorder %v1561, %v1765
      %v1894 = vsel %vm1766, %v1564, 512
      %v1895 = vsel %vm1767, %v1564, 512
      %v1896 = vsel %vm1768, %v1565, 512
      %v1897 = vsel %vm1769, %v1565, 512
      %v1898 = vsel %vm1770, %v1566, 512
      %v1899 = vsel %vm1771, %v1566, 512
      %v1900 = vsel %vm1772, %v1567, 512
      %v1901 = vsel %vm1773, %v1567, 512
      %v1902 = vsel %vm1774, %v1568, 512
      %v1903 = vsel %vm1775, %v1568, 512
      %v1904 = vsel %vm1776, %v1569, 512
      %v1905 = vsel %vm1777, %v1569, 512
      %v1906 = vsel %vm1778, %v1570, 512
      %v1907 = vsel %vm1779, %v1570, 512
      %v1908 = vsel %vm1780, %v1571, 512
      %v1909 = vsel %vm1781, %v1571, 512
      %v1910 = vsel %vm1782, %v1572, 512
      %v1911 = vsel %vm1783, %v1572, 512
      %v1912 = vsel %vm1784, %v1573, 512
      %v1913 = vsel %vm1785, %v1573, 512
      %v1914 = vsel %vm1786, %v1574, 512
      %v1915 = vsel %vm1787, %v1574, 512
      %v1916 = vsel %vm1788, %v1575, 512
      %v1917 = vsel %vm1789, %v1575, 512
      %v1918 = vsel %vm1790, %v1576, 512
      %v1919 = vsel %vm1791, %v1576, 512
      %v1920 = vsel %vm1792, %v1577, 512
      %v1921 = vsel %vm1793, %v1577, 512
      %v1922 = vsel %vm1794, %v1578, 512
      %v1923 = vsel %vm1795, %v1578, 512
      %v1924 = vsel %vm1796, %v1579, 512
      %v1925 = vsel %vm1797, %v1579, 512
      %v1926 = vsel %vm1798, %v1580, 512
      %v1927 = vsel %vm1799, %v1580, 512
      %v1928 = vsel %vm1800, %v1581, 512
      %v1929 = vsel %vm1801, %v1581, 512
      %v1930 = vsel %vm1802, %v1582, 512
      %v1931 = vsel %vm1803, %v1582, 512
      %v1932 = vsel %vm1804, %v1583, 512
      %v1933 = vsel %vm1805, %v1583, 512
      %v1934 = vsel %vm1806, %v1584, 512
      %v1935 = vsel %vm1807, %v1584, 512
      %v1936 = vsel %vm1808, %v1585, 512
      %v1937 = vsel %vm1809, %v1585, 512
      %v1938 = vsel %vm1810, %v1586, 512
      %v1939 = vsel %vm1811, %v1586, 512
      %v1940 = vsel %vm1812, %v1587, 512
      %v1941 = vsel %vm1813, %v1587, 512
      %v1942 = vsel %vm1814, %v1588, 512
      %v1943 = vsel %vm1815, %v1588, 512
      %v1944 = vsel %vm1816, %v1589, 512
      %v1945 = vsel %vm1817, %v1589, 512
      %v1946 = vsel %vm1818, %v1590, 512
      %v1947 = vsel %vm1819, %v1590, 512
      %v1948 = vsel %vm1820, %v1591, 512
      %v1949 = vsel %vm1821, %v1591, 512
      %v1950 = vsel %vm1822, %v1592, 512
      %v1951 = vsel %vm1823, %v1592, 512
      %v1952 = vsel %vm1824, %v1593, 512
      %v1953 = vsel %vm1825, %v1593, 512
      %v1954 = vsel %vm1826, %v1594, 512
      %v1955 = vsel %vm1827, %v1594, 512
      %v1956 = vsel %vm1828, %v1595, 512
      %v1957 = vsel %vm1829, %v1595, 512
      %v1958 = vsel %vm1830, %v1596, 512
      %v1959 = vsel %vm1831, %v1596, 512
      %v1960 = vsel %vm1832, %v1597, 512
      %v1961 = vsel %vm1833, %v1597, 512
      %v1962 = vsel %vm1834, %v1598, 512
      %v1963 = vsel %vm1835, %v1598, 512
      %v1964 = vsel %vm1836, %v1599, 512
      %v1965 = vsel %vm1837, %v1599, 512
      %v1966 = vsel %vm1838, %v1600, 512
      %v1967 = vsel %vm1839, %v1600, 512
      %v1968 = vsel %vm1840, %v1601, 512
      %v1969 = vsel %vm1841, %v1601, 512
      %v1970 = vsel %vm1842, %v1602, 512
      %v1971 = vsel %vm1843, %v1602, 512
      %v1972 = vsel %vm1844, %v1603, 512
      %v1973 = vsel %vm1845, %v1603, 512
      %v1974 = vsel %vm1846, %v1604, 512
      %v1975 = vsel %vm1847, %v1604, 512
      %v1976 = vsel %vm1848, %v1605, 512
      %v1977 = vsel %vm1849, %v1605, 512
      %v1978 = vsel %vm1850, %v1606, 512
      %v1979 = vsel %vm1851, %v1606, 512
      %v1980 = vsel %vm1852, %v1607, 512
      %v1981 = vsel %vm1853, %v1607, 512
      %v1982 = vsel %vm1854, %v1608, 512
      %v1983 = vsel %vm1855, %v1608, 512
      %v1984 = vsel %vm1856, %v1609, 512
      %v1985 = vsel %vm1857, %v1609, 512
      %v1986 = vsel %vm1858, %v1610, 512
      %v1987 = vsel %vm1859, %v1610, 512
      %v1988 = vsel %vm1860, %v1611, 512
      %v1989 = vsel %vm1861, %v1611, 512
      %v1990 = vsel %vm1862, %v1612, 512
      %v1991 = vsel %vm1863, %v1612, 512
      %v1992 = vsel %vm1864, %v1613, 512
      %v1993 = vsel %vm1865, %v1613, 512
      %v1994 = vsel %vm1866, %v1614, 512
      %v1995 = vsel %vm1867, %v1614, 512
      %v1996 = vsel %vm1868, %v1615, 512
      %v1997 = vsel %vm1869, %v1615, 512
      %v1998 = vsel %vm1870, %v1616, 512
      %v1999 = vsel %vm1871, %v1616, 512
      %v2000 = vsel %vm1872, %v1617, 512
      %v2001 = vsel %vm1873, %v1617, 512
      %v2002 = vsel %vm1874, %v1618, 512
      %v2003 = vsel %vm1875, %v1618, 512
      %v2004 = vsel %vm1876, %v1619, 512
      %v2005 = vsel %vm1877, %v1619, 512
      %v2006 = vsel %vm1878, %v1620, 512
      %v2007 = vsel %vm1879, %v1620, 512
      %v2008 = vsel %vm1880, %v1621, 512
      %v2009 = vsel %vm1881, %v1621, 512
      %v2010 = vsel %vm1882, %v1622, 512
      %v2011 = vsel %vm1883, %v1622, 512
      %v2012 = vsel %vm1884, %v1623, 512
      %v2013 = vsel %vm1885, %v1623, 512
      %v2014 = vsel %vm1886, %v1624, 512
      %v2015 = vsel %vm1887, %v1624, 512
      %v2016 = vsel %vm1888, %v1625, 512
      %v2017 = vsel %vm1889, %v1625, 512
      %v2018 = vsel %vm1890, %v1626, 512
      %v2019 = vsel %vm1891, %v1626, 512
      %v2020 = vsel %vm1892, %v1627, 512
      %v2021 = vsel %vm1893, %v1627, 512
      %vm2022 = vcmp.lt.s32.totalorder %v1894, %v1898
      %v2023 = vsel %vm2022, %v1894, %v1898
      %vm2024 = vcmp.lt.s32.totalorder %v1896, %v1900
      %v2025 = vsel %vm2024, %v1896, %v1900
      %vm2026 = vcmp.lt.s32.totalorder %v2023, %v1902
      %v2027 = vsel %vm2026, %v2023, %v1902
      %vm2028 = vcmp.lt.s32.totalorder %v2025, %v1904
      %v2029 = vsel %vm2028, %v2025, %v1904
      %vm2030 = vcmp.lt.s32.totalorder %v2027, %v1906
      %v2031 = vsel %vm2030, %v2027, %v1906
      %vm2032 = vcmp.lt.s32.totalorder %v2029, %v1908
      %v2033 = vsel %vm2032, %v2029, %v1908
      %vm2034 = vcmp.lt.s32.totalorder %v2031, %v1910
      %v2035 = vsel %vm2034, %v2031, %v1910
      %vm2036 = vcmp.lt.s32.totalorder %v2033, %v1912
      %v2037 = vsel %vm2036, %v2033, %v1912
      %vm2038 = vcmp.lt.s32.totalorder %v2035, %v1914
      %v2039 = vsel %vm2038, %v2035, %v1914
      %vm2040 = vcmp.lt.s32.totalorder %v2037, %v1916
      %v2041 = vsel %vm2040, %v2037, %v1916
      %vm2042 = vcmp.lt.s32.totalorder %v2039, %v1918
      %v2043 = vsel %vm2042, %v2039, %v1918
      %vm2044 = vcmp.lt.s32.totalorder %v2041, %v1920
      %v2045 = vsel %vm2044, %v2041, %v1920
      %vm2046 = vcmp.lt.s32.totalorder %v2043, %v1922
      %v2047 = vsel %vm2046, %v2043, %v1922
      %vm2048 = vcmp.lt.s32.totalorder %v2045, %v1924
      %v2049 = vsel %vm2048, %v2045, %v1924
      %vm2050 = vcmp.lt.s32.totalorder %v2047, %v1926
      %v2051 = vsel %vm2050, %v2047, %v1926
      %vm2052 = vcmp.lt.s32.totalorder %v2049, %v1928
      %v2053 = vsel %vm2052, %v2049, %v1928
      %vm2054 = vcmp.lt.s32.totalorder %v2051, %v1930
      %v2055 = vsel %vm2054, %v2051, %v1930
      %vm2056 = vcmp.lt.s32.totalorder %v2053, %v1932
      %v2057 = vsel %vm2056, %v2053, %v1932
      %vm2058 = vcmp.lt.s32.totalorder %v2055, %v1934
      %v2059 = vsel %vm2058, %v2055, %v1934
      %vm2060 = vcmp.lt.s32.totalorder %v2057, %v1936
      %v2061 = vsel %vm2060, %v2057, %v1936
      %vm2062 = vcmp.lt.s32.totalorder %v2059, %v1938
      %v2063 = vsel %vm2062, %v2059, %v1938
      %vm2064 = vcmp.lt.s32.totalorder %v2061, %v1940
      %v2065 = vsel %vm2064, %v2061, %v1940
      %vm2066 = vcmp.lt.s32.totalorder %v2063, %v1942
      %v2067 = vsel %vm2066, %v2063, %v1942
      %vm2068 = vcmp.lt.s32.totalorder %v2065, %v1944
      %v2069 = vsel %vm2068, %v2065, %v1944
      %vm2070 = vcmp.lt.s32.totalorder %v2067, %v1946
      %v2071 = vsel %vm2070, %v2067, %v1946
      %vm2072 = vcmp.lt.s32.totalorder %v2069, %v1948
      %v2073 = vsel %vm2072, %v2069, %v1948
      %vm2074 = vcmp.lt.s32.totalorder %v2071, %v1950
      %v2075 = vsel %vm2074, %v2071, %v1950
      %vm2076 = vcmp.lt.s32.totalorder %v2073, %v1952
      %v2077 = vsel %vm2076, %v2073, %v1952
      %vm2078 = vcmp.lt.s32.totalorder %v2075, %v1954
      %v2079 = vsel %vm2078, %v2075, %v1954
      %vm2080 = vcmp.lt.s32.totalorder %v2077, %v1956
      %v2081 = vsel %vm2080, %v2077, %v1956
      %vm2082 = vcmp.lt.s32.totalorder %v2079, %v1958
      %v2083 = vsel %vm2082, %v2079, %v1958
      %vm2084 = vcmp.lt.s32.totalorder %v2081, %v1960
      %v2085 = vsel %vm2084, %v2081, %v1960
      %vm2086 = vcmp.lt.s32.totalorder %v2083, %v1962
      %v2087 = vsel %vm2086, %v2083, %v1962
      %vm2088 = vcmp.lt.s32.totalorder %v2085, %v1964
      %v2089 = vsel %vm2088, %v2085, %v1964
      %vm2090 = vcmp.lt.s32.totalorder %v2087, %v1966
      %v2091 = vsel %vm2090, %v2087, %v1966
      %vm2092 = vcmp.lt.s32.totalorder %v2089, %v1968
      %v2093 = vsel %vm2092, %v2089, %v1968
      %vm2094 = vcmp.lt.s32.totalorder %v2091, %v1970
      %v2095 = vsel %vm2094, %v2091, %v1970
      %vm2096 = vcmp.lt.s32.totalorder %v2093, %v1972
      %v2097 = vsel %vm2096, %v2093, %v1972
      %vm2098 = vcmp.lt.s32.totalorder %v2095, %v1974
      %v2099 = vsel %vm2098, %v2095, %v1974
      %vm2100 = vcmp.lt.s32.totalorder %v2097, %v1976
      %v2101 = vsel %vm2100, %v2097, %v1976
      %vm2102 = vcmp.lt.s32.totalorder %v2099, %v1978
      %v2103 = vsel %vm2102, %v2099, %v1978
      %vm2104 = vcmp.lt.s32.totalorder %v2101, %v1980
      %v2105 = vsel %vm2104, %v2101, %v1980
      %vm2106 = vcmp.lt.s32.totalorder %v2103, %v1982
      %v2107 = vsel %vm2106, %v2103, %v1982
      %vm2108 = vcmp.lt.s32.totalorder %v2105, %v1984
      %v2109 = vsel %vm2108, %v2105, %v1984
      %vm2110 = vcmp.lt.s32.totalorder %v2107, %v1986
      %v2111 = vsel %vm2110, %v2107, %v1986
      %vm2112 = vcmp.lt.s32.totalorder %v2109, %v1988
      %v2113 = vsel %vm2112, %v2109, %v1988
      %vm2114 = vcmp.lt.s32.totalorder %v2111, %v1990
      %v2115 = vsel %vm2114, %v2111, %v1990
      %vm2116 = vcmp.lt.s32.totalorder %v2113, %v1992
      %v2117 = vsel %vm2116, %v2113, %v1992
      %vm2118 = vcmp.lt.s32.totalorder %v2115, %v1994
      %v2119 = vsel %vm2118, %v2115, %v1994
      %vm2120 = vcmp.lt.s32.totalorder %v2117, %v1996
      %v2121 = vsel %vm2120, %v2117, %v1996
      %vm2122 = vcmp.lt.s32.totalorder %v2119, %v1998
      %v2123 = vsel %vm2122, %v2119, %v1998
      %vm2124 = vcmp.lt.s32.totalorder %v2121, %v2000
      %v2125 = vsel %vm2124, %v2121, %v2000
      %vm2126 = vcmp.lt.s32.totalorder %v2123, %v2002
      %v2127 = vsel %vm2126, %v2123, %v2002
      %vm2128 = vcmp.lt.s32.totalorder %v2125, %v2004
      %v2129 = vsel %vm2128, %v2125, %v2004
      %vm2130 = vcmp.lt.s32.totalorder %v2127, %v2006
      %v2131 = vsel %vm2130, %v2127, %v2006
      %vm2132 = vcmp.lt.s32.totalorder %v2129, %v2008
      %v2133 = vsel %vm2132, %v2129, %v2008
      %vm2134 = vcmp.lt.s32.totalorder %v2131, %v2010
      %v2135 = vsel %vm2134, %v2131, %v2010
      %vm2136 = vcmp.lt.s32.totalorder %v2133, %v2012
      %v2137 = vsel %vm2136, %v2133, %v2012
      %vm2138 = vcmp.lt.s32.totalorder %v2135, %v2014
      %v2139 = vsel %vm2138, %v2135, %v2014
      %vm2140 = vcmp.lt.s32.totalorder %v2137, %v2016
      %v2141 = vsel %vm2140, %v2137, %v2016
      %vm2142 = vcmp.lt.s32.totalorder %v2139, %v2018
      %v2143 = vsel %vm2142, %v2139, %v2018
      %vm2144 = vcmp.lt.s32.totalorder %v2141, %v2020
      %v2145 = vsel %vm2144, %v2141, %v2020
      %vm2146 = vcmp.lt.s32.totalorder %v2143, %v2145
      %v2147 = vsel %vm2146, %v2143, %v2145
      %v2148 = vrot.slane %v2147, 4
      %vm2149 = vcmp.lt.s32.totalorder %v2147, %v2148
      %v2150 = vsel %vm2149, %v2147, %v2148
      %v2151 = vrot.slane %v2150, 2
      %vm2152 = vcmp.lt.s32.totalorder %v2150, %v2151
      %v2153 = vsel %vm2152, %v2150, %v2151
      %v2154 = vrot.slane %v2153, 1
      %vm2155 = vcmp.lt.s32.totalorder %v2153, %v2154
      %v2156 = vsel %vm2155, %v2153, %v2154
      %vm2157 = vcmp.lt.s32.totalorder %v1895, %v1899
      %v2158 = vsel %vm2157, %v1895, %v1899
      %vm2159 = vcmp.lt.s32.totalorder %v1897, %v1901
      %v2160 = vsel %vm2159, %v1897, %v1901
      %vm2161 = vcmp.lt.s32.totalorder %v2158, %v1903
      %v2162 = vsel %vm2161, %v2158, %v1903
      %vm2163 = vcmp.lt.s32.totalorder %v2160, %v1905
      %v2164 = vsel %vm2163, %v2160, %v1905
      %vm2165 = vcmp.lt.s32.totalorder %v2162, %v1907
      %v2166 = vsel %vm2165, %v2162, %v1907
      %vm2167 = vcmp.lt.s32.totalorder %v2164, %v1909
      %v2168 = vsel %vm2167, %v2164, %v1909
      %vm2169 = vcmp.lt.s32.totalorder %v2166, %v1911
      %v2170 = vsel %vm2169, %v2166, %v1911
      %vm2171 = vcmp.lt.s32.totalorder %v2168, %v1913
      %v2172 = vsel %vm2171, %v2168, %v1913
      %vm2173 = vcmp.lt.s32.totalorder %v2170, %v1915
      %v2174 = vsel %vm2173, %v2170, %v1915
      %vm2175 = vcmp.lt.s32.totalorder %v2172, %v1917
      %v2176 = vsel %vm2175, %v2172, %v1917
      %vm2177 = vcmp.lt.s32.totalorder %v2174, %v1919
      %v2178 = vsel %vm2177, %v2174, %v1919
      %vm2179 = vcmp.lt.s32.totalorder %v2176, %v1921
      %v2180 = vsel %vm2179, %v2176, %v1921
      %vm2181 = vcmp.lt.s32.totalorder %v2178, %v1923
      %v2182 = vsel %vm2181, %v2178, %v1923
      %vm2183 = vcmp.lt.s32.totalorder %v2180, %v1925
      %v2184 = vsel %vm2183, %v2180, %v1925
      %vm2185 = vcmp.lt.s32.totalorder %v2182, %v1927
      %v2186 = vsel %vm2185, %v2182, %v1927
      %vm2187 = vcmp.lt.s32.totalorder %v2184, %v1929
      %v2188 = vsel %vm2187, %v2184, %v1929
      %vm2189 = vcmp.lt.s32.totalorder %v2186, %v1931
      %v2190 = vsel %vm2189, %v2186, %v1931
      %vm2191 = vcmp.lt.s32.totalorder %v2188, %v1933
      %v2192 = vsel %vm2191, %v2188, %v1933
      %vm2193 = vcmp.lt.s32.totalorder %v2190, %v1935
      %v2194 = vsel %vm2193, %v2190, %v1935
      %vm2195 = vcmp.lt.s32.totalorder %v2192, %v1937
      %v2196 = vsel %vm2195, %v2192, %v1937
      %vm2197 = vcmp.lt.s32.totalorder %v2194, %v1939
      %v2198 = vsel %vm2197, %v2194, %v1939
      %vm2199 = vcmp.lt.s32.totalorder %v2196, %v1941
      %v2200 = vsel %vm2199, %v2196, %v1941
      %vm2201 = vcmp.lt.s32.totalorder %v2198, %v1943
      %v2202 = vsel %vm2201, %v2198, %v1943
      %vm2203 = vcmp.lt.s32.totalorder %v2200, %v1945
      %v2204 = vsel %vm2203, %v2200, %v1945
      %vm2205 = vcmp.lt.s32.totalorder %v2202, %v1947
      %v2206 = vsel %vm2205, %v2202, %v1947
      %vm2207 = vcmp.lt.s32.totalorder %v2204, %v1949
      %v2208 = vsel %vm2207, %v2204, %v1949
      %vm2209 = vcmp.lt.s32.totalorder %v2206, %v1951
      %v2210 = vsel %vm2209, %v2206, %v1951
      %vm2211 = vcmp.lt.s32.totalorder %v2208, %v1953
      %v2212 = vsel %vm2211, %v2208, %v1953
      %vm2213 = vcmp.lt.s32.totalorder %v2210, %v1955
      %v2214 = vsel %vm2213, %v2210, %v1955
      %vm2215 = vcmp.lt.s32.totalorder %v2212, %v1957
      %v2216 = vsel %vm2215, %v2212, %v1957
      %vm2217 = vcmp.lt.s32.totalorder %v2214, %v1959
      %v2218 = vsel %vm2217, %v2214, %v1959
      %vm2219 = vcmp.lt.s32.totalorder %v2216, %v1961
      %v2220 = vsel %vm2219, %v2216, %v1961
      %vm2221 = vcmp.lt.s32.totalorder %v2218, %v1963
      %v2222 = vsel %vm2221, %v2218, %v1963
      %vm2223 = vcmp.lt.s32.totalorder %v2220, %v1965
      %v2224 = vsel %vm2223, %v2220, %v1965
      %vm2225 = vcmp.lt.s32.totalorder %v2222, %v1967
      %v2226 = vsel %vm2225, %v2222, %v1967
      %vm2227 = vcmp.lt.s32.totalorder %v2224, %v1969
      %v2228 = vsel %vm2227, %v2224, %v1969
      %vm2229 = vcmp.lt.s32.totalorder %v2226, %v1971
      %v2230 = vsel %vm2229, %v2226, %v1971
      %vm2231 = vcmp.lt.s32.totalorder %v2228, %v1973
      %v2232 = vsel %vm2231, %v2228, %v1973
      %vm2233 = vcmp.lt.s32.totalorder %v2230, %v1975
      %v2234 = vsel %vm2233, %v2230, %v1975
      %vm2235 = vcmp.lt.s32.totalorder %v2232, %v1977
      %v2236 = vsel %vm2235, %v2232, %v1977
      %vm2237 = vcmp.lt.s32.totalorder %v2234, %v1979
      %v2238 = vsel %vm2237, %v2234, %v1979
      %vm2239 = vcmp.lt.s32.totalorder %v2236, %v1981
      %v2240 = vsel %vm2239, %v2236, %v1981
      %vm2241 = vcmp.lt.s32.totalorder %v2238, %v1983
      %v2242 = vsel %vm2241, %v2238, %v1983
      %vm2243 = vcmp.lt.s32.totalorder %v2240, %v1985
      %v2244 = vsel %vm2243, %v2240, %v1985
      %vm2245 = vcmp.lt.s32.totalorder %v2242, %v1987
      %v2246 = vsel %vm2245, %v2242, %v1987
      %vm2247 = vcmp.lt.s32.totalorder %v2244, %v1989
      %v2248 = vsel %vm2247, %v2244, %v1989
      %vm2249 = vcmp.lt.s32.totalorder %v2246, %v1991
      %v2250 = vsel %vm2249, %v2246, %v1991
      %vm2251 = vcmp.lt.s32.totalorder %v2248, %v1993
      %v2252 = vsel %vm2251, %v2248, %v1993
      %vm2253 = vcmp.lt.s32.totalorder %v2250, %v1995
      %v2254 = vsel %vm2253, %v2250, %v1995
      %vm2255 = vcmp.lt.s32.totalorder %v2252, %v1997
      %v2256 = vsel %vm2255, %v2252, %v1997
      %vm2257 = vcmp.lt.s32.totalorder %v2254, %v1999
      %v2258 = vsel %vm2257, %v2254, %v1999
      %vm2259 = vcmp.lt.s32.totalorder %v2256, %v2001
      %v2260 = vsel %vm2259, %v2256, %v2001
      %vm2261 = vcmp.lt.s32.totalorder %v2258, %v2003
      %v2262 = vsel %vm2261, %v2258, %v2003
      %vm2263 = vcmp.lt.s32.totalorder %v2260, %v2005
      %v2264 = vsel %vm2263, %v2260, %v2005
      %vm2265 = vcmp.lt.s32.totalorder %v2262, %v2007
      %v2266 = vsel %vm2265, %v2262, %v2007
      %vm2267 = vcmp.lt.s32.totalorder %v2264, %v2009
      %v2268 = vsel %vm2267, %v2264, %v2009
      %vm2269 = vcmp.lt.s32.totalorder %v2266, %v2011
      %v2270 = vsel %vm2269, %v2266, %v2011
      %vm2271 = vcmp.lt.s32.totalorder %v2268, %v2013
      %v2272 = vsel %vm2271, %v2268, %v2013
      %vm2273 = vcmp.lt.s32.totalorder %v2270, %v2015
      %v2274 = vsel %vm2273, %v2270, %v2015
      %vm2275 = vcmp.lt.s32.totalorder %v2272, %v2017
      %v2276 = vsel %vm2275, %v2272, %v2017
      %vm2277 = vcmp.lt.s32.totalorder %v2274, %v2019
      %v2278 = vsel %vm2277, %v2274, %v2019
      %vm2279 = vcmp.lt.s32.totalorder %v2276, %v2021
      %v2280 = vsel %vm2279, %v2276, %v2021
      %vm2281 = vcmp.lt.s32.totalorder %v2278, %v2280
      %v2282 = vsel %vm2281, %v2278, %v2280
      %v2283 = vrot.slane %v2282, 4
      %vm2284 = vcmp.lt.s32.totalorder %v2282, %v2283
      %v2285 = vsel %vm2284, %v2282, %v2283
      %v2286 = vrot.slane %v2285, 2
      %vm2287 = vcmp.lt.s32.totalorder %v2285, %v2286
      %v2288 = vsel %vm2287, %v2285, %v2286
      %v2289 = vrot.slane %v2288, 1
      %vm2290 = vcmp.lt.s32.totalorder %v2288, %v2289
      %v2291 = vsel %vm2290, %v2288, %v2289
      %v2292 = vcombine.low %v2156, %v2291
      %v2294 = vunpack.c.l.s4 1966171168
      %v2295 = vunpack.c.0.s8 %v2294
      %v2296 = vlaneseq
      %v2297 = vshrl.u32 %v2296, 7
      %v2298 = vsub.s32 %v2295, %v2297
      %v2299 = vrot.slane %v2292, %v2298
      %v2301 = vunpack.c.l.s4 1966171168
      %v2302 = vunpack.c.0.s8 %v2301
      %v2303 = vlaneseq
      %v2304 = vshrl.u32 %v2303, 7
      %v2305 = vsub.s32 %v2302, %v2304
      %v2306 = vrot.slane %v2299, %v2305
      %v2307 = vlaneseq
      %vm2308 = vcmp.ge.s32.totalorder %v2307, 0
      %vm2309 = vcmp.lt.s32.totalorder %v2307, 256
      %vm2310 = vmand %vm2308, %vm2309
      %2311 = vst.msk [vmem:[%s539] sm:$0x3] %vm2310, %v2306
      %vm2312 = vcmp.eq.s32.totalorder %v1564, %v2156
      %vm2313 = vcmp.eq.s32.totalorder %v1564, %v2291
      %vm2314 = vcmp.eq.s32.totalorder %v1565, %v2156
      %vm2315 = vcmp.eq.s32.totalorder %v1565, %v2291
      %vm2316 = vcmp.eq.s32.totalorder %v1566, %v2156
      %vm2317 = vcmp.eq.s32.totalorder %v1566, %v2291
      %vm2318 = vcmp.eq.s32.totalorder %v1567, %v2156
      %vm2319 = vcmp.eq.s32.totalorder %v1567, %v2291
      %vm2320 = vcmp.eq.s32.totalorder %v1568, %v2156
      %vm2321 = vcmp.eq.s32.totalorder %v1568, %v2291
      %vm2322 = vcmp.eq.s32.totalorder %v1569, %v2156
      %vm2323 = vcmp.eq.s32.totalorder %v1569, %v2291
      %vm2324 = vcmp.eq.s32.totalorder %v1570, %v2156
      %vm2325 = vcmp.eq.s32.totalorder %v1570, %v2291
      %vm2326 = vcmp.eq.s32.totalorder %v1571, %v2156
      %vm2327 = vcmp.eq.s32.totalorder %v1571, %v2291
      %vm2328 = vcmp.eq.s32.totalorder %v1572, %v2156
      %vm2329 = vcmp.eq.s32.totalorder %v1572, %v2291
      %vm2330 = vcmp.eq.s32.totalorder %v1573, %v2156
      %vm2331 = vcmp.eq.s32.totalorder %v1573, %v2291
      %vm2332 = vcmp.eq.s32.totalorder %v1574, %v2156
      %vm2333 = vcmp.eq.s32.totalorder %v1574, %v2291
      %vm2334 = vcmp.eq.s32.totalorder %v1575, %v2156
      %vm2335 = vcmp.eq.s32.totalorder %v1575, %v2291
      %vm2336 = vcmp.eq.s32.totalorder %v1576, %v2156
      %vm2337 = vcmp.eq.s32.totalorder %v1576, %v2291
      %vm2338 = vcmp.eq.s32.totalorder %v1577, %v2156
      %vm2339 = vcmp.eq.s32.totalorder %v1577, %v2291
      %vm2340 = vcmp.eq.s32.totalorder %v1578, %v2156
      %vm2341 = vcmp.eq.s32.totalorder %v1578, %v2291
      %vm2342 = vcmp.eq.s32.totalorder %v1579, %v2156
      %vm2343 = vcmp.eq.s32.totalorder %v1579, %v2291
      %vm2344 = vcmp.eq.s32.totalorder %v1580, %v2156
      %vm2345 = vcmp.eq.s32.totalorder %v1580, %v2291
      %vm2346 = vcmp.eq.s32.totalorder %v1581, %v2156
      %vm2347 = vcmp.eq.s32.totalorder %v1581, %v2291
      %vm2348 = vcmp.eq.s32.totalorder %v1582, %v2156
      %vm2349 = vcmp.eq.s32.totalorder %v1582, %v2291
      %vm2350 = vcmp.eq.s32.totalorder %v1583, %v2156
      %vm2351 = vcmp.eq.s32.totalorder %v1583, %v2291
      %vm2352 = vcmp.eq.s32.totalorder %v1584, %v2156
      %vm2353 = vcmp.eq.s32.totalorder %v1584, %v2291
      %vm2354 = vcmp.eq.s32.totalorder %v1585, %v2156
      %vm2355 = vcmp.eq.s32.totalorder %v1585, %v2291
      %vm2356 = vcmp.eq.s32.totalorder %v1586, %v2156
      %vm2357 = vcmp.eq.s32.totalorder %v1586, %v2291
      %vm2358 = vcmp.eq.s32.totalorder %v1587, %v2156
      %vm2359 = vcmp.eq.s32.totalorder %v1587, %v2291
      %vm2360 = vcmp.eq.s32.totalorder %v1588, %v2156
      %vm2361 = vcmp.eq.s32.totalorder %v1588, %v2291
      %vm2362 = vcmp.eq.s32.totalorder %v1589, %v2156
      %vm2363 = vcmp.eq.s32.totalorder %v1589, %v2291
      %vm2364 = vcmp.eq.s32.totalorder %v1590, %v2156
      %vm2365 = vcmp.eq.s32.totalorder %v1590, %v2291
      %vm2366 = vcmp.eq.s32.totalorder %v1591, %v2156
      %vm2367 = vcmp.eq.s32.totalorder %v1591, %v2291
      %vm2368 = vcmp.eq.s32.totalorder %v1592, %v2156
      %vm2369 = vcmp.eq.s32.totalorder %v1592, %v2291
      %vm2370 = vcmp.eq.s32.totalorder %v1593, %v2156
      %vm2371 = vcmp.eq.s32.totalorder %v1593, %v2291
      %vm2372 = vcmp.eq.s32.totalorder %v1594, %v2156
      %vm2373 = vcmp.eq.s32.totalorder %v1594, %v2291
      %vm2374 = vcmp.eq.s32.totalorder %v1595, %v2156
      %vm2375 = vcmp.eq.s32.totalorder %v1595, %v2291
      %vm2376 = vcmp.eq.s32.totalorder %v1596, %v2156
      %vm2377 = vcmp.eq.s32.totalorder %v1596, %v2291
      %vm2378 = vcmp.eq.s32.totalorder %v1597, %v2156
      %vm2379 = vcmp.eq.s32.totalorder %v1597, %v2291
      %vm2380 = vcmp.eq.s32.totalorder %v1598, %v2156
      %vm2381 = vcmp.eq.s32.totalorder %v1598, %v2291
      %vm2382 = vcmp.eq.s32.totalorder %v1599, %v2156
      %vm2383 = vcmp.eq.s32.totalorder %v1599, %v2291
      %vm2384 = vcmp.eq.s32.totalorder %v1600, %v2156
      %vm2385 = vcmp.eq.s32.totalorder %v1600, %v2291
      %vm2386 = vcmp.eq.s32.totalorder %v1601, %v2156
      %vm2387 = vcmp.eq.s32.totalorder %v1601, %v2291
      %vm2388 = vcmp.eq.s32.totalorder %v1602, %v2156
      %vm2389 = vcmp.eq.s32.totalorder %v1602, %v2291
      %vm2390 = vcmp.eq.s32.totalorder %v1603, %v2156
      %vm2391 = vcmp.eq.s32.totalorder %v1603, %v2291
      %vm2392 = vcmp.eq.s32.totalorder %v1604, %v2156
      %vm2393 = vcmp.eq.s32.totalorder %v1604, %v2291
      %vm2394 = vcmp.eq.s32.totalorder %v1605, %v2156
      %vm2395 = vcmp.eq.s32.totalorder %v1605, %v2291
      %vm2396 = vcmp.eq.s32.totalorder %v1606, %v2156
      %vm2397 = vcmp.eq.s32.totalorder %v1606, %v2291
      %vm2398 = vcmp.eq.s32.totalorder %v1607, %v2156
      %vm2399 = vcmp.eq.s32.totalorder %v1607, %v2291
      %vm2400 = vcmp.eq.s32.totalorder %v1608, %v2156
      %vm2401 = vcmp.eq.s32.totalorder %v1608, %v2291
      %vm2402 = vcmp.eq.s32.totalorder %v1609, %v2156
      %vm2403 = vcmp.eq.s32.totalorder %v1609, %v2291
      %vm2404 = vcmp.eq.s32.totalorder %v1610, %v2156
      %vm2405 = vcmp.eq.s32.totalorder %v1610, %v2291
      %vm2406 = vcmp.eq.s32.totalorder %v1611, %v2156
      %vm2407 = vcmp.eq.s32.totalorder %v1611, %v2291
      %vm2408 = vcmp.eq.s32.totalorder %v1612, %v2156
      %vm2409 = vcmp.eq.s32.totalorder %v1612, %v2291
      %vm2410 = vcmp.eq.s32.totalorder %v1613, %v2156
      %vm2411 = vcmp.eq.s32.totalorder %v1613, %v2291
      %vm2412 = vcmp.eq.s32.totalorder %v1614, %v2156
      %vm2413 = vcmp.eq.s32.totalorder %v1614, %v2291
      %vm2414 = vcmp.eq.s32.totalorder %v1615, %v2156
      %vm2415 = vcmp.eq.s32.totalorder %v1615, %v2291
      %vm2416 = vcmp.eq.s32.totalorder %v1616, %v2156
      %vm2417 = vcmp.eq.s32.totalorder %v1616, %v2291
      %vm2418 = vcmp.eq.s32.totalorder %v1617, %v2156
      %vm2419 = vcmp.eq.s32.totalorder %v1617, %v2291
      %vm2420 = vcmp.eq.s32.totalorder %v1618, %v2156
      %vm2421 = vcmp.eq.s32.totalorder %v1618, %v2291
      %vm2422 = vcmp.eq.s32.totalorder %v1619, %v2156
      %vm2423 = vcmp.eq.s32.totalorder %v1619, %v2291
      %vm2424 = vcmp.eq.s32.totalorder %v1620, %v2156
      %vm2425 = vcmp.eq.s32.totalorder %v1620, %v2291
      %vm2426 = vcmp.eq.s32.totalorder %v1621, %v2156
      %vm2427 = vcmp.eq.s32.totalorder %v1621, %v2291
      %vm2428 = vcmp.eq.s32.totalorder %v1622, %v2156
      %vm2429 = vcmp.eq.s32.totalorder %v1622, %v2291
      %vm2430 = vcmp.eq.s32.totalorder %v1623, %v2156
      %vm2431 = vcmp.eq.s32.totalorder %v1623, %v2291
      %vm2432 = vcmp.eq.s32.totalorder %v1624, %v2156
      %vm2433 = vcmp.eq.s32.totalorder %v1624, %v2291
      %vm2434 = vcmp.eq.s32.totalorder %v1625, %v2156
      %vm2435 = vcmp.eq.s32.totalorder %v1625, %v2291
      %vm2436 = vcmp.eq.s32.totalorder %v1626, %v2156
      %vm2437 = vcmp.eq.s32.totalorder %v1626, %v2291
      %vm2438 = vcmp.eq.s32.totalorder %v1627, %v2156
      %vm2439 = vcmp.eq.s32.totalorder %v1627, %v2291
      %v2440 = vsel %vm2312, 1, 0
      %v2441 = vsel %vm2313, 1, 0
      %v2442 = vsel %vm2314, 1, 0
      %v2443 = vsel %vm2315, 1, 0
      %v2444 = vsel %vm2316, 1, 0
      %v2445 = vsel %vm2317, 1, 0
      %v2446 = vsel %vm2318, 1, 0
      %v2447 = vsel %vm2319, 1, 0
      %v2448 = vsel %vm2320, 1, 0
      %v2449 = vsel %vm2321, 1, 0
      %v2450 = vsel %vm2322, 1, 0
      %v2451 = vsel %vm2323, 1, 0
      %v2452 = vsel %vm2324, 1, 0
      %v2453 = vsel %vm2325, 1, 0
      %v2454 = vsel %vm2326, 1, 0
      %v2455 = vsel %vm2327, 1, 0
      %v2456 = vsel %vm2328, 1, 0
      %v2457 = vsel %vm2329, 1, 0
      %v2458 = vsel %vm2330, 1, 0
      %v2459 = vsel %vm2331, 1, 0
      %v2460 = vsel %vm2332, 1, 0
      %v2461 = vsel %vm2333, 1, 0
      %v2462 = vsel %vm2334, 1, 0
      %v2463 = vsel %vm2335, 1, 0
      %v2464 = vsel %vm2336, 1, 0
      %v2465 = vsel %vm2337, 1, 0
      %v2466 = vsel %vm2338, 1, 0
      %v2467 = vsel %vm2339, 1, 0
      %v2468 = vsel %vm2340, 1, 0
      %v2469 = vsel %vm2341, 1, 0
      %v2470 = vsel %vm2342, 1, 0
      %v2471 = vsel %vm2343, 1, 0
      %v2472 = vsel %vm2344, 1, 0
      %v2473 = vsel %vm2345, 1, 0
      %v2474 = vsel %vm2346, 1, 0
      %v2475 = vsel %vm2347, 1, 0
      %v2476 = vsel %vm2348, 1, 0
      %v2477 = vsel %vm2349, 1, 0
      %v2478 = vsel %vm2350, 1, 0
      %v2479 = vsel %vm2351, 1, 0
      %v2480 = vsel %vm2352, 1, 0
      %v2481 = vsel %vm2353, 1, 0
      %v2482 = vsel %vm2354, 1, 0
      %v2483 = vsel %vm2355, 1, 0
      %v2484 = vsel %vm2356, 1, 0
      %v2485 = vsel %vm2357, 1, 0
      %v2486 = vsel %vm2358, 1, 0
      %v2487 = vsel %vm2359, 1, 0
      %v2488 = vsel %vm2360, 1, 0
      %v2489 = vsel %vm2361, 1, 0
      %v2490 = vsel %vm2362, 1, 0
      %v2491 = vsel %vm2363, 1, 0
      %v2492 = vsel %vm2364, 1, 0
      %v2493 = vsel %vm2365, 1, 0
      %v2494 = vsel %vm2366, 1, 0
      %v2495 = vsel %vm2367, 1, 0
      %v2496 = vsel %vm2368, 1, 0
      %v2497 = vsel %vm2369, 1, 0
      %v2498 = vsel %vm2370, 1, 0
      %v2499 = vsel %vm2371, 1, 0
      %v2500 = vsel %vm2372, 1, 0
      %v2501 = vsel %vm2373, 1, 0
      %v2502 = vsel %vm2374, 1, 0
      %v2503 = vsel %vm2375, 1, 0
      %v2504 = vsel %vm2376, 1, 0
      %v2505 = vsel %vm2377, 1, 0
      %v2506 = vsel %vm2378, 1, 0
      %v2507 = vsel %vm2379, 1, 0
      %v2508 = vsel %vm2380, 1, 0
      %v2509 = vsel %vm2381, 1, 0
      %v2510 = vsel %vm2382, 1, 0
      %v2511 = vsel %vm2383, 1, 0
      %v2512 = vsel %vm2384, 1, 0
      %v2513 = vsel %vm2385, 1, 0
      %v2514 = vsel %vm2386, 1, 0
      %v2515 = vsel %vm2387, 1, 0
      %v2516 = vsel %vm2388, 1, 0
      %v2517 = vsel %vm2389, 1, 0
      %v2518 = vsel %vm2390, 1, 0
      %v2519 = vsel %vm2391, 1, 0
      %v2520 = vsel %vm2392, 1, 0
      %v2521 = vsel %vm2393, 1, 0
      %v2522 = vsel %vm2394, 1, 0
      %v2523 = vsel %vm2395, 1, 0
      %v2524 = vsel %vm2396, 1, 0
      %v2525 = vsel %vm2397, 1, 0
      %v2526 = vsel %vm2398, 1, 0
      %v2527 = vsel %vm2399, 1, 0
      %v2528 = vsel %vm2400, 1, 0
      %v2529 = vsel %vm2401, 1, 0
      %v2530 = vsel %vm2402, 1, 0
      %v2531 = vsel %vm2403, 1, 0
      %v2532 = vsel %vm2404, 1, 0
      %v2533 = vsel %vm2405, 1, 0
      %v2534 = vsel %vm2406, 1, 0
      %v2535 = vsel %vm2407, 1, 0
      %v2536 = vsel %vm2408, 1, 0
      %v2537 = vsel %vm2409, 1, 0
      %v2538 = vsel %vm2410, 1, 0
      %v2539 = vsel %vm2411, 1, 0
      %v2540 = vsel %vm2412, 1, 0
      %v2541 = vsel %vm2413, 1, 0
      %v2542 = vsel %vm2414, 1, 0
      %v2543 = vsel %vm2415, 1, 0
      %v2544 = vsel %vm2416, 1, 0
      %v2545 = vsel %vm2417, 1, 0
      %v2546 = vsel %vm2418, 1, 0
      %v2547 = vsel %vm2419, 1, 0
      %v2548 = vsel %vm2420, 1, 0
      %v2549 = vsel %vm2421, 1, 0
      %v2550 = vsel %vm2422, 1, 0
      %v2551 = vsel %vm2423, 1, 0
      %v2552 = vsel %vm2424, 1, 0
      %v2553 = vsel %vm2425, 1, 0
      %v2554 = vsel %vm2426, 1, 0
      %v2555 = vsel %vm2427, 1, 0
      %v2556 = vsel %vm2428, 1, 0
      %v2557 = vsel %vm2429, 1, 0
      %v2558 = vsel %vm2430, 1, 0
      %v2559 = vsel %vm2431, 1, 0
      %v2560 = vsel %vm2432, 1, 0
      %v2561 = vsel %vm2433, 1, 0
      %v2562 = vsel %vm2434, 1, 0
      %v2563 = vsel %vm2435, 1, 0
      %v2564 = vsel %vm2436, 1, 0
      %v2565 = vsel %vm2437, 1, 0
      %v2566 = vsel %vm2438, 1, 0
      %v2567 = vsel %vm2439, 1, 0
      %v2568 = vcvt.s32.f32 %v2440
      %v2569 = vcvt.s32.f32 %v2441
      %v2570 = vcvt.s32.f32 %v2442
      %v2571 = vcvt.s32.f32 %v2443
      %v2572 = vcvt.s32.f32 %v2444
      %v2573 = vcvt.s32.f32 %v2445
      %v2574 = vcvt.s32.f32 %v2446
      %v2575 = vcvt.s32.f32 %v2447
      %v2576 = vcvt.s32.f32 %v2448
      %v2577 = vcvt.s32.f32 %v2449
      %v2578 = vcvt.s32.f32 %v2450
      %v2579 = vcvt.s32.f32 %v2451
      %v2580 = vcvt.s32.f32 %v2452
      %v2581 = vcvt.s32.f32 %v2453
      %v2582 = vcvt.s32.f32 %v2454
      %v2583 = vcvt.s32.f32 %v2455
      %v2584 = vcvt.s32.f32 %v2456
      %v2585 = vcvt.s32.f32 %v2457
      %v2586 = vcvt.s32.f32 %v2458
      %v2587 = vcvt.s32.f32 %v2459
      %v2588 = vcvt.s32.f32 %v2460
      %v2589 = vcvt.s32.f32 %v2461
      %v2590 = vcvt.s32.f32 %v2462
      %v2591 = vcvt.s32.f32 %v2463
      %v2592 = vcvt.s32.f32 %v2464
      %v2593 = vcvt.s32.f32 %v2465
      %v2594 = vcvt.s32.f32 %v2466
      %v2595 = vcvt.s32.f32 %v2467
      %v2596 = vcvt.s32.f32 %v2468
      %v2597 = vcvt.s32.f32 %v2469
      %v2598 = vcvt.s32.f32 %v2470
      %v2599 = vcvt.s32.f32 %v2471
      %v2600 = vcvt.s32.f32 %v2472
      %v2601 = vcvt.s32.f32 %v2473
      %v2602 = vcvt.s32.f32 %v2474
      %v2603 = vcvt.s32.f32 %v2475
      %v2604 = vcvt.s32.f32 %v2476
      %v2605 = vcvt.s32.f32 %v2477
      %v2606 = vcvt.s32.f32 %v2478
      %v2607 = vcvt.s32.f32 %v2479
      %v2608 = vcvt.s32.f32 %v2480
      %v2609 = vcvt.s32.f32 %v2481
      %v2610 = vcvt.s32.f32 %v2482
      %v2611 = vcvt.s32.f32 %v2483
      %v2612 = vcvt.s32.f32 %v2484
      %v2613 = vcvt.s32.f32 %v2485
      %v2614 = vcvt.s32.f32 %v2486
      %v2615 = vcvt.s32.f32 %v2487
      %v2616 = vcvt.s32.f32 %v2488
      %v2617 = vcvt.s32.f32 %v2489
      %v2618 = vcvt.s32.f32 %v2490
      %v2619 = vcvt.s32.f32 %v2491
      %v2620 = vcvt.s32.f32 %v2492
      %v2621 = vcvt.s32.f32 %v2493
      %v2622 = vcvt.s32.f32 %v2494
      %v2623 = vcvt.s32.f32 %v2495
      %v2624 = vcvt.s32.f32 %v2496
      %v2625 = vcvt.s32.f32 %v2497
      %v2626 = vcvt.s32.f32 %v2498
      %v2627 = vcvt.s32.f32 %v2499
      %v2628 = vcvt.s32.f32 %v2500
      %v2629 = vcvt.s32.f32 %v2501
      %v2630 = vcvt.s32.f32 %v2502
      %v2631 = vcvt.s32.f32 %v2503
      %v2632 = vcvt.s32.f32 %v2504
      %v2633 = vcvt.s32.f32 %v2505
      %v2634 = vcvt.s32.f32 %v2506
      %v2635 = vcvt.s32.f32 %v2507
      %v2636 = vcvt.s32.f32 %v2508
      %v2637 = vcvt.s32.f32 %v2509
      %v2638 = vcvt.s32.f32 %v2510
      %v2639 = vcvt.s32.f32 %v2511
      %v2640 = vcvt.s32.f32 %v2512
      %v2641 = vcvt.s32.f32 %v2513
      %v2642 = vcvt.s32.f32 %v2514
      %v2643 = vcvt.s32.f32 %v2515
      %v2644 = vcvt.s32.f32 %v2516
      %v2645 = vcvt.s32.f32 %v2517
      %v2646 = vcvt.s32.f32 %v2518
      %v2647 = vcvt.s32.f32 %v2519
      %v2648 = vcvt.s32.f32 %v2520
      %v2649 = vcvt.s32.f32 %v2521
      %v2650 = vcvt.s32.f32 %v2522
      %v2651 = vcvt.s32.f32 %v2523
      %v2652 = vcvt.s32.f32 %v2524
      %v2653 = vcvt.s32.f32 %v2525
      %v2654 = vcvt.s32.f32 %v2526
      %v2655 = vcvt.s32.f32 %v2527
      %v2656 = vcvt.s32.f32 %v2528
      %v2657 = vcvt.s32.f32 %v2529
      %v2658 = vcvt.s32.f32 %v2530
      %v2659 = vcvt.s32.f32 %v2531
      %v2660 = vcvt.s32.f32 %v2532
      %v2661 = vcvt.s32.f32 %v2533
      %v2662 = vcvt.s32.f32 %v2534
      %v2663 = vcvt.s32.f32 %v2535
      %v2664 = vcvt.s32.f32 %v2536
      %v2665 = vcvt.s32.f32 %v2537
      %v2666 = vcvt.s32.f32 %v2538
      %v2667 = vcvt.s32.f32 %v2539
      %v2668 = vcvt.s32.f32 %v2540
      %v2669 = vcvt.s32.f32 %v2541
      %v2670 = vcvt.s32.f32 %v2542
      %v2671 = vcvt.s32.f32 %v2543
      %v2672 = vcvt.s32.f32 %v2544
      %v2673 = vcvt.s32.f32 %v2545
      %v2674 = vcvt.s32.f32 %v2546
      %v2675 = vcvt.s32.f32 %v2547
      %v2676 = vcvt.s32.f32 %v2548
      %v2677 = vcvt.s32.f32 %v2549
      %v2678 = vcvt.s32.f32 %v2550
      %v2679 = vcvt.s32.f32 %v2551
      %v2680 = vcvt.s32.f32 %v2552
      %v2681 = vcvt.s32.f32 %v2553
      %v2682 = vcvt.s32.f32 %v2554
      %v2683 = vcvt.s32.f32 %v2555
      %v2684 = vcvt.s32.f32 %v2556
      %v2685 = vcvt.s32.f32 %v2557
      %v2686 = vcvt.s32.f32 %v2558
      %v2687 = vcvt.s32.f32 %v2559
      %v2688 = vcvt.s32.f32 %v2560
      %v2689 = vcvt.s32.f32 %v2561
      %v2690 = vcvt.s32.f32 %v2562
      %v2691 = vcvt.s32.f32 %v2563
      %v2692 = vcvt.s32.f32 %v2564
      %v2693 = vcvt.s32.f32 %v2565
      %v2694 = vcvt.s32.f32 %v2566
      %v2695 = vcvt.s32.f32 %v2567
      %v2696 = vpack.c.bf16 %v2570, %v2568
      %v2697 = vpack.c.bf16 %v2571, %v2569
      %v2698 = vpack.c.bf16 %v2574, %v2572
      %v2699 = vpack.c.bf16 %v2575, %v2573
      %v2700 = vpack.c.bf16 %v2578, %v2576
      %v2701 = vpack.c.bf16 %v2579, %v2577
      %v2702 = vpack.c.bf16 %v2582, %v2580
      %v2703 = vpack.c.bf16 %v2583, %v2581
      %v2704 = vpack.c.bf16 %v2586, %v2584
      %v2705 = vpack.c.bf16 %v2587, %v2585
      %v2706 = vpack.c.bf16 %v2590, %v2588
      %v2707 = vpack.c.bf16 %v2591, %v2589
      %v2708 = vpack.c.bf16 %v2594, %v2592
      %v2709 = vpack.c.bf16 %v2595, %v2593
      %v2710 = vpack.c.bf16 %v2598, %v2596
      %v2711 = vpack.c.bf16 %v2599, %v2597
      %v2712 = vpack.c.bf16 %v2602, %v2600
      %v2713 = vpack.c.bf16 %v2603, %v2601
      %v2714 = vpack.c.bf16 %v2606, %v2604
      %v2715 = vpack.c.bf16 %v2607, %v2605
      %v2716 = vpack.c.bf16 %v2610, %v2608
      %v2717 = vpack.c.bf16 %v2611, %v2609
      %v2718 = vpack.c.bf16 %v2614, %v2612
      %v2719 = vpack.c.bf16 %v2615, %v2613
      %v2720 = vpack.c.bf16 %v2618, %v2616
      %v2721 = vpack.c.bf16 %v2619, %v2617
      %v2722 = vpack.c.bf16 %v2622, %v2620
      %v2723 = vpack.c.bf16 %v2623, %v2621
      %v2724 = vpack.c.bf16 %v2626, %v2624
      %v2725 = vpack.c.bf16 %v2627, %v2625
      %v2726 = vpack.c.bf16 %v2630, %v2628
      %v2727 = vpack.c.bf16 %v2631, %v2629
      %v2728 = vpack.c.bf16 %v2634, %v2632
      %v2729 = vpack.c.bf16 %v2635, %v2633
      %v2730 = vpack.c.bf16 %v2638, %v2636
      %v2731 = vpack.c.bf16 %v2639, %v2637
      %v2732 = vpack.c.bf16 %v2642, %v2640
      %v2733 = vpack.c.bf16 %v2643, %v2641
      %v2734 = vpack.c.bf16 %v2646, %v2644
      %v2735 = vpack.c.bf16 %v2647, %v2645
      %v2736 = vpack.c.bf16 %v2650, %v2648
      %v2737 = vpack.c.bf16 %v2651, %v2649
      %v2738 = vpack.c.bf16 %v2654, %v2652
      %v2739 = vpack.c.bf16 %v2655, %v2653
      %v2740 = vpack.c.bf16 %v2658, %v2656
      %v2741 = vpack.c.bf16 %v2659, %v2657
      %v2742 = vpack.c.bf16 %v2662, %v2660
      %v2743 = vpack.c.bf16 %v2663, %v2661
      %v2744 = vpack.c.bf16 %v2666, %v2664
      %v2745 = vpack.c.bf16 %v2667, %v2665
      %v2746 = vpack.c.bf16 %v2670, %v2668
      %v2747 = vpack.c.bf16 %v2671, %v2669
      %v2748 = vpack.c.bf16 %v2674, %v2672
      %v2749 = vpack.c.bf16 %v2675, %v2673
      %v2750 = vpack.c.bf16 %v2678, %v2676
      %v2751 = vpack.c.bf16 %v2679, %v2677
      %v2752 = vpack.c.bf16 %v2682, %v2680
      %v2753 = vpack.c.bf16 %v2683, %v2681
      %v2754 = vpack.c.bf16 %v2686, %v2684
      %v2755 = vpack.c.bf16 %v2687, %v2685
      %v2756 = vpack.c.bf16 %v2690, %v2688
      %v2757 = vpack.c.bf16 %v2691, %v2689
      %v2758 = vpack.c.bf16 %v2694, %v2692
      %v2759 = vpack.c.bf16 %v2695, %v2693
      %v2760 = vld [vmem:[%s6] sm:$0xff]
      %v2761 = vld [vmem:[%s6 + $0x8] sm:$0xff]
      %v2762 = vld [vmem:[%s6 + $0x10] sm:$0xff]
      %v2763 = vld [vmem:[%s6 + $0x18] sm:$0xff]
      %v2764 = vld [vmem:[%s6 + $0x20] sm:$0xff]
      %v2765 = vld [vmem:[%s6 + $0x28] sm:$0xff]
      %v2766 = vld [vmem:[%s6 + $0x30] sm:$0xff]
      %v2767 = vld [vmem:[%s6 + $0x38] sm:$0xff]
      %v2768 = vld [vmem:[%s6 + $0x40] sm:$0x11]
      %v2769 = vld [vmem:[%s6 + $0x48] sm:$0x11]
      %v2780 = vunpack.c.l.b16 %v2760
      %v2781 = vunpack.c.h.b16 %v2760
      %v2782 = vunpack.c.l.b16 %v2761
      %v2783 = vunpack.c.h.b16 %v2761
      %v2784 = vunpack.c.l.b16 %v2762
      %v2785 = vunpack.c.h.b16 %v2762
      %v2786 = vunpack.c.l.b16 %v2763
      %v2787 = vunpack.c.h.b16 %v2763
      %v2788 = vunpack.c.l.b16 %v2764
      %v2789 = vunpack.c.h.b16 %v2764
      %v2790 = vunpack.c.l.b16 %v2765
      %v2791 = vunpack.c.h.b16 %v2765
      %v2792 = vunpack.c.l.b16 %v2766
      %v2793 = vunpack.c.h.b16 %v2766
      %v2794 = vunpack.c.l.b16 %v2767
      %v2795 = vunpack.c.h.b16 %v2767
      %v2796 = vunpack.c.l.b16 %v2768
      %v2797 = vunpack.c.h.b16 %v2768
      %v2798 = vunpack.c.l.b16 %v2769
      %v2799 = vunpack.c.h.b16 %v2769
      %v2800 = vpack.c.b16 %v2784, %v2780
      %v2801 = vpack.c.b16 %v2785, %v2781
      %v2802 = vpack.c.b16 %v2786, %v2782
      %v2803 = vpack.c.b16 %v2787, %v2783
      %v2804 = vpack.c.b16 %v2792, %v2788
      %v2805 = vpack.c.b16 %v2793, %v2789
      %v2806 = vpack.c.b16 %v2794, %v2790
      %v2807 = vpack.c.b16 %v2795, %v2791
      %v2808 = vpack.c.b16 %v2796, %v2796
      %v2809 = vpack.c.b16 %v2797, %v2797
      %v2810 = vpack.c.b16 %v2798, %v2798
      %v2811 = vpack.c.b16 %v2799, %v2799
      %2824 = vmatprep.subr.bf16.mxu0 %v2697
      %2825 = vmatpush1.bf16.msra.mxu0 %v2696
      %2826 = vmatprep.subr.bf16.mxu0 %v2699
      %2827 = vmatpush1.bf16.msra.mxu0 %v2698
      %2828 = vmatprep.subr.bf16.mxu0 %v2701
      %2829 = vmatpush1.bf16.msra.mxu0 %v2700
      %2830 = vmatprep.subr.bf16.mxu0 %v2703
      %2831 = vmatpush1.bf16.msra.mxu0 %v2702
      %2832 = vmatprep.subr.bf16.mxu0 %v2705
      %2833 = vmatpush1.bf16.msra.mxu0 %v2704
      %2834 = vmatprep.subr.bf16.mxu0 %v2707
      %2835 = vmatpush1.bf16.msra.mxu0 %v2706
      %2836 = vmatprep.subr.bf16.mxu0 %v2709
      %2837 = vmatpush1.bf16.msra.mxu0 %v2708
      %2838 = vmatprep.subr.bf16.mxu0 %v2711
      %2839 = vmatpush1.bf16.msra.mxu0 %v2710
      %2840 = vmatprep.subr.bf16.mxu0 %v2713
      %2841 = vmatpush1.bf16.msra.mxu0 %v2712
      %2842 = vmatprep.subr.bf16.mxu0 %v2715
      %2843 = vmatpush1.bf16.msra.mxu0 %v2714
      %2844 = vmatprep.subr.bf16.mxu0 %v2717
      %2845 = vmatpush1.bf16.msra.mxu0 %v2716
      %2846 = vmatprep.subr.bf16.mxu0 %v2719
      %2847 = vmatpush1.bf16.msra.mxu0 %v2718
      %2848 = vmatprep.subr.bf16.mxu0 %v2721
      %2849 = vmatpush1.bf16.msra.mxu0 %v2720
      %2850 = vmatprep.subr.bf16.mxu0 %v2723
      %2851 = vmatpush1.bf16.msra.mxu0 %v2722
      %2852 = vmatprep.subr.bf16.mxu0 %v2725
      %2853 = vmatpush1.bf16.msra.mxu0 %v2724
      %2854 = vmatprep.subr.bf16.mxu0 %v2727
      %2855 = vmatpush1.bf16.msra.mxu0 %v2726
      %2856 = vmatprep.mubr.bf16.mxu0 %v2801
      %2857 = vmatmul.mubr.bf16.gmra.mrb[0].mxu0 %v2800
      %v2858 = vpop.f32.mrb[0].mxu0
      %v2859 = vadd.f32 0.0, %v2858
      %v2860 = vpop.f32.mrb[0].mxu0
      %v2861 = vadd.f32 0.0, %v2860
      %v2862 = vpop.f32.mrb[0].mxu0
      %v2863 = vadd.f32 0.0, %v2862
      %v2864 = vpop.f32.mrb[0].mxu0
      %v2865 = vadd.f32 0.0, %v2864
      %2866 = vmatprep.mubr.bf16.mxu0 %v2805
      %2867 = vmatmul.mubr.bf16.gmra.mrb[0].mxu0 %v2804
      %v2868 = vpop.f32.mrb[0].mxu0
      %v2869 = vadd.f32 0.0, %v2868
      %v2870 = vpop.f32.mrb[0].mxu0
      %v2871 = vadd.f32 0.0, %v2870
      %v2872 = vpop.f32.mrb[0].mxu0
      %v2873 = vadd.f32 0.0, %v2872
      %v2874 = vpop.f32.mrb[0].mxu0
      %v2875 = vadd.f32 0.0, %v2874
      %2876 = vmatprep.mubr.bf16.mxu0 %v2809
      %2877 = vmatmul.mubr.bf16.gmra.mrb[0].mxu0 %v2808
      %v2878 = vpop.f32.mrb[0].mxu0
      %v2879 = vadd.f32 0.0, %v2878
      %v2880 = vpop.f32.mrb[0].mxu0
      %v2881 = vadd.f32 0.0, %v2880
      %v2882 = vpop.f32.mrb[0].mxu0
      %v2883 = vpop.f32.mrb[0].mxu0
      %2884 = vdwg.mxu0
      %2885 = vmatprep.subr.bf16.mxu0 %v2729
      %2886 = vmatpush1.bf16.msra.mxu0 %v2728
      %2887 = vmatprep.subr.bf16.mxu0 %v2731
      %2888 = vmatpush1.bf16.msra.mxu0 %v2730
      %2889 = vmatprep.subr.bf16.mxu0 %v2733
      %2890 = vmatpush1.bf16.msra.mxu0 %v2732
      %2891 = vmatprep.subr.bf16.mxu0 %v2735
      %2892 = vmatpush1.bf16.msra.mxu0 %v2734
      %2893 = vmatprep.subr.bf16.mxu0 %v2737
      %2894 = vmatpush1.bf16.msra.mxu0 %v2736
      %2895 = vmatprep.subr.bf16.mxu0 %v2739
      %2896 = vmatpush1.bf16.msra.mxu0 %v2738
      %2897 = vmatprep.subr.bf16.mxu0 %v2741
      %2898 = vmatpush1.bf16.msra.mxu0 %v2740
      %2899 = vmatprep.subr.bf16.mxu0 %v2743
      %2900 = vmatpush1.bf16.msra.mxu0 %v2742
      %2901 = vmatprep.subr.bf16.mxu0 %v2745
      %2902 = vmatpush1.bf16.msra.mxu0 %v2744
      %2903 = vmatprep.subr.bf16.mxu0 %v2747
      %2904 = vmatpush1.bf16.msra.mxu0 %v2746
      %2905 = vmatprep.subr.bf16.mxu0 %v2749
      %2906 = vmatpush1.bf16.msra.mxu0 %v2748
      %2907 = vmatprep.subr.bf16.mxu0 %v2751
      %2908 = vmatpush1.bf16.msra.mxu0 %v2750
      %2909 = vmatprep.subr.bf16.mxu0 %v2753
      %2910 = vmatpush1.bf16.msra.mxu0 %v2752
      %2911 = vmatprep.subr.bf16.mxu0 %v2755
      %2912 = vmatpush1.bf16.msra.mxu0 %v2754
      %2913 = vmatprep.subr.bf16.mxu0 %v2757
      %2914 = vmatpush1.bf16.msra.mxu0 %v2756
      %2915 = vmatprep.subr.bf16.mxu0 %v2759
      %2916 = vmatpush1.bf16.msra.mxu0 %v2758
      %2917 = vmatprep.mubr.bf16.mxu0 %v2803
      %2918 = vmatmul.mubr.bf16.gmra.mrb[0].mxu0 %v2802
      %v2919 = vpop.f32.mrb[0].mxu0
      %v2920 = vadd.f32 %v2859, %v2919
      %v2921 = vpop.f32.mrb[0].mxu0
      %v2922 = vadd.f32 %v2861, %v2921
      %v2923 = vpop.f32.mrb[0].mxu0
      %v2924 = vadd.f32 %v2863, %v2923
      %v2925 = vpop.f32.mrb[0].mxu0
      %v2926 = vadd.f32 %v2865, %v2925
      %2927 = vmatprep.mubr.bf16.mxu0 %v2807
      %2928 = vmatmul.mubr.bf16.gmra.mrb[0].mxu0 %v2806
      %v2929 = vpop.f32.mrb[0].mxu0
      %v2930 = vadd.f32 %v2869, %v2929
      %v2931 = vpop.f32.mrb[0].mxu0
      %v2932 = vadd.f32 %v2871, %v2931
      %v2933 = vpop.f32.mrb[0].mxu0
      %v2934 = vadd.f32 %v2873, %v2933
      %v2935 = vpop.f32.mrb[0].mxu0
      %v2936 = vadd.f32 %v2875, %v2935
      %2937 = vmatprep.mubr.bf16.mxu0 %v2811
      %2938 = vmatmul.mubr.bf16.gmra.mrb[0].mxu0 %v2810
      %v2939 = vpop.f32.mrb[0].mxu0
      %v2940 = vadd.f32 %v2879, %v2939
      %v2941 = vpop.f32.mrb[0].mxu0
      %v2942 = vadd.f32 %v2881, %v2941
      %v2943 = vpop.f32.mrb[0].mxu0
      %v2944 = vpop.f32.mrb[0].mxu0
      %2945 = vdwg.mxu0
      %v2946 = vsub.f32 %v2920, %v822
      %v2947 = vsub.f32 %v2922, %v824
      %v2948 = vsub.f32 %v2924, %v828
      %v2949 = vsub.f32 %v2926, %v830
      %v2950 = vsub.f32 %v2930, %v834
      %v2951 = vsub.f32 %v2932, %v836
      %v2952 = vsub.f32 %v2934, %v840
      %v2953 = vsub.f32 %v2936, %v842
      %v2954 = vsub.f32 %v2940, %v846
      %v2955 = vsub.f32 %v2942, %v848
      %v2956 = vmul.f32 %v2946, %v2946
      %v2957 = vmul.f32 %v2947, %v2947
      %v2958 = vmul.f32 %v2948, %v2948
      %v2959 = vmul.f32 %v2949, %v2949
      %v2960 = vmul.f32 %v2950, %v2950
      %v2961 = vmul.f32 %v2951, %v2951
      %v2962 = vmul.f32 %v2952, %v2952
      %v2963 = vmul.f32 %v2953, %v2953
      %v2964 = vmul.f32 %v2954, %v2954
      %v2965 = vmul.f32 %v2955, %v2955
      %v2966 = vadd.f32 %v2956, %v2958
      %v2967 = vadd.f32 %v2966, %v2960
      %v2968 = vadd.f32 %v2967, %v2962
      %v2969 = vsel %vm1107, %v2964, 0.0
      %v2970 = vadd.f32 %v2968, %v2969
      %v2971 = vrot.slane %v2970, 4
      %v2972 = vadd.f32 %v2970, %v2971
      %v2973 = vrot.slane %v2972, 2
      %v2974 = vadd.f32 %v2972, %v2973
      %v2975 = vrot.slane %v2974, 1
      %v2976 = vadd.f32 %v2974, %v2975
      %v2977 = vadd.f32 %v2957, %v2959
      %v2978 = vadd.f32 %v2977, %v2961
      %v2979 = vadd.f32 %v2978, %v2963
      %v2980 = vsel %vm1107, %v2965, 0.0
      %v2981 = vadd.f32 %v2979, %v2980
      %v2982 = vrot.slane %v2981, 4
      %v2983 = vadd.f32 %v2981, %v2982
      %v2984 = vrot.slane %v2983, 2
      %v2985 = vadd.f32 %v2983, %v2984
      %v2986 = vrot.slane %v2985, 1
      %v2987 = vadd.f32 %v2985, %v2986
      %v2990 = vcombine.low %v2976, %v2987
      %v2992 = vunpack.c.l.s4 1966171168
      %v2993 = vunpack.c.0.s8 %v2992
      %v2994 = vlaneseq
      %v2995 = vshrl.u32 %v2994, 7
      %v2996 = vsub.s32 %v2993, %v2995
      %v2997 = vrot.slane %v2990, %v2996
      %v2999 = vunpack.c.l.s4 1966171168
      %v3000 = vunpack.c.0.s8 %v2999
      %v3001 = vlaneseq
      %v3002 = vshrl.u32 %v3001, 7
      %v3003 = vsub.s32 %v3000, %v3002
      %v3004 = vrot.slane %v2997, %v3003
      %3006 = vst.msk [vmem:[%s548] sm:$0x3] %vm2310, %v3004
      %v3007 = vld [vmem:[%s7] sm:$0xff]
      %v3008 = vld [vmem:[%s7 + $0x8] sm:$0xff]
      %v3009 = vld [vmem:[%s7 + $0x10] sm:$0xff]
      %v3010 = vld [vmem:[%s7 + $0x18] sm:$0xff]
      %v3012 = vsel %vm914, %v3007, 0
      %v3015 = vsel %vm914, %v3008, 0
      %v3018 = vsel %vm914, %v3009, 0
      %v3021 = vsel %vm914, %v3010, 0
      %v3024 = vsel %vm1107, %v2940, 0
      %v3027 = vsel %vm1107, %v2942, 0
      %3029 = vmatprep.subr.mxu0 %v2922
      %3030 = vmatpush1.msra.mxu0 %v2920
      %3031 = vmatprep.subr.mxu0 %v2926
      %3032 = vmatpush1.msra.mxu0 %v2924
      %3033 = vmatprep.subr.mxu0 %v2932
      %3034 = vmatpush1.msra.mxu0 %v2930
      %3035 = vmatprep.subr.mxu0 %v2936
      %3036 = vmatpush1.msra.mxu0 %v2934
      %3037 = vmatprep.subr.mxu0 %v3027
      %3038 = vmatpush1.msra.mxu0 %v3024
      %3039 = vmatprep.subr.mxu0 0.0
      %3040 = vmatpush1.msra.mxu0 0.0
      %3041 = vmatprep.subr.mxu0 0.0
      %3042 = vmatpush1.msra.mxu0 0.0
      %3043 = vmatprep.subr.mxu0 0.0
      %3044 = vmatpush1.msra.mxu0 0.0
      %3045 = vmatprep.subr.mxu0 0.0
      %3046 = vmatpush1.msra.mxu0 0.0
      %3047 = vmatprep.subr.mxu0 0.0
      %3048 = vmatpush1.msra.mxu0 0.0
      %3049 = vmatprep.subr.mxu0 0.0
      %3050 = vmatpush1.msra.mxu0 0.0
      %3051 = vmatprep.subr.mxu0 0.0
      %3052 = vmatpush1.msra.mxu0 0.0
      %3053 = vmatprep.subr.mxu0 0.0
      %3054 = vmatpush1.msra.mxu0 0.0
      %3055 = vmatprep.subr.mxu0 0.0
      %3056 = vmatpush1.msra.mxu0 0.0
      %3057 = vmatprep.subr.mxu0 0.0
      %3058 = vmatpush1.msra.mxu0 0.0
      %3059 = vmatprep.subr.mxu0 0.0
      %3060 = vmatpush1.msra.mxu0 0.0
      %3061 = vmatprep.subr.mxu0 0.0
      %3062 = vmatpush1.msra.mxu0 0.0
      %3063 = vmatprep.subr.mxu0 0.0
      %3064 = vmatpush1.msra.mxu0 0.0
      %3065 = vmatprep.subr.mxu0 0.0
      %3066 = vmatpush1.msra.mxu0 0.0
      %3067 = vmatprep.subr.mxu0 0.0
      %3068 = vmatpush1.msra.mxu0 0.0
      %3069 = vmatprep.subr.mxu0 0.0
      %3070 = vmatpush1.msra.mxu0 0.0
      %3071 = vmatprep.subr.mxu0 0.0
      %3072 = vmatpush1.msra.mxu0 0.0
      %3073 = vmatprep.subr.mxu0 0.0
      %3074 = vmatpush1.msra.mxu0 0.0
      %3075 = vmatprep.subr.mxu0 0.0
      %3076 = vmatpush1.msra.mxu0 0.0
      %3077 = vmatprep.subr.mxu0 0.0
      %3078 = vmatpush1.msra.mxu0 0.0
      %3079 = vmatprep.subr.mxu0 0.0
      %3080 = vmatpush1.msra.mxu0 0.0
      %3081 = vmatprep.subr.mxu0 0.0
      %3082 = vmatpush1.msra.mxu0 0.0
      %3083 = vmatprep.subr.mxu0 0.0
      %3084 = vmatpush1.msra.mxu0 0.0
      %3085 = vmatprep.subr.mxu0 0.0
      %3086 = vmatpush1.msra.mxu0 0.0
      %3087 = vmatprep.subr.mxu0 0.0
      %3088 = vmatpush1.msra.mxu0 0.0
      %3089 = vmatprep.subr.mxu0 0.0
      %3090 = vmatpush1.msra.mxu0 0.0
      %3091 = vmatprep.subr.mxu0 0.0
      %3092 = vmatpush1.msra.mxu0 0.0
      %3093 = vmatprep.mubr.f32.mxu0 0.0
      %3094 = vmatmul.mubr.f32.gmra.mrb[0].mxu0 %v3012
      %v3095 = vpop.f32.mrb[0].mxu0
      %v3096 = vadd.f32 0.0, %v3095
      %v3097 = vpop.f32.mrb[0].mxu0
      %v3098 = vadd.f32 0.0, %v3097
      %3099 = vmatprep.mubr.f32.mxu0 0.0
      %3100 = vmatmul.mubr.f32.gmra.mrb[0].mxu0 %v3015
      %v3101 = vpop.f32.mrb[0].mxu0
      %v3102 = vadd.f32 0.0, %v3101
      %v3103 = vpop.f32.mrb[0].mxu0
      %v3104 = vadd.f32 0.0, %v3103
      %3105 = vmatprep.mubr.f32.mxu0 0.0
      %3106 = vmatmul.mubr.f32.gmra.mrb[0].mxu0 %v3018
      %v3107 = vpop.f32.mrb[0].mxu0
      %v3108 = vadd.f32 0.0, %v3107
      %v3109 = vpop.f32.mrb[0].mxu0
      %v3110 = vadd.f32 0.0, %v3109
      %3111 = vmatprep.mubr.f32.mxu0 0.0
      %3112 = vmatmul.mubr.f32.gmra.mrb[0].mxu0 %v3021
      %v3113 = vpop.f32.mrb[0].mxu0
      %v3114 = vadd.f32 0.0, %v3113
      %v3115 = vpop.f32.mrb[0].mxu0
      %v3116 = vadd.f32 0.0, %v3115
      %3117 = vdwg.mxu0
      %v3118 = vld [vmem:[%s8] sm:$0xff]
      %v3119 = vld [vmem:[%s8 + $0x8] sm:$0xff]
      %v3120 = vld [vmem:[%s8 + $0x10] sm:$0xff]
      %v3121 = vld [vmem:[%s8 + $0x18] sm:$0xff]
      %v3122 = vld [vmem:[%s9] sm:$0xff]
      %v3123 = vld [vmem:[%s9 + $0x8] sm:$0xff]
      %v3124 = vld [vmem:[%s9 + $0x10] sm:$0xff]
      %v3125 = vld [vmem:[%s9 + $0x18] sm:$0xff]
      %3127 = vset.pattern.permute.xlu0 0
      %3128 = vperm.xlu0 %3127, %v3122
      %v3129 = vpop.permute.xlu0 %3128
      %3132 = vset.pattern.permute.xlu0 0
      %3133 = vperm.xlu0 %3132, %v3123
      %v3134 = vpop.permute.xlu0 %3133
      %3137 = vset.pattern.permute.xlu0 0
      %3138 = vperm.xlu0 %3137, %v3124
      %v3139 = vpop.permute.xlu0 %3138
      %3142 = vset.pattern.permute.xlu0 0
      %3143 = vperm.xlu0 %3142, %v3125
      %v3144 = vpop.permute.xlu0 %3143
      %v3147 = vsel %vm739, %v3118, 0
      %v3150 = vsel %vm739, %v3119, 0
      %v3153 = vsel %vm739, %v3120, 0
      %v3156 = vsel %vm739, %v3121, 0
      %3158 = vmatprep.subr.mxu0 %v3098
      %3159 = vmatpush1.msra.mxu0 %v3096
      %3160 = vmatprep.subr.mxu0 %v3104
      %3161 = vmatpush1.msra.mxu0 %v3102
      %3162 = vmatprep.subr.mxu0 %v3110
      %3163 = vmatpush1.msra.mxu0 %v3108
      %3164 = vmatprep.subr.mxu0 %v3116
      %3165 = vmatpush1.msra.mxu0 %v3114
      %3166 = vmatprep.subr.mxu0 0.0
      %3167 = vmatpush1.msra.mxu0 0.0
      %3168 = vmatprep.subr.mxu0 0.0
      %3169 = vmatpush1.msra.mxu0 0.0
      %3170 = vmatprep.subr.mxu0 0.0
      %3171 = vmatpush1.msra.mxu0 0.0
      %3172 = vmatprep.subr.mxu0 0.0
      %3173 = vmatpush1.msra.mxu0 0.0
      %3174 = vmatprep.subr.mxu0 0.0
      %3175 = vmatpush1.msra.mxu0 0.0
      %3176 = vmatprep.subr.mxu0 0.0
      %3177 = vmatpush1.msra.mxu0 0.0
      %3178 = vmatprep.subr.mxu0 0.0
      %3179 = vmatpush1.msra.mxu0 0.0
      %3180 = vmatprep.subr.mxu0 0.0
      %3181 = vmatpush1.msra.mxu0 0.0
      %3182 = vmatprep.subr.mxu0 0.0
      %3183 = vmatpush1.msra.mxu0 0.0
      %3184 = vmatprep.subr.mxu0 0.0
      %3185 = vmatpush1.msra.mxu0 0.0
      %3186 = vmatprep.subr.mxu0 0.0
      %3187 = vmatpush1.msra.mxu0 0.0
      %3188 = vmatprep.subr.mxu0 0.0
      %3189 = vmatpush1.msra.mxu0 0.0
      %3190 = vmatprep.subr.mxu0 0.0
      %3191 = vmatpush1.msra.mxu0 0.0
      %3192 = vmatprep.subr.mxu0 0.0
      %3193 = vmatpush1.msra.mxu0 0.0
      %3194 = vmatprep.subr.mxu0 0.0
      %3195 = vmatpush1.msra.mxu0 0.0
      %3196 = vmatprep.subr.mxu0 0.0
      %3197 = vmatpush1.msra.mxu0 0.0
      %3198 = vmatprep.subr.mxu0 0.0
      %3199 = vmatpush1.msra.mxu0 0.0
      %3200 = vmatprep.subr.mxu0 0.0
      %3201 = vmatpush1.msra.mxu0 0.0
      %3202 = vmatprep.subr.mxu0 0.0
      %3203 = vmatpush1.msra.mxu0 0.0
      %3204 = vmatprep.subr.mxu0 0.0
      %3205 = vmatpush1.msra.mxu0 0.0
      %3206 = vmatprep.subr.mxu0 0.0
      %3207 = vmatpush1.msra.mxu0 0.0
      %3208 = vmatprep.subr.mxu0 0.0
      %3209 = vmatpush1.msra.mxu0 0.0
      %3210 = vmatprep.subr.mxu0 0.0
      %3211 = vmatpush1.msra.mxu0 0.0
      %3212 = vmatprep.subr.mxu0 0.0
      %3213 = vmatpush1.msra.mxu0 0.0
      %3214 = vmatprep.subr.mxu0 0.0
      %3215 = vmatpush1.msra.mxu0 0.0
      %3216 = vmatprep.subr.mxu0 0.0
      %3217 = vmatpush1.msra.mxu0 0.0
      %3218 = vmatprep.subr.mxu0 0.0
      %3219 = vmatpush1.msra.mxu0 0.0
      %3220 = vmatprep.subr.mxu0 0.0
      %3221 = vmatpush1.msra.mxu0 0.0
      %3222 = vmatprep.mubr.f32.mxu0 0.0
      %3223 = vmatmul.mubr.f32.gmra.mrb[0].mxu0 %v3147
      %v3224 = vpop.f32.mrb[0].mxu0
      %v3225 = vadd.f32 %v3129, %v3224
      %v3226 = vpop.f32.mrb[0].mxu0
      %v3227 = vadd.f32 %v3129, %v3226
      %3228 = vmatprep.mubr.f32.mxu0 0.0
      %3229 = vmatmul.mubr.f32.gmra.mrb[0].mxu0 %v3150
      %v3230 = vpop.f32.mrb[0].mxu0
      %v3231 = vadd.f32 %v3134, %v3230
      %v3232 = vpop.f32.mrb[0].mxu0
      %v3233 = vadd.f32 %v3134, %v3232
      %3234 = vmatprep.mubr.f32.mxu0 0.0
      %3235 = vmatmul.mubr.f32.gmra.mrb[0].mxu0 %v3153
      %v3236 = vpop.f32.mrb[0].mxu0
      %v3237 = vadd.f32 %v3139, %v3236
      %v3238 = vpop.f32.mrb[0].mxu0
      %v3239 = vadd.f32 %v3139, %v3238
      %3240 = vmatprep.mubr.f32.mxu0 0.0
      %3241 = vmatmul.mubr.f32.gmra.mrb[0].mxu0 %v3156
      %v3242 = vpop.f32.mrb[0].mxu0
      %v3243 = vadd.f32 %v3144, %v3242
      %v3244 = vpop.f32.mrb[0].mxu0
      %v3245 = vadd.f32 %v3144, %v3244
      %3246 = vdwg.mxu0
      %v3247 = vmul.f32 %v3225, 0.2
      %v3248 = vmul.f32 %v3227, 0.2
      %v3249 = vmul.f32 %v3231, 0.2
      %v3250 = vmul.f32 %v3233, 0.2
      %v3251 = vmul.f32 %v3237, 0.2
      %v3252 = vmul.f32 %v3239, 0.2
      %v3253 = vmul.f32 %v3243, 0.2
      %v3254 = vmul.f32 %v3245, 0.2
      %v3255 = vmax.f32 %v3225, %v3247
      %v3256 = vmax.f32 %v3227, %v3248
      %v3257 = vmax.f32 %v3231, %v3249
      %v3258 = vmax.f32 %v3233, %v3250
      %v3259 = vmax.f32 %v3237, %v3251
      %v3260 = vmax.f32 %v3239, %v3252
      %v3261 = vmax.f32 %v3243, %v3253
      %v3262 = vmax.f32 %v3245, %v3254
      %v3263 = vadd.f32 %v3096, %v3255
      %v3264 = vadd.f32 %v3098, %v3256
      %v3265 = vadd.f32 %v3102, %v3257
      %v3266 = vadd.f32 %v3104, %v3258
      %v3267 = vadd.f32 %v3108, %v3259
      %v3268 = vadd.f32 %v3110, %v3260
      %v3269 = vadd.f32 %v3114, %v3261
      %v3270 = vadd.f32 %v3116, %v3262
      %s3271 = scalar_lea.vmem %s8, 32
      %v3272 = vld [vmem:[%s3271] sm:$0xff]
      %v3273 = vld [vmem:[%s3271 + $0x8] sm:$0xff]
      %v3274 = vld [vmem:[%s3271 + $0x10] sm:$0xff]
      %v3275 = vld [vmem:[%s3271 + $0x18] sm:$0xff]
      %s3276 = scalar_lea.vmem %s9, 32
      %v3277 = vld [vmem:[%s3276] sm:$0xff]
      %v3278 = vld [vmem:[%s3276 + $0x8] sm:$0xff]
      %v3279 = vld [vmem:[%s3276 + $0x10] sm:$0xff]
      %v3280 = vld [vmem:[%s3276 + $0x18] sm:$0xff]
      %3282 = vset.pattern.permute.xlu0 0
      %3283 = vperm.xlu0 %3282, %v3277
      %v3284 = vpop.permute.xlu0 %3283
      %3287 = vset.pattern.permute.xlu0 0
      %3288 = vperm.xlu0 %3287, %v3278
      %v3289 = vpop.permute.xlu0 %3288
      %3292 = vset.pattern.permute.xlu0 0
      %3293 = vperm.xlu0 %3292, %v3279
      %v3294 = vpop.permute.xlu0 %3293
      %3297 = vset.pattern.permute.xlu0 0
      %3298 = vperm.xlu0 %3297, %v3280
      %v3299 = vpop.permute.xlu0 %3298
      %v3302 = vsel %vm739, %v3272, 0
      %v3305 = vsel %vm739, %v3273, 0
      %v3308 = vsel %vm739, %v3274, 0
      %v3311 = vsel %vm739, %v3275, 0
      %3313 = vmatprep.subr.mxu0 %v3264
      %3314 = vmatpush1.msra.mxu0 %v3263
      %3315 = vmatprep.subr.mxu0 %v3266
      %3316 = vmatpush1.msra.mxu0 %v3265
      %3317 = vmatprep.subr.mxu0 %v3268
      %3318 = vmatpush1.msra.mxu0 %v3267
      %3319 = vmatprep.subr.mxu0 %v3270
      %3320 = vmatpush1.msra.mxu0 %v3269
      %3321 = vmatprep.subr.mxu0 0.0
      %3322 = vmatpush1.msra.mxu0 0.0
      %3323 = vmatprep.subr.mxu0 0.0
      %3324 = vmatpush1.msra.mxu0 0.0
      %3325 = vmatprep.subr.mxu0 0.0
      %3326 = vmatpush1.msra.mxu0 0.0
      %3327 = vmatprep.subr.mxu0 0.0
      %3328 = vmatpush1.msra.mxu0 0.0
      %3329 = vmatprep.subr.mxu0 0.0
      %3330 = vmatpush1.msra.mxu0 0.0
      %3331 = vmatprep.subr.mxu0 0.0
      %3332 = vmatpush1.msra.mxu0 0.0
      %3333 = vmatprep.subr.mxu0 0.0
      %3334 = vmatpush1.msra.mxu0 0.0
      %3335 = vmatprep.subr.mxu0 0.0
      %3336 = vmatpush1.msra.mxu0 0.0
      %3337 = vmatprep.subr.mxu0 0.0
      %3338 = vmatpush1.msra.mxu0 0.0
      %3339 = vmatprep.subr.mxu0 0.0
      %3340 = vmatpush1.msra.mxu0 0.0
      %3341 = vmatprep.subr.mxu0 0.0
      %3342 = vmatpush1.msra.mxu0 0.0
      %3343 = vmatprep.subr.mxu0 0.0
      %3344 = vmatpush1.msra.mxu0 0.0
      %3345 = vmatprep.subr.mxu0 0.0
      %3346 = vmatpush1.msra.mxu0 0.0
      %3347 = vmatprep.subr.mxu0 0.0
      %3348 = vmatpush1.msra.mxu0 0.0
      %3349 = vmatprep.subr.mxu0 0.0
      %3350 = vmatpush1.msra.mxu0 0.0
      %3351 = vmatprep.subr.mxu0 0.0
      %3352 = vmatpush1.msra.mxu0 0.0
      %3353 = vmatprep.subr.mxu0 0.0
      %3354 = vmatpush1.msra.mxu0 0.0
      %3355 = vmatprep.subr.mxu0 0.0
      %3356 = vmatpush1.msra.mxu0 0.0
      %3357 = vmatprep.subr.mxu0 0.0
      %3358 = vmatpush1.msra.mxu0 0.0
      %3359 = vmatprep.subr.mxu0 0.0
      %3360 = vmatpush1.msra.mxu0 0.0
      %3361 = vmatprep.subr.mxu0 0.0
      %3362 = vmatpush1.msra.mxu0 0.0
      %3363 = vmatprep.subr.mxu0 0.0
      %3364 = vmatpush1.msra.mxu0 0.0
      %3365 = vmatprep.subr.mxu0 0.0
      %3366 = vmatpush1.msra.mxu0 0.0
      %3367 = vmatprep.subr.mxu0 0.0
      %3368 = vmatpush1.msra.mxu0 0.0
      %3369 = vmatprep.subr.mxu0 0.0
      %3370 = vmatpush1.msra.mxu0 0.0
      %3371 = vmatprep.subr.mxu0 0.0
      %3372 = vmatpush1.msra.mxu0 0.0
      %3373 = vmatprep.subr.mxu0 0.0
      %3374 = vmatpush1.msra.mxu0 0.0
      %3375 = vmatprep.subr.mxu0 0.0
      %3376 = vmatpush1.msra.mxu0 0.0
      %3377 = vmatprep.mubr.f32.mxu0 0.0
      %3378 = vmatmul.mubr.f32.gmra.mrb[0].mxu0 %v3302
      %v3379 = vpop.f32.mrb[0].mxu0
      %v3380 = vadd.f32 %v3284, %v3379
      %v3381 = vpop.f32.mrb[0].mxu0
      %v3382 = vadd.f32 %v3284, %v3381
      %3383 = vmatprep.mubr.f32.mxu0 0.0
      %3384 = vmatmul.mubr.f32.gmra.mrb[0].mxu0 %v3305
      %v3385 = vpop.f32.mrb[0].mxu0
      %v3386 = vadd.f32 %v3289, %v3385
      %v3387 = vpop.f32.mrb[0].mxu0
      %v3388 = vadd.f32 %v3289, %v3387
      %3389 = vmatprep.mubr.f32.mxu0 0.0
      %3390 = vmatmul.mubr.f32.gmra.mrb[0].mxu0 %v3308
      %v3391 = vpop.f32.mrb[0].mxu0
      %v3392 = vadd.f32 %v3294, %v3391
      %v3393 = vpop.f32.mrb[0].mxu0
      %v3394 = vadd.f32 %v3294, %v3393
      %3395 = vmatprep.mubr.f32.mxu0 0.0
      %3396 = vmatmul.mubr.f32.gmra.mrb[0].mxu0 %v3311
      %v3397 = vpop.f32.mrb[0].mxu0
      %v3398 = vadd.f32 %v3299, %v3397
      %v3399 = vpop.f32.mrb[0].mxu0
      %v3400 = vadd.f32 %v3299, %v3399
      %3401 = vdwg.mxu0
      %v3402 = vmul.f32 %v3380, 0.2
      %v3403 = vmul.f32 %v3382, 0.2
      %v3404 = vmul.f32 %v3386, 0.2
      %v3405 = vmul.f32 %v3388, 0.2
      %v3406 = vmul.f32 %v3392, 0.2
      %v3407 = vmul.f32 %v3394, 0.2
      %v3408 = vmul.f32 %v3398, 0.2
      %v3409 = vmul.f32 %v3400, 0.2
      %v3410 = vmax.f32 %v3380, %v3402
      %v3411 = vmax.f32 %v3382, %v3403
      %v3412 = vmax.f32 %v3386, %v3404
      %v3413 = vmax.f32 %v3388, %v3405
      %v3414 = vmax.f32 %v3392, %v3406
      %v3415 = vmax.f32 %v3394, %v3407
      %v3416 = vmax.f32 %v3398, %v3408
      %v3417 = vmax.f32 %v3400, %v3409
      %v3418 = vadd.f32 %v3263, %v3410
      %v3419 = vadd.f32 %v3264, %v3411
      %v3420 = vadd.f32 %v3265, %v3412
      %v3421 = vadd.f32 %v3266, %v3413
      %v3422 = vadd.f32 %v3267, %v3414
      %v3423 = vadd.f32 %v3268, %v3415
      %v3424 = vadd.f32 %v3269, %v3416
      %v3425 = vadd.f32 %v3270, %v3417
      %s3426 = scalar_lea.vmem %s8, 64
      %v3427 = vld [vmem:[%s3426] sm:$0xff]
      %v3428 = vld [vmem:[%s3426 + $0x8] sm:$0xff]
      %v3429 = vld [vmem:[%s3426 + $0x10] sm:$0xff]
      %v3430 = vld [vmem:[%s3426 + $0x18] sm:$0xff]
      %s3431 = scalar_lea.vmem %s9, 64
      %v3432 = vld [vmem:[%s3431] sm:$0xff]
      %v3433 = vld [vmem:[%s3431 + $0x8] sm:$0xff]
      %v3434 = vld [vmem:[%s3431 + $0x10] sm:$0xff]
      %v3435 = vld [vmem:[%s3431 + $0x18] sm:$0xff]
      %3437 = vset.pattern.permute.xlu0 0
      %3438 = vperm.xlu0 %3437, %v3432
      %v3439 = vpop.permute.xlu0 %3438
      %3442 = vset.pattern.permute.xlu0 0
      %3443 = vperm.xlu0 %3442, %v3433
      %v3444 = vpop.permute.xlu0 %3443
      %3447 = vset.pattern.permute.xlu0 0
      %3448 = vperm.xlu0 %3447, %v3434
      %v3449 = vpop.permute.xlu0 %3448
      %3452 = vset.pattern.permute.xlu0 0
      %3453 = vperm.xlu0 %3452, %v3435
      %v3454 = vpop.permute.xlu0 %3453
      %v3457 = vsel %vm739, %v3427, 0
      %v3460 = vsel %vm739, %v3428, 0
      %v3463 = vsel %vm739, %v3429, 0
      %v3466 = vsel %vm739, %v3430, 0
      %3468 = vmatprep.subr.mxu0 %v3419
      %3469 = vmatpush1.msra.mxu0 %v3418
      %3470 = vmatprep.subr.mxu0 %v3421
      %3471 = vmatpush1.msra.mxu0 %v3420
      %3472 = vmatprep.subr.mxu0 %v3423
      %3473 = vmatpush1.msra.mxu0 %v3422
      %3474 = vmatprep.subr.mxu0 %v3425
      %3475 = vmatpush1.msra.mxu0 %v3424
      %3476 = vmatprep.subr.mxu0 0.0
      %3477 = vmatpush1.msra.mxu0 0.0
      %3478 = vmatprep.subr.mxu0 0.0
      %3479 = vmatpush1.msra.mxu0 0.0
      %3480 = vmatprep.subr.mxu0 0.0
      %3481 = vmatpush1.msra.mxu0 0.0
      %3482 = vmatprep.subr.mxu0 0.0
      %3483 = vmatpush1.msra.mxu0 0.0
      %3484 = vmatprep.subr.mxu0 0.0
      %3485 = vmatpush1.msra.mxu0 0.0
      %3486 = vmatprep.subr.mxu0 0.0
      %3487 = vmatpush1.msra.mxu0 0.0
      %3488 = vmatprep.subr.mxu0 0.0
      %3489 = vmatpush1.msra.mxu0 0.0
      %3490 = vmatprep.subr.mxu0 0.0
      %3491 = vmatpush1.msra.mxu0 0.0
      %3492 = vmatprep.subr.mxu0 0.0
      %3493 = vmatpush1.msra.mxu0 0.0
      %3494 = vmatprep.subr.mxu0 0.0
      %3495 = vmatpush1.msra.mxu0 0.0
      %3496 = vmatprep.subr.mxu0 0.0
      %3497 = vmatpush1.msra.mxu0 0.0
      %3498 = vmatprep.subr.mxu0 0.0
      %3499 = vmatpush1.msra.mxu0 0.0
      %3500 = vmatprep.subr.mxu0 0.0
      %3501 = vmatpush1.msra.mxu0 0.0
      %3502 = vmatprep.subr.mxu0 0.0
      %3503 = vmatpush1.msra.mxu0 0.0
      %3504 = vmatprep.subr.mxu0 0.0
      %3505 = vmatpush1.msra.mxu0 0.0
      %3506 = vmatprep.subr.mxu0 0.0
      %3507 = vmatpush1.msra.mxu0 0.0
      %3508 = vmatprep.subr.mxu0 0.0
      %3509 = vmatpush1.msra.mxu0 0.0
      %3510 = vmatprep.subr.mxu0 0.0
      %3511 = vmatpush1.msra.mxu0 0.0
      %3512 = vmatprep.subr.mxu0 0.0
      %3513 = vmatpush1.msra.mxu0 0.0
      %3514 = vmatprep.subr.mxu0 0.0
      %3515 = vmatpush1.msra.mxu0 0.0
      %3516 = vmatprep.subr.mxu0 0.0
      %3517 = vmatpush1.msra.mxu0 0.0
      %3518 = vmatprep.subr.mxu0 0.0
      %3519 = vmatpush1.msra.mxu0 0.0
      %3520 = vmatprep.subr.mxu0 0.0
      %3521 = vmatpush1.msra.mxu0 0.0
      %3522 = vmatprep.subr.mxu0 0.0
      %3523 = vmatpush1.msra.mxu0 0.0
      %3524 = vmatprep.subr.mxu0 0.0
      %3525 = vmatpush1.msra.mxu0 0.0
      %3526 = vmatprep.subr.mxu0 0.0
      %3527 = vmatpush1.msra.mxu0 0.0
      %3528 = vmatprep.subr.mxu0 0.0
      %3529 = vmatpush1.msra.mxu0 0.0
      %3530 = vmatprep.subr.mxu0 0.0
      %3531 = vmatpush1.msra.mxu0 0.0
      %3532 = vmatprep.mubr.f32.mxu0 0.0
      %3533 = vmatmul.mubr.f32.gmra.mrb[0].mxu0 %v3457
      %v3534 = vpop.f32.mrb[0].mxu0
      %v3535 = vadd.f32 %v3439, %v3534
      %v3536 = vpop.f32.mrb[0].mxu0
      %v3537 = vadd.f32 %v3439, %v3536
      %3538 = vmatprep.mubr.f32.mxu0 0.0
      %3539 = vmatmul.mubr.f32.gmra.mrb[0].mxu0 %v3460
      %v3540 = vpop.f32.mrb[0].mxu0
      %v3541 = vadd.f32 %v3444, %v3540
      %v3542 = vpop.f32.mrb[0].mxu0
      %v3543 = vadd.f32 %v3444, %v3542
      %3544 = vmatprep.mubr.f32.mxu0 0.0
      %3545 = vmatmul.mubr.f32.gmra.mrb[0].mxu0 %v3463
      %v3546 = vpop.f32.mrb[0].mxu0
      %v3547 = vadd.f32 %v3449, %v3546
      %v3548 = vpop.f32.mrb[0].mxu0
      %v3549 = vadd.f32 %v3449, %v3548
      %3550 = vmatprep.mubr.f32.mxu0 0.0
      %3551 = vmatmul.mubr.f32.gmra.mrb[0].mxu0 %v3466
      %v3552 = vpop.f32.mrb[0].mxu0
      %v3553 = vadd.f32 %v3454, %v3552
      %v3554 = vpop.f32.mrb[0].mxu0
      %v3555 = vadd.f32 %v3454, %v3554
      %3556 = vdwg.mxu0
      %v3557 = vmul.f32 %v3535, 0.2
      %v3558 = vmul.f32 %v3537, 0.2
      %v3559 = vmul.f32 %v3541, 0.2
      %v3560 = vmul.f32 %v3543, 0.2
      %v3561 = vmul.f32 %v3547, 0.2
      %v3562 = vmul.f32 %v3549, 0.2
      %v3563 = vmul.f32 %v3553, 0.2
      %v3564 = vmul.f32 %v3555, 0.2
      %v3565 = vmax.f32 %v3535, %v3557
      %v3566 = vmax.f32 %v3537, %v3558
      %v3567 = vmax.f32 %v3541, %v3559
      %v3568 = vmax.f32 %v3543, %v3560
      %v3569 = vmax.f32 %v3547, %v3561
      %v3570 = vmax.f32 %v3549, %v3562
      %v3571 = vmax.f32 %v3553, %v3563
      %v3572 = vmax.f32 %v3555, %v3564
      %v3573 = vadd.f32 %v3418, %v3565
      %v3574 = vadd.f32 %v3419, %v3566
      %v3575 = vadd.f32 %v3420, %v3567
      %v3576 = vadd.f32 %v3421, %v3568
      %v3577 = vadd.f32 %v3422, %v3569
      %v3578 = vadd.f32 %v3423, %v3570
      %v3579 = vadd.f32 %v3424, %v3571
      %v3580 = vadd.f32 %v3425, %v3572
      %s3581 = scalar_lea.vmem %s8, 96
      %v3582 = vld [vmem:[%s3581] sm:$0xff]
      %v3583 = vld [vmem:[%s3581 + $0x8] sm:$0xff]
      %v3584 = vld [vmem:[%s3581 + $0x10] sm:$0xff]
      %v3585 = vld [vmem:[%s3581 + $0x18] sm:$0xff]
      %s3586 = scalar_lea.vmem %s9, 96
      %v3587 = vld [vmem:[%s3586] sm:$0xff]
      %v3588 = vld [vmem:[%s3586 + $0x8] sm:$0xff]
      %v3589 = vld [vmem:[%s3586 + $0x10] sm:$0xff]
      %v3590 = vld [vmem:[%s3586 + $0x18] sm:$0xff]
      %3592 = vset.pattern.permute.xlu0 0
      %3593 = vperm.xlu0 %3592, %v3587
      %v3594 = vpop.permute.xlu0 %3593
      %3597 = vset.pattern.permute.xlu0 0
      %3598 = vperm.xlu0 %3597, %v3588
      %v3599 = vpop.permute.xlu0 %3598
      %3602 = vset.pattern.permute.xlu0 0
      %3603 = vperm.xlu0 %3602, %v3589
      %v3604 = vpop.permute.xlu0 %3603
      %3607 = vset.pattern.permute.xlu0 0
      %3608 = vperm.xlu0 %3607, %v3590
      %v3609 = vpop.permute.xlu0 %3608
      %v3612 = vsel %vm739, %v3582, 0
      %v3615 = vsel %vm739, %v3583, 0
      %v3618 = vsel %vm739, %v3584, 0
      %v3621 = vsel %vm739, %v3585, 0
      %3623 = vmatprep.subr.mxu0 %v3574
      %3624 = vmatpush1.msra.mxu0 %v3573
      %3625 = vmatprep.subr.mxu0 %v3576
      %3626 = vmatpush1.msra.mxu0 %v3575
      %3627 = vmatprep.subr.mxu0 %v3578
      %3628 = vmatpush1.msra.mxu0 %v3577
      %3629 = vmatprep.subr.mxu0 %v3580
      %3630 = vmatpush1.msra.mxu0 %v3579
      %3631 = vmatprep.subr.mxu0 0.0
      %3632 = vmatpush1.msra.mxu0 0.0
      %3633 = vmatprep.subr.mxu0 0.0
      %3634 = vmatpush1.msra.mxu0 0.0
      %3635 = vmatprep.subr.mxu0 0.0
      %3636 = vmatpush1.msra.mxu0 0.0
      %3637 = vmatprep.subr.mxu0 0.0
      %3638 = vmatpush1.msra.mxu0 0.0
      %3639 = vmatprep.subr.mxu0 0.0
      %3640 = vmatpush1.msra.mxu0 0.0
      %3641 = vmatprep.subr.mxu0 0.0
      %3642 = vmatpush1.msra.mxu0 0.0
      %3643 = vmatprep.subr.mxu0 0.0
      %3644 = vmatpush1.msra.mxu0 0.0
      %3645 = vmatprep.subr.mxu0 0.0
      %3646 = vmatpush1.msra.mxu0 0.0
      %3647 = vmatprep.subr.mxu0 0.0
      %3648 = vmatpush1.msra.mxu0 0.0
      %3649 = vmatprep.subr.mxu0 0.0
      %3650 = vmatpush1.msra.mxu0 0.0
      %3651 = vmatprep.subr.mxu0 0.0
      %3652 = vmatpush1.msra.mxu0 0.0
      %3653 = vmatprep.subr.mxu0 0.0
      %3654 = vmatpush1.msra.mxu0 0.0
      %3655 = vmatprep.subr.mxu0 0.0
      %3656 = vmatpush1.msra.mxu0 0.0
      %3657 = vmatprep.subr.mxu0 0.0
      %3658 = vmatpush1.msra.mxu0 0.0
      %3659 = vmatprep.subr.mxu0 0.0
      %3660 = vmatpush1.msra.mxu0 0.0
      %3661 = vmatprep.subr.mxu0 0.0
      %3662 = vmatpush1.msra.mxu0 0.0
      %3663 = vmatprep.subr.mxu0 0.0
      %3664 = vmatpush1.msra.mxu0 0.0
      %3665 = vmatprep.subr.mxu0 0.0
      %3666 = vmatpush1.msra.mxu0 0.0
      %3667 = vmatprep.subr.mxu0 0.0
      %3668 = vmatpush1.msra.mxu0 0.0
      %3669 = vmatprep.subr.mxu0 0.0
      %3670 = vmatpush1.msra.mxu0 0.0
      %3671 = vmatprep.subr.mxu0 0.0
      %3672 = vmatpush1.msra.mxu0 0.0
      %3673 = vmatprep.subr.mxu0 0.0
      %3674 = vmatpush1.msra.mxu0 0.0
      %3675 = vmatprep.subr.mxu0 0.0
      %3676 = vmatpush1.msra.mxu0 0.0
      %3677 = vmatprep.subr.mxu0 0.0
      %3678 = vmatpush1.msra.mxu0 0.0
      %3679 = vmatprep.subr.mxu0 0.0
      %3680 = vmatpush1.msra.mxu0 0.0
      %3681 = vmatprep.subr.mxu0 0.0
      %3682 = vmatpush1.msra.mxu0 0.0
      %3683 = vmatprep.subr.mxu0 0.0
      %3684 = vmatpush1.msra.mxu0 0.0
      %3685 = vmatprep.subr.mxu0 0.0
      %3686 = vmatpush1.msra.mxu0 0.0
      %3687 = vmatprep.mubr.f32.mxu0 0.0
      %3688 = vmatmul.mubr.f32.gmra.mrb[0].mxu0 %v3612
      %v3689 = vpop.f32.mrb[0].mxu0
      %v3690 = vadd.f32 %v3594, %v3689
      %v3691 = vpop.f32.mrb[0].mxu0
      %v3692 = vadd.f32 %v3594, %v3691
      %3693 = vmatprep.mubr.f32.mxu0 0.0
      %3694 = vmatmul.mubr.f32.gmra.mrb[0].mxu0 %v3615
      %v3695 = vpop.f32.mrb[0].mxu0
      %v3696 = vadd.f32 %v3599, %v3695
      %v3697 = vpop.f32.mrb[0].mxu0
      %v3698 = vadd.f32 %v3599, %v3697
      %3699 = vmatprep.mubr.f32.mxu0 0.0
      %3700 = vmatmul.mubr.f32.gmra.mrb[0].mxu0 %v3618
      %v3701 = vpop.f32.mrb[0].mxu0
      %v3702 = vadd.f32 %v3604, %v3701
      %v3703 = vpop.f32.mrb[0].mxu0
      %v3704 = vadd.f32 %v3604, %v3703
      %3705 = vmatprep.mubr.f32.mxu0 0.0
      %3706 = vmatmul.mubr.f32.gmra.mrb[0].mxu0 %v3621
      %v3707 = vpop.f32.mrb[0].mxu0
      %v3708 = vadd.f32 %v3609, %v3707
      %v3709 = vpop.f32.mrb[0].mxu0
      %v3710 = vadd.f32 %v3609, %v3709
      %3711 = vdwg.mxu0
      %v3712 = vmul.f32 %v3690, 0.2
      %v3713 = vmul.f32 %v3692, 0.2
      %v3714 = vmul.f32 %v3696, 0.2
      %v3715 = vmul.f32 %v3698, 0.2
      %v3716 = vmul.f32 %v3702, 0.2
      %v3717 = vmul.f32 %v3704, 0.2
      %v3718 = vmul.f32 %v3708, 0.2
      %v3719 = vmul.f32 %v3710, 0.2
      %v3720 = vmax.f32 %v3690, %v3712
      %v3721 = vmax.f32 %v3692, %v3713
      %v3722 = vmax.f32 %v3696, %v3714
      %v3723 = vmax.f32 %v3698, %v3715
      %v3724 = vmax.f32 %v3702, %v3716
      %v3725 = vmax.f32 %v3704, %v3717
      %v3726 = vmax.f32 %v3708, %v3718
      %v3727 = vmax.f32 %v3710, %v3719
      %v3728 = vadd.f32 %v3573, %v3720
      %v3729 = vadd.f32 %v3574, %v3721
      %v3730 = vadd.f32 %v3575, %v3722
      %v3731 = vadd.f32 %v3576, %v3723
      %v3732 = vadd.f32 %v3577, %v3724
      %v3733 = vadd.f32 %v3578, %v3725
      %v3734 = vadd.f32 %v3579, %v3726
      %v3735 = vadd.f32 %v3580, %v3727
      %s3736 = scalar_lea.vmem %s8, 128
      %v3737 = vld [vmem:[%s3736] sm:$0xff]
      %v3738 = vld [vmem:[%s3736 + $0x8] sm:$0xff]
      %v3739 = vld [vmem:[%s3736 + $0x10] sm:$0xff]
      %v3740 = vld [vmem:[%s3736 + $0x18] sm:$0xff]
      %s3741 = scalar_lea.vmem %s9, 128
      %v3742 = vld [vmem:[%s3741] sm:$0xff]
      %v3743 = vld [vmem:[%s3741 + $0x8] sm:$0xff]
      %v3744 = vld [vmem:[%s3741 + $0x10] sm:$0xff]
      %v3745 = vld [vmem:[%s3741 + $0x18] sm:$0xff]
      %3747 = vset.pattern.permute.xlu0 0
      %3748 = vperm.xlu0 %3747, %v3742
      %v3749 = vpop.permute.xlu0 %3748
      %3752 = vset.pattern.permute.xlu0 0
      %3753 = vperm.xlu0 %3752, %v3743
      %v3754 = vpop.permute.xlu0 %3753
      %3757 = vset.pattern.permute.xlu0 0
      %3758 = vperm.xlu0 %3757, %v3744
      %v3759 = vpop.permute.xlu0 %3758
      %3762 = vset.pattern.permute.xlu0 0
      %3763 = vperm.xlu0 %3762, %v3745
      %v3764 = vpop.permute.xlu0 %3763
      %v3767 = vsel %vm739, %v3737, 0
      %v3770 = vsel %vm739, %v3738, 0
      %v3773 = vsel %vm739, %v3739, 0
      %v3776 = vsel %vm739, %v3740, 0
      %3778 = vmatprep.subr.mxu0 %v3729
      %3779 = vmatpush1.msra.mxu0 %v3728
      %3780 = vmatprep.subr.mxu0 %v3731
      %3781 = vmatpush1.msra.mxu0 %v3730
      %3782 = vmatprep.subr.mxu0 %v3733
      %3783 = vmatpush1.msra.mxu0 %v3732
      %3784 = vmatprep.subr.mxu0 %v3735
      %3785 = vmatpush1.msra.mxu0 %v3734
      %3786 = vmatprep.subr.mxu0 0.0
      %3787 = vmatpush1.msra.mxu0 0.0
      %3788 = vmatprep.subr.mxu0 0.0
      %3789 = vmatpush1.msra.mxu0 0.0
      %3790 = vmatprep.subr.mxu0 0.0
      %3791 = vmatpush1.msra.mxu0 0.0
      %3792 = vmatprep.subr.mxu0 0.0
      %3793 = vmatpush1.msra.mxu0 0.0
      %3794 = vmatprep.subr.mxu0 0.0
      %3795 = vmatpush1.msra.mxu0 0.0
      %3796 = vmatprep.subr.mxu0 0.0
      %3797 = vmatpush1.msra.mxu0 0.0
      %3798 = vmatprep.subr.mxu0 0.0
      %3799 = vmatpush1.msra.mxu0 0.0
      %3800 = vmatprep.subr.mxu0 0.0
      %3801 = vmatpush1.msra.mxu0 0.0
      %3802 = vmatprep.subr.mxu0 0.0
      %3803 = vmatpush1.msra.mxu0 0.0
      %3804 = vmatprep.subr.mxu0 0.0
      %3805 = vmatpush1.msra.mxu0 0.0
      %3806 = vmatprep.subr.mxu0 0.0
      %3807 = vmatpush1.msra.mxu0 0.0
      %3808 = vmatprep.subr.mxu0 0.0
      %3809 = vmatpush1.msra.mxu0 0.0
      %3810 = vmatprep.subr.mxu0 0.0
      %3811 = vmatpush1.msra.mxu0 0.0
      %3812 = vmatprep.subr.mxu0 0.0
      %3813 = vmatpush1.msra.mxu0 0.0
      %3814 = vmatprep.subr.mxu0 0.0
      %3815 = vmatpush1.msra.mxu0 0.0
      %3816 = vmatprep.subr.mxu0 0.0
      %3817 = vmatpush1.msra.mxu0 0.0
      %3818 = vmatprep.subr.mxu0 0.0
      %3819 = vmatpush1.msra.mxu0 0.0
      %3820 = vmatprep.subr.mxu0 0.0
      %3821 = vmatpush1.msra.mxu0 0.0
      %3822 = vmatprep.subr.mxu0 0.0
      %3823 = vmatpush1.msra.mxu0 0.0
      %3824 = vmatprep.subr.mxu0 0.0
      %3825 = vmatpush1.msra.mxu0 0.0
      %3826 = vmatprep.subr.mxu0 0.0
      %3827 = vmatpush1.msra.mxu0 0.0
      %3828 = vmatprep.subr.mxu0 0.0
      %3829 = vmatpush1.msra.mxu0 0.0
      %3830 = vmatprep.subr.mxu0 0.0
      %3831 = vmatpush1.msra.mxu0 0.0
      %3832 = vmatprep.subr.mxu0 0.0
      %3833 = vmatpush1.msra.mxu0 0.0
      %3834 = vmatprep.subr.mxu0 0.0
      %3835 = vmatpush1.msra.mxu0 0.0
      %3836 = vmatprep.subr.mxu0 0.0
      %3837 = vmatpush1.msra.mxu0 0.0
      %3838 = vmatprep.subr.mxu0 0.0
      %3839 = vmatpush1.msra.mxu0 0.0
      %3840 = vmatprep.subr.mxu0 0.0
      %3841 = vmatpush1.msra.mxu0 0.0
      %3842 = vmatprep.mubr.f32.mxu0 0.0
      %3843 = vmatmul.mubr.f32.gmra.mrb[0].mxu0 %v3767
      %v3844 = vpop.f32.mrb[0].mxu0
      %v3845 = vadd.f32 %v3749, %v3844
      %v3846 = vpop.f32.mrb[0].mxu0
      %v3847 = vadd.f32 %v3749, %v3846
      %3848 = vmatprep.mubr.f32.mxu0 0.0
      %3849 = vmatmul.mubr.f32.gmra.mrb[0].mxu0 %v3770
      %v3850 = vpop.f32.mrb[0].mxu0
      %v3851 = vadd.f32 %v3754, %v3850
      %v3852 = vpop.f32.mrb[0].mxu0
      %v3853 = vadd.f32 %v3754, %v3852
      %3854 = vmatprep.mubr.f32.mxu0 0.0
      %3855 = vmatmul.mubr.f32.gmra.mrb[0].mxu0 %v3773
      %v3856 = vpop.f32.mrb[0].mxu0
      %v3857 = vadd.f32 %v3759, %v3856
      %v3858 = vpop.f32.mrb[0].mxu0
      %v3859 = vadd.f32 %v3759, %v3858
      %3860 = vmatprep.mubr.f32.mxu0 0.0
      %3861 = vmatmul.mubr.f32.gmra.mrb[0].mxu0 %v3776
      %v3862 = vpop.f32.mrb[0].mxu0
      %v3863 = vadd.f32 %v3764, %v3862
      %v3864 = vpop.f32.mrb[0].mxu0
      %v3865 = vadd.f32 %v3764, %v3864
      %3866 = vdwg.mxu0
      %v3867 = vmul.f32 %v3845, 0.2
      %v3868 = vmul.f32 %v3847, 0.2
      %v3869 = vmul.f32 %v3851, 0.2
      %v3870 = vmul.f32 %v3853, 0.2
      %v3871 = vmul.f32 %v3857, 0.2
      %v3872 = vmul.f32 %v3859, 0.2
      %v3873 = vmul.f32 %v3863, 0.2
      %v3874 = vmul.f32 %v3865, 0.2
      %v3875 = vmax.f32 %v3845, %v3867
      %v3876 = vmax.f32 %v3847, %v3868
      %v3877 = vmax.f32 %v3851, %v3869
      %v3878 = vmax.f32 %v3853, %v3870
      %v3879 = vmax.f32 %v3857, %v3871
      %v3880 = vmax.f32 %v3859, %v3872
      %v3881 = vmax.f32 %v3863, %v3873
      %v3882 = vmax.f32 %v3865, %v3874
      %v3883 = vadd.f32 %v3728, %v3875
      %v3884 = vadd.f32 %v3729, %v3876
      %v3885 = vadd.f32 %v3730, %v3877
      %v3886 = vadd.f32 %v3731, %v3878
      %v3887 = vadd.f32 %v3732, %v3879
      %v3888 = vadd.f32 %v3733, %v3880
      %v3889 = vadd.f32 %v3734, %v3881
      %v3890 = vadd.f32 %v3735, %v3882
      %s3891 = scalar_lea.vmem %s8, 160
      %v3892 = vld [vmem:[%s3891] sm:$0xff]
      %v3893 = vld [vmem:[%s3891 + $0x8] sm:$0xff]
      %v3894 = vld [vmem:[%s3891 + $0x10] sm:$0xff]
      %v3895 = vld [vmem:[%s3891 + $0x18] sm:$0xff]
      %s3896 = scalar_lea.vmem %s9, 160
      %v3897 = vld [vmem:[%s3896] sm:$0xff]
      %v3898 = vld [vmem:[%s3896 + $0x8] sm:$0xff]
      %v3899 = vld [vmem:[%s3896 + $0x10] sm:$0xff]
      %v3900 = vld [vmem:[%s3896 + $0x18] sm:$0xff]
      %3902 = vset.pattern.permute.xlu0 0
      %3903 = vperm.xlu0 %3902, %v3897
      %v3904 = vpop.permute.xlu0 %3903
      %3907 = vset.pattern.permute.xlu0 0
      %3908 = vperm.xlu0 %3907, %v3898
      %v3909 = vpop.permute.xlu0 %3908
      %3912 = vset.pattern.permute.xlu0 0
      %3913 = vperm.xlu0 %3912, %v3899
      %v3914 = vpop.permute.xlu0 %3913
      %3917 = vset.pattern.permute.xlu0 0
      %3918 = vperm.xlu0 %3917, %v3900
      %v3919 = vpop.permute.xlu0 %3918
      %v3922 = vsel %vm739, %v3892, 0
      %v3925 = vsel %vm739, %v3893, 0
      %v3928 = vsel %vm739, %v3894, 0
      %v3931 = vsel %vm739, %v3895, 0
      %3933 = vmatprep.subr.mxu0 %v3884
      %3934 = vmatpush1.msra.mxu0 %v3883
      %3935 = vmatprep.subr.mxu0 %v3886
      %3936 = vmatpush1.msra.mxu0 %v3885
      %3937 = vmatprep.subr.mxu0 %v3888
      %3938 = vmatpush1.msra.mxu0 %v3887
      %3939 = vmatprep.subr.mxu0 %v3890
      %3940 = vmatpush1.msra.mxu0 %v3889
      %3941 = vmatprep.subr.mxu0 0.0
      %3942 = vmatpush1.msra.mxu0 0.0
      %3943 = vmatprep.subr.mxu0 0.0
      %3944 = vmatpush1.msra.mxu0 0.0
      %3945 = vmatprep.subr.mxu0 0.0
      %3946 = vmatpush1.msra.mxu0 0.0
      %3947 = vmatprep.subr.mxu0 0.0
      %3948 = vmatpush1.msra.mxu0 0.0
      %3949 = vmatprep.subr.mxu0 0.0
      %3950 = vmatpush1.msra.mxu0 0.0
      %3951 = vmatprep.subr.mxu0 0.0
      %3952 = vmatpush1.msra.mxu0 0.0
      %3953 = vmatprep.subr.mxu0 0.0
      %3954 = vmatpush1.msra.mxu0 0.0
      %3955 = vmatprep.subr.mxu0 0.0
      %3956 = vmatpush1.msra.mxu0 0.0
      %3957 = vmatprep.subr.mxu0 0.0
      %3958 = vmatpush1.msra.mxu0 0.0
      %3959 = vmatprep.subr.mxu0 0.0
      %3960 = vmatpush1.msra.mxu0 0.0
      %3961 = vmatprep.subr.mxu0 0.0
      %3962 = vmatpush1.msra.mxu0 0.0
      %3963 = vmatprep.subr.mxu0 0.0
      %3964 = vmatpush1.msra.mxu0 0.0
      %3965 = vmatprep.subr.mxu0 0.0
      %3966 = vmatpush1.msra.mxu0 0.0
      %3967 = vmatprep.subr.mxu0 0.0
      %3968 = vmatpush1.msra.mxu0 0.0
      %3969 = vmatprep.subr.mxu0 0.0
      %3970 = vmatpush1.msra.mxu0 0.0
      %3971 = vmatprep.subr.mxu0 0.0
      %3972 = vmatpush1.msra.mxu0 0.0
      %3973 = vmatprep.subr.mxu0 0.0
      %3974 = vmatpush1.msra.mxu0 0.0
      %3975 = vmatprep.subr.mxu0 0.0
      %3976 = vmatpush1.msra.mxu0 0.0
      %3977 = vmatprep.subr.mxu0 0.0
      %3978 = vmatpush1.msra.mxu0 0.0
      %3979 = vmatprep.subr.mxu0 0.0
      %3980 = vmatpush1.msra.mxu0 0.0
      %3981 = vmatprep.subr.mxu0 0.0
      %3982 = vmatpush1.msra.mxu0 0.0
      %3983 = vmatprep.subr.mxu0 0.0
      %3984 = vmatpush1.msra.mxu0 0.0
      %3985 = vmatprep.subr.mxu0 0.0
      %3986 = vmatpush1.msra.mxu0 0.0
      %3987 = vmatprep.subr.mxu0 0.0
      %3988 = vmatpush1.msra.mxu0 0.0
      %3989 = vmatprep.subr.mxu0 0.0
      %3990 = vmatpush1.msra.mxu0 0.0
      %3991 = vmatprep.subr.mxu0 0.0
      %3992 = vmatpush1.msra.mxu0 0.0
      %3993 = vmatprep.subr.mxu0 0.0
      %3994 = vmatpush1.msra.mxu0 0.0
      %3995 = vmatprep.subr.mxu0 0.0
      %3996 = vmatpush1.msra.mxu0 0.0
      %3997 = vmatprep.mubr.f32.mxu0 0.0
      %3998 = vmatmul.mubr.f32.gmra.mrb[0].mxu0 %v3922
      %v3999 = vpop.f32.mrb[0].mxu0
      %v4000 = vadd.f32 %v3904, %v3999
      %v4001 = vpop.f32.mrb[0].mxu0
      %v4002 = vadd.f32 %v3904, %v4001
      %4003 = vmatprep.mubr.f32.mxu0 0.0
      %4004 = vmatmul.mubr.f32.gmra.mrb[0].mxu0 %v3925
      %v4005 = vpop.f32.mrb[0].mxu0
      %v4006 = vadd.f32 %v3909, %v4005
      %v4007 = vpop.f32.mrb[0].mxu0
      %v4008 = vadd.f32 %v3909, %v4007
      %4009 = vmatprep.mubr.f32.mxu0 0.0
      %4010 = vmatmul.mubr.f32.gmra.mrb[0].mxu0 %v3928
      %v4011 = vpop.f32.mrb[0].mxu0
      %v4012 = vadd.f32 %v3914, %v4011
      %v4013 = vpop.f32.mrb[0].mxu0
      %v4014 = vadd.f32 %v3914, %v4013
      %4015 = vmatprep.mubr.f32.mxu0 0.0
      %4016 = vmatmul.mubr.f32.gmra.mrb[0].mxu0 %v3931
      %v4017 = vpop.f32.mrb[0].mxu0
      %v4018 = vadd.f32 %v3919, %v4017
      %v4019 = vpop.f32.mrb[0].mxu0
      %v4020 = vadd.f32 %v3919, %v4019
      %4021 = vdwg.mxu0
      %v4022 = vmul.f32 %v4000, 0.2
      %v4023 = vmul.f32 %v4002, 0.2
      %v4024 = vmul.f32 %v4006, 0.2
      %v4025 = vmul.f32 %v4008, 0.2
      %v4026 = vmul.f32 %v4012, 0.2
      %v4027 = vmul.f32 %v4014, 0.2
      %v4028 = vmul.f32 %v4018, 0.2
      %v4029 = vmul.f32 %v4020, 0.2
      %v4030 = vmax.f32 %v4000, %v4022
      %v4031 = vmax.f32 %v4002, %v4023
      %v4032 = vmax.f32 %v4006, %v4024
      %v4033 = vmax.f32 %v4008, %v4025
      %v4034 = vmax.f32 %v4012, %v4026
      %v4035 = vmax.f32 %v4014, %v4027
      %v4036 = vmax.f32 %v4018, %v4028
      %v4037 = vmax.f32 %v4020, %v4029
      %v4038 = vadd.f32 %v3883, %v4030
      %v4039 = vadd.f32 %v3884, %v4031
      %v4040 = vadd.f32 %v3885, %v4032
      %v4041 = vadd.f32 %v3886, %v4033
      %v4042 = vadd.f32 %v3887, %v4034
      %v4043 = vadd.f32 %v3888, %v4035
      %v4044 = vadd.f32 %v3889, %v4036
      %v4045 = vadd.f32 %v3890, %v4037
      %s4046 = scalar_lea.vmem %s8, 192
      %v4047 = vld [vmem:[%s4046] sm:$0xff]
      %v4048 = vld [vmem:[%s4046 + $0x8] sm:$0xff]
      %v4049 = vld [vmem:[%s4046 + $0x10] sm:$0xff]
      %v4050 = vld [vmem:[%s4046 + $0x18] sm:$0xff]
      %s4051 = scalar_lea.vmem %s9, 192
      %v4052 = vld [vmem:[%s4051] sm:$0xff]
      %v4053 = vld [vmem:[%s4051 + $0x8] sm:$0xff]
      %v4054 = vld [vmem:[%s4051 + $0x10] sm:$0xff]
      %v4055 = vld [vmem:[%s4051 + $0x18] sm:$0xff]
      %4057 = vset.pattern.permute.xlu0 0
      %4058 = vperm.xlu0 %4057, %v4052
      %v4059 = vpop.permute.xlu0 %4058
      %4062 = vset.pattern.permute.xlu0 0
      %4063 = vperm.xlu0 %4062, %v4053
      %v4064 = vpop.permute.xlu0 %4063
      %4067 = vset.pattern.permute.xlu0 0
      %4068 = vperm.xlu0 %4067, %v4054
      %v4069 = vpop.permute.xlu0 %4068
      %4072 = vset.pattern.permute.xlu0 0
      %4073 = vperm.xlu0 %4072, %v4055
      %v4074 = vpop.permute.xlu0 %4073
      %v4077 = vsel %vm739, %v4047, 0
      %v4080 = vsel %vm739, %v4048, 0
      %v4083 = vsel %vm739, %v4049, 0
      %v4086 = vsel %vm739, %v4050, 0
      %4088 = vmatprep.subr.mxu0 %v4039
      %4089 = vmatpush1.msra.mxu0 %v4038
      %4090 = vmatprep.subr.mxu0 %v4041
      %4091 = vmatpush1.msra.mxu0 %v4040
      %4092 = vmatprep.subr.mxu0 %v4043
      %4093 = vmatpush1.msra.mxu0 %v4042
      %4094 = vmatprep.subr.mxu0 %v4045
      %4095 = vmatpush1.msra.mxu0 %v4044
      %4096 = vmatprep.subr.mxu0 0.0
      %4097 = vmatpush1.msra.mxu0 0.0
      %4098 = vmatprep.subr.mxu0 0.0
      %4099 = vmatpush1.msra.mxu0 0.0
      %4100 = vmatprep.subr.mxu0 0.0
      %4101 = vmatpush1.msra.mxu0 0.0
      %4102 = vmatprep.subr.mxu0 0.0
      %4103 = vmatpush1.msra.mxu0 0.0
      %4104 = vmatprep.subr.mxu0 0.0
      %4105 = vmatpush1.msra.mxu0 0.0
      %4106 = vmatprep.subr.mxu0 0.0
      %4107 = vmatpush1.msra.mxu0 0.0
      %4108 = vmatprep.subr.mxu0 0.0
      %4109 = vmatpush1.msra.mxu0 0.0
      %4110 = vmatprep.subr.mxu0 0.0
      %4111 = vmatpush1.msra.mxu0 0.0
      %4112 = vmatprep.subr.mxu0 0.0
      %4113 = vmatpush1.msra.mxu0 0.0
      %4114 = vmatprep.subr.mxu0 0.0
      %4115 = vmatpush1.msra.mxu0 0.0
      %4116 = vmatprep.subr.mxu0 0.0
      %4117 = vmatpush1.msra.mxu0 0.0
      %4118 = vmatprep.subr.mxu0 0.0
      %4119 = vmatpush1.msra.mxu0 0.0
      %4120 = vmatprep.subr.mxu0 0.0
      %4121 = vmatpush1.msra.mxu0 0.0
      %4122 = vmatprep.subr.mxu0 0.0
      %4123 = vmatpush1.msra.mxu0 0.0
      %4124 = vmatprep.subr.mxu0 0.0
      %4125 = vmatpush1.msra.mxu0 0.0
      %4126 = vmatprep.subr.mxu0 0.0
      %4127 = vmatpush1.msra.mxu0 0.0
      %4128 = vmatprep.subr.mxu0 0.0
      %4129 = vmatpush1.msra.mxu0 0.0
      %4130 = vmatprep.subr.mxu0 0.0
      %4131 = vmatpush1.msra.mxu0 0.0
      %4132 = vmatprep.subr.mxu0 0.0
      %4133 = vmatpush1.msra.mxu0 0.0
      %4134 = vmatprep.subr.mxu0 0.0
      %4135 = vmatpush1.msra.mxu0 0.0
      %4136 = vmatprep.subr.mxu0 0.0
      %4137 = vmatpush1.msra.mxu0 0.0
      %4138 = vmatprep.subr.mxu0 0.0
      %4139 = vmatpush1.msra.mxu0 0.0
      %4140 = vmatprep.subr.mxu0 0.0
      %4141 = vmatpush1.msra.mxu0 0.0
      %4142 = vmatprep.subr.mxu0 0.0
      %4143 = vmatpush1.msra.mxu0 0.0
      %4144 = vmatprep.subr.mxu0 0.0
      %4145 = vmatpush1.msra.mxu0 0.0
      %4146 = vmatprep.subr.mxu0 0.0
      %4147 = vmatpush1.msra.mxu0 0.0
      %4148 = vmatprep.subr.mxu0 0.0
      %4149 = vmatpush1.msra.mxu0 0.0
      %4150 = vmatprep.subr.mxu0 0.0
      %4151 = vmatpush1.msra.mxu0 0.0
      %4152 = vmatprep.mubr.f32.mxu0 0.0
      %4153 = vmatmul.mubr.f32.gmra.mrb[0].mxu0 %v4077
      %v4154 = vpop.f32.mrb[0].mxu0
      %v4155 = vadd.f32 %v4059, %v4154
      %v4156 = vpop.f32.mrb[0].mxu0
      %v4157 = vadd.f32 %v4059, %v4156
      %4158 = vmatprep.mubr.f32.mxu0 0.0
      %4159 = vmatmul.mubr.f32.gmra.mrb[0].mxu0 %v4080
      %v4160 = vpop.f32.mrb[0].mxu0
      %v4161 = vadd.f32 %v4064, %v4160
      %v4162 = vpop.f32.mrb[0].mxu0
      %v4163 = vadd.f32 %v4064, %v4162
      %4164 = vmatprep.mubr.f32.mxu0 0.0
      %4165 = vmatmul.mubr.f32.gmra.mrb[0].mxu0 %v4083
      %v4166 = vpop.f32.mrb[0].mxu0
      %v4167 = vadd.f32 %v4069, %v4166
      %v4168 = vpop.f32.mrb[0].mxu0
      %v4169 = vadd.f32 %v4069, %v4168
      %4170 = vmatprep.mubr.f32.mxu0 0.0
      %4171 = vmatmul.mubr.f32.gmra.mrb[0].mxu0 %v4086
      %v4172 = vpop.f32.mrb[0].mxu0
      %v4173 = vadd.f32 %v4074, %v4172
      %v4174 = vpop.f32.mrb[0].mxu0
      %v4175 = vadd.f32 %v4074, %v4174
      %4176 = vdwg.mxu0
      %v4177 = vmul.f32 %v4155, 0.2
      %v4178 = vmul.f32 %v4157, 0.2
      %v4179 = vmul.f32 %v4161, 0.2
      %v4180 = vmul.f32 %v4163, 0.2
      %v4181 = vmul.f32 %v4167, 0.2
      %v4182 = vmul.f32 %v4169, 0.2
      %v4183 = vmul.f32 %v4173, 0.2
      %v4184 = vmul.f32 %v4175, 0.2
      %v4185 = vmax.f32 %v4155, %v4177
      %v4186 = vmax.f32 %v4157, %v4178
      %v4187 = vmax.f32 %v4161, %v4179
      %v4188 = vmax.f32 %v4163, %v4180
      %v4189 = vmax.f32 %v4167, %v4181
      %v4190 = vmax.f32 %v4169, %v4182
      %v4191 = vmax.f32 %v4173, %v4183
      %v4192 = vmax.f32 %v4175, %v4184
      %v4193 = vadd.f32 %v4038, %v4185
      %v4194 = vadd.f32 %v4039, %v4186
      %v4195 = vadd.f32 %v4040, %v4187
      %v4196 = vadd.f32 %v4041, %v4188
      %v4197 = vadd.f32 %v4042, %v4189
      %v4198 = vadd.f32 %v4043, %v4190
      %v4199 = vadd.f32 %v4044, %v4191
      %v4200 = vadd.f32 %v4045, %v4192
      %s4201 = scalar_lea.vmem %s8, 224
      %v4202 = vld [vmem:[%s4201] sm:$0xff]
      %v4203 = vld [vmem:[%s4201 + $0x8] sm:$0xff]
      %v4204 = vld [vmem:[%s4201 + $0x10] sm:$0xff]
      %v4205 = vld [vmem:[%s4201 + $0x18] sm:$0xff]
      %s4206 = scalar_lea.vmem %s9, 224
      %v4207 = vld [vmem:[%s4206] sm:$0xff]
      %v4208 = vld [vmem:[%s4206 + $0x8] sm:$0xff]
      %v4209 = vld [vmem:[%s4206 + $0x10] sm:$0xff]
      %v4210 = vld [vmem:[%s4206 + $0x18] sm:$0xff]
      %4212 = vset.pattern.permute.xlu0 0
      %4213 = vperm.xlu0 %4212, %v4207
      %v4214 = vpop.permute.xlu0 %4213
      %4217 = vset.pattern.permute.xlu0 0
      %4218 = vperm.xlu0 %4217, %v4208
      %v4219 = vpop.permute.xlu0 %4218
      %4222 = vset.pattern.permute.xlu0 0
      %4223 = vperm.xlu0 %4222, %v4209
      %v4224 = vpop.permute.xlu0 %4223
      %4227 = vset.pattern.permute.xlu0 0
      %4228 = vperm.xlu0 %4227, %v4210
      %v4229 = vpop.permute.xlu0 %4228
      %v4232 = vsel %vm739, %v4202, 0
      %v4235 = vsel %vm739, %v4203, 0
      %v4238 = vsel %vm739, %v4204, 0
      %v4241 = vsel %vm739, %v4205, 0
      %4243 = vmatprep.subr.mxu0 %v4194
      %4244 = vmatpush1.msra.mxu0 %v4193
      %4245 = vmatprep.subr.mxu0 %v4196
      %4246 = vmatpush1.msra.mxu0 %v4195
      %4247 = vmatprep.subr.mxu0 %v4198
      %4248 = vmatpush1.msra.mxu0 %v4197
      %4249 = vmatprep.subr.mxu0 %v4200
      %4250 = vmatpush1.msra.mxu0 %v4199
      %4251 = vmatprep.subr.mxu0 0.0
      %4252 = vmatpush1.msra.mxu0 0.0
      %4253 = vmatprep.subr.mxu0 0.0
      %4254 = vmatpush1.msra.mxu0 0.0
      %4255 = vmatprep.subr.mxu0 0.0
      %4256 = vmatpush1.msra.mxu0 0.0
      %4257 = vmatprep.subr.mxu0 0.0
      %4258 = vmatpush1.msra.mxu0 0.0
      %4259 = vmatprep.subr.mxu0 0.0
      %4260 = vmatpush1.msra.mxu0 0.0
      %4261 = vmatprep.subr.mxu0 0.0
      %4262 = vmatpush1.msra.mxu0 0.0
      %4263 = vmatprep.subr.mxu0 0.0
      %4264 = vmatpush1.msra.mxu0 0.0
      %4265 = vmatprep.subr.mxu0 0.0
      %4266 = vmatpush1.msra.mxu0 0.0
      %4267 = vmatprep.subr.mxu0 0.0
      %4268 = vmatpush1.msra.mxu0 0.0
      %4269 = vmatprep.subr.mxu0 0.0
      %4270 = vmatpush1.msra.mxu0 0.0
      %4271 = vmatprep.subr.mxu0 0.0
      %4272 = vmatpush1.msra.mxu0 0.0
      %4273 = vmatprep.subr.mxu0 0.0
      %4274 = vmatpush1.msra.mxu0 0.0
      %4275 = vmatprep.subr.mxu0 0.0
      %4276 = vmatpush1.msra.mxu0 0.0
      %4277 = vmatprep.subr.mxu0 0.0
      %4278 = vmatpush1.msra.mxu0 0.0
      %4279 = vmatprep.subr.mxu0 0.0
      %4280 = vmatpush1.msra.mxu0 0.0
      %4281 = vmatprep.subr.mxu0 0.0
      %4282 = vmatpush1.msra.mxu0 0.0
      %4283 = vmatprep.subr.mxu0 0.0
      %4284 = vmatpush1.msra.mxu0 0.0
      %4285 = vmatprep.subr.mxu0 0.0
      %4286 = vmatpush1.msra.mxu0 0.0
      %4287 = vmatprep.subr.mxu0 0.0
      %4288 = vmatpush1.msra.mxu0 0.0
      %4289 = vmatprep.subr.mxu0 0.0
      %4290 = vmatpush1.msra.mxu0 0.0
      %4291 = vmatprep.subr.mxu0 0.0
      %4292 = vmatpush1.msra.mxu0 0.0
      %4293 = vmatprep.subr.mxu0 0.0
      %4294 = vmatpush1.msra.mxu0 0.0
      %4295 = vmatprep.subr.mxu0 0.0
      %4296 = vmatpush1.msra.mxu0 0.0
      %4297 = vmatprep.subr.mxu0 0.0
      %4298 = vmatpush1.msra.mxu0 0.0
      %4299 = vmatprep.subr.mxu0 0.0
      %4300 = vmatpush1.msra.mxu0 0.0
      %4301 = vmatprep.subr.mxu0 0.0
      %4302 = vmatpush1.msra.mxu0 0.0
      %4303 = vmatprep.subr.mxu0 0.0
      %4304 = vmatpush1.msra.mxu0 0.0
      %4305 = vmatprep.subr.mxu0 0.0
      %4306 = vmatpush1.msra.mxu0 0.0
      %4307 = vmatprep.mubr.f32.mxu0 0.0
      %4308 = vmatmul.mubr.f32.gmra.mrb[0].mxu0 %v4232
      %v4309 = vpop.f32.mrb[0].mxu0
      %v4310 = vadd.f32 %v4214, %v4309
      %v4311 = vpop.f32.mrb[0].mxu0
      %v4312 = vadd.f32 %v4214, %v4311
      %4313 = vmatprep.mubr.f32.mxu0 0.0
      %4314 = vmatmul.mubr.f32.gmra.mrb[0].mxu0 %v4235
      %v4315 = vpop.f32.mrb[0].mxu0
      %v4316 = vadd.f32 %v4219, %v4315
      %v4317 = vpop.f32.mrb[0].mxu0
      %v4318 = vadd.f32 %v4219, %v4317
      %4319 = vmatprep.mubr.f32.mxu0 0.0
      %4320 = vmatmul.mubr.f32.gmra.mrb[0].mxu0 %v4238
      %v4321 = vpop.f32.mrb[0].mxu0
      %v4322 = vadd.f32 %v4224, %v4321
      %v4323 = vpop.f32.mrb[0].mxu0
      %v4324 = vadd.f32 %v4224, %v4323
      %4325 = vmatprep.mubr.f32.mxu0 0.0
      %4326 = vmatmul.mubr.f32.gmra.mrb[0].mxu0 %v4241
      %v4327 = vpop.f32.mrb[0].mxu0
      %v4328 = vadd.f32 %v4229, %v4327
      %v4329 = vpop.f32.mrb[0].mxu0
      %v4330 = vadd.f32 %v4229, %v4329
      %4331 = vdwg.mxu0
      %v4332 = vmul.f32 %v4310, 0.2
      %v4333 = vmul.f32 %v4312, 0.2
      %v4334 = vmul.f32 %v4316, 0.2
      %v4335 = vmul.f32 %v4318, 0.2
      %v4336 = vmul.f32 %v4322, 0.2
      %v4337 = vmul.f32 %v4324, 0.2
      %v4338 = vmul.f32 %v4328, 0.2
      %v4339 = vmul.f32 %v4330, 0.2
      %v4340 = vmax.f32 %v4310, %v4332
      %v4341 = vmax.f32 %v4312, %v4333
      %v4342 = vmax.f32 %v4316, %v4334
      %v4343 = vmax.f32 %v4318, %v4335
      %v4344 = vmax.f32 %v4322, %v4336
      %v4345 = vmax.f32 %v4324, %v4337
      %v4346 = vmax.f32 %v4328, %v4338
      %v4347 = vmax.f32 %v4330, %v4339
      %v4348 = vadd.f32 %v4193, %v4340
      %v4349 = vadd.f32 %v4194, %v4341
      %v4350 = vadd.f32 %v4195, %v4342
      %v4351 = vadd.f32 %v4196, %v4343
      %v4352 = vadd.f32 %v4197, %v4344
      %v4353 = vadd.f32 %v4198, %v4345
      %v4354 = vadd.f32 %v4199, %v4346
      %v4355 = vadd.f32 %v4200, %v4347
      %v4356 = vld [vmem:[%s10] sm:$0xf]
      %v4357 = vld [vmem:[%s11] sm:$0xf]
      %4359 = vset.pattern.permute.xlu0 0
      %4360 = vperm.xlu0 %4359, %v4357
      %v4361 = vpop.permute.xlu0 %4360
      %v4364 = vsel %vm739, %v4356, 0
      %4366 = vmatprep.subr.mxu0 %v4349
      %4367 = vmatpush1.msra.mxu0 %v4348
      %4368 = vmatprep.subr.mxu0 %v4351
      %4369 = vmatpush1.msra.mxu0 %v4350
      %4370 = vmatprep.subr.mxu0 %v4353
      %4371 = vmatpush1.msra.mxu0 %v4352
      %4372 = vmatprep.subr.mxu0 %v4355
      %4373 = vmatpush1.msra.mxu0 %v4354
      %4374 = vmatprep.subr.mxu0 0.0
      %4375 = vmatpush1.msra.mxu0 0.0
      %4376 = vmatprep.subr.mxu0 0.0
      %4377 = vmatpush1.msra.mxu0 0.0
      %4378 = vmatprep.subr.mxu0 0.0
      %4379 = vmatpush1.msra.mxu0 0.0
      %4380 = vmatprep.subr.mxu0 0.0
      %4381 = vmatpush1.msra.mxu0 0.0
      %4382 = vmatprep.subr.mxu0 0.0
      %4383 = vmatpush1.msra.mxu0 0.0
      %4384 = vmatprep.subr.mxu0 0.0
      %4385 = vmatpush1.msra.mxu0 0.0
      %4386 = vmatprep.subr.mxu0 0.0
      %4387 = vmatpush1.msra.mxu0 0.0
      %4388 = vmatprep.subr.mxu0 0.0
      %4389 = vmatpush1.msra.mxu0 0.0
      %4390 = vmatprep.subr.mxu0 0.0
      %4391 = vmatpush1.msra.mxu0 0.0
      %4392 = vmatprep.subr.mxu0 0.0
      %4393 = vmatpush1.msra.mxu0 0.0
      %4394 = vmatprep.subr.mxu0 0.0
      %4395 = vmatpush1.msra.mxu0 0.0
      %4396 = vmatprep.subr.mxu0 0.0
      %4397 = vmatpush1.msra.mxu0 0.0
      %4398 = vmatprep.subr.mxu0 0.0
      %4399 = vmatpush1.msra.mxu0 0.0
      %4400 = vmatprep.subr.mxu0 0.0
      %4401 = vmatpush1.msra.mxu0 0.0
      %4402 = vmatprep.subr.mxu0 0.0
      %4403 = vmatpush1.msra.mxu0 0.0
      %4404 = vmatprep.subr.mxu0 0.0
      %4405 = vmatpush1.msra.mxu0 0.0
      %4406 = vmatprep.subr.mxu0 0.0
      %4407 = vmatpush1.msra.mxu0 0.0
      %4408 = vmatprep.subr.mxu0 0.0
      %4409 = vmatpush1.msra.mxu0 0.0
      %4410 = vmatprep.subr.mxu0 0.0
      %4411 = vmatpush1.msra.mxu0 0.0
      %4412 = vmatprep.subr.mxu0 0.0
      %4413 = vmatpush1.msra.mxu0 0.0
      %4414 = vmatprep.subr.mxu0 0.0
      %4415 = vmatpush1.msra.mxu0 0.0
      %4416 = vmatprep.subr.mxu0 0.0
      %4417 = vmatpush1.msra.mxu0 0.0
      %4418 = vmatprep.subr.mxu0 0.0
      %4419 = vmatpush1.msra.mxu0 0.0
      %4420 = vmatprep.subr.mxu0 0.0
      %4421 = vmatpush1.msra.mxu0 0.0
      %4422 = vmatprep.subr.mxu0 0.0
      %4423 = vmatpush1.msra.mxu0 0.0
      %4424 = vmatprep.subr.mxu0 0.0
      %4425 = vmatpush1.msra.mxu0 0.0
      %4426 = vmatprep.subr.mxu0 0.0
      %4427 = vmatpush1.msra.mxu0 0.0
      %4428 = vmatprep.subr.mxu0 0.0
      %4429 = vmatpush1.msra.mxu0 0.0
      %4430 = vmatprep.mubr.f32.mxu0 0.0
      %4431 = vmatmul.mubr.f32.gmra.mrb[0].mxu0 %v4364
      %v4432 = vpop.f32.mrb[0].mxu0
      %v4433 = vadd.f32 %v4361, %v4432
      %v4434 = vpop.f32.mrb[0].mxu0
      %v4435 = vadd.f32 %v4361, %v4434
      %4436 = vdwg.mxu0
      %v4439 = vcombine.low %v4433, %v4435
      %4441 = vst [vmem:[%s530] sm:$0xff] %v4439
      %s4442 = smul.u32 2, %s31
      %p4443 = scmp.lt.s32.totalorder %s30, 1
      %s4444 = scalar_select %p4443, %s30, 1
      %p4445 = scmp.lt.s32.totalorder %s4442, 1
      %s4446 = scalar_select %p4445, %s4442, 1
      %s4447 = smul.addr %s4444, 2
      %s4448 = sadd.s32 %s4446, %s4447
      %s4449 = smul.addr %s4448, 4
      %s4450 = scalar_lea.vmem %s12, %s4449
      %s4451 = smul.u32 2, %s31
      %p4452 = scmp.lt.s32.totalorder %s30, 1
      %s4453 = scalar_select %p4452, %s30, 1
      %p4454 = scmp.lt.s32.totalorder %s4451, 1
      %s4455 = scalar_select %p4454, %s4451, 1
      %s4456 = smul.addr %s4453, 2
      %s4457 = sadd.s32 %s4455, %s4456
      %s4458 = scalar_lea.vmem %s13, %s4457
      %s4459 = smul.u32 2, %s31
      %p4460 = scmp.lt.s32.totalorder %s30, 1
      %s4461 = scalar_select %p4460, %s30, 1
      %p4462 = scmp.lt.s32.totalorder %s4459, 1
      %s4463 = scalar_select %p4462, %s4459, 1
      %s4464 = smul.addr %s4461, 2
      %s4465 = sadd.s32 %s4463, %s4464
      %s4466 = scalar_lea.vmem %s14, %s4465
      // Predicated region
      $region69: #{autoencoder_vq_forward.1} parent=67 // pred_check
        %p4467 = pneg %p317
      $region70: #{autoencoder_vq_forward.1} parent=67 // pred_check_branch
        %4469 = sbr.rel (%p4467) target = $region72
      $region71: #{autoencoder_vq_forward.1} parent=67 // pred_region
        %s4470 = smul.u32 2, %s31
      $region72: #{autoencoder_vq_forward.1} parent=67 // pred_fallthru
        _
      // Predicated region
      $region73: #{autoencoder_vq_forward.1} parent=67 // pred_check
        %p4471 = pneg %p345
      $region74: #{autoencoder_vq_forward.1} parent=67 // pred_check_branch
        %4473 = sbr.rel (%p4471) target = $region76
      $region75: #{autoencoder_vq_forward.1} parent=67 // pred_region
        %s4474 = smul.u32 2, %s31
      $region76: #{autoencoder_vq_forward.1} parent=67 // pred_fallthru
        _
      // Predicated region
      $region77: #{autoencoder_vq_forward.1} parent=67 // pred_check
        %p4475 = pneg %p373
      $region78: #{autoencoder_vq_forward.1} parent=67 // pred_check_branch
        %4477 = sbr.rel (%p4475) target = $region80
      $region79: #{autoencoder_vq_forward.1} parent=67 // pred_region
        %s4478 = smul.u32 2, %s31
      $region80: #{autoencoder_vq_forward.1} parent=67 // pred_fallthru
        _
    $region68: #{autoencoder_vq_forward.1} parent=5 // pred_fallthru
      _
    %p4479 = scmp.le.s32.totalorder 2, %s21
    // Predicated region
    $region81: #{autoencoder_vq_forward.1} parent=5 // pred_check
      %p4480 = pneg %p4479
    $region82: #{autoencoder_vq_forward.1} parent=5 // pred_check_branch
      %4482 = sbr.rel (%p4480) target = $region84
    $region83: #{autoencoder_vq_forward.1} parent=5 // pred_region
      %s4483 = ssub.s32 %s21, 2
      // Predicated region
      $region85: #{autoencoder_vq_forward.1} parent=83 // pred_check
        %p4484 = pneg %p323
      $region86: #{autoencoder_vq_forward.1} parent=83 // pred_check_branch
        %4486 = sbr.rel (%p4484) target = $region88
      $region87: #{autoencoder_vq_forward.1} parent=83 // pred_region
        %s4487 = smul.u32 2, %s33
        %p4488 = scmp.lt.s32.totalorder %s32, 1
        %s4489 = scalar_select %p4488, %s32, 1
        %p4490 = scmp.lt.s32.totalorder %s4487, 1
        %s4491 = scalar_select %p4490, %s4487, 1
        %s4492 = smul.addr %s4489, 2
        %s4493 = sadd.s32 %s4491, %s4492
        %s4494 = smul.addr %s4493, 4
        %s4495 = scalar_lea.vmem %s12, %s4494
      $region88: #{autoencoder_vq_forward.1} parent=83 // pred_fallthru
        _
      // Predicated region
      $region89: #{autoencoder_vq_forward.1} parent=83 // pred_check
        %p4496 = pneg %p351
      $region90: #{autoencoder_vq_forward.1} parent=83 // pred_check_branch
        %4498 = sbr.rel (%p4496) target = $region92
      $region91: #{autoencoder_vq_forward.1} parent=83 // pred_region
        %s4499 = smul.u32 2, %s33
        %p4500 = scmp.lt.s32.totalorder %s32, 1
        %s4501 = scalar_select %p4500, %s32, 1
        %p4502 = scmp.lt.s32.totalorder %s4499, 1
        %s4503 = scalar_select %p4502, %s4499, 1
        %s4504 = smul.addr %s4501, 2
        %s4505 = sadd.s32 %s4503, %s4504
        %s4506 = scalar_lea.vmem %s13, %s4505
      $region92: #{autoencoder_vq_forward.1} parent=83 // pred_fallthru
        _
      // Predicated region
      $region93: #{autoencoder_vq_forward.1} parent=83 // pred_check
        %p4507 = pneg %p379
      $region94: #{autoencoder_vq_forward.1} parent=83 // pred_check_branch
        %4509 = sbr.rel (%p4507) target = $region96
      $region95: #{autoencoder_vq_forward.1} parent=83 // pred_region
        %s4510 = smul.u32 2, %s33
        %p4511 = scmp.lt.s32.totalorder %s32, 1
        %s4512 = scalar_select %p4511, %s32, 1
        %p4513 = scmp.lt.s32.totalorder %s4510, 1
        %s4514 = scalar_select %p4513, %s4510, 1
        %s4515 = smul.addr %s4512, 2
        %s4516 = sadd.s32 %s4514, %s4515
        %s4517 = scalar_lea.vmem %s14, %s4516
      $region96: #{autoencoder_vq_forward.1} parent=83 // pred_fallthru
        _
    $region84: #{autoencoder_vq_forward.1} parent=5 // pred_fallthru
      _
  $region6: #{autoencoder_vq_forward.1} parent=0 // loop_footer
    %s25 = sadd.s32 1, %s21
  $region7: #{autoencoder_vq_forward.1} parent=0 // loop_footer_branch
    %20 = sbr.rel target = $region3
  $region8: #{autoencoder_vq_forward.1} parent=0 // loop_exit
    _

</llo_original>
